<compile_context>
chip_gen: v7x
topology: tpu7x:2x2x1
jax: 0.10.0
libtpu: 0.0.40
codegen_flags: <defaults>
</compile_context>

<pallas_src>
import functools

import jax
import jax.numpy as jnp
from jax.experimental import pallas as pl
from jax.experimental.pallas import tpu as pltpu


_LANE = 128


def _round_up(n, m):
    return ((n + m - 1) // m) * m


# ---------------------------------------------------------------------------
# Fused forward kernel: LSTM stack + MLP head, one grid step per batch block.
# Gate order follows PyTorch: i, f, g, o.  ReLU only after head layers.
# ---------------------------------------------------------------------------
def _fused_forward_kernel(x_ref, *refs, n_lstm, head_meta, eps):
    # ---- unpack refs: [w_ih, w_hh, b] * n_lstm, 2 refs per head layer,
    # ---- output ref, then the two time-major VMEM scratches.
    idx = 0
    lstm_refs = []
    for _ in range(n_lstm):
        lstm_refs.append((refs[idx], refs[idx + 1], refs[idx + 2]))
        idx += 3
    head_refs = []
    for _ in head_meta:
        head_refs.append((refs[idx], refs[idx + 1]))
        idx += 2
    out_ref = refs[idx]
    gates_sc = refs[idx + 1]          # (T, Bb, 4E) f32, time-major gate scratch
    h_seq = refs[idx + 2]             # (T, Bb, E)  f32, time-major hidden seq

    Bb, T, E = x_ref.shape
    G = 4 * E

    # Lane mask selecting the "g" (cell-candidate) quarter of the packed gates.
    lane = jax.lax.broadcasted_iota(jnp.int32, (Bb, G), 1)
    g_lanes = (lane >= 2 * E) & (lane < 3 * E)

    # ---- LSTM stack ---------------------------------------------------------
    first = True
    for w_ih_ref, w_hh_ref, b_ref in lstm_refs:
        w_ih = w_ih_ref[...]                          # (E, 4E) bf16
        w_hh = w_hh_ref[...]                          # (E, 4E) bf16
        bias = b_ref[...]                             # (1, 4E) f32

        # Hoisted input projection: one MXU pass over all T*Bb rows, written to
        # the time-major gate scratch so the recurrence only does leading-axis
        # reads.
        if first:
            # Layer 0 input arrives batch-major; project then scatter per time
            # step (off the serial critical path).
            x2d = x_ref[...].reshape(Bb * T, E)
            gin = jnp.dot(x2d.astype(w_ih.dtype), w_ih,
                          preferred_element_type=jnp.float32) + bias
            g3 = gin.reshape(Bb, T, G)
            for t in range(T):
                gates_sc[t] = g3[:, t, :]
            first = False
        else:
            # Deeper layers read the previous layer's time-major hidden seq, so
            # the projection result is already time-major.
            x2d = h_seq[...].reshape(T * Bb, E)
            gin = jnp.dot(x2d.astype(w_ih.dtype), w_ih,
                          preferred_element_type=jnp.float32) + bias
            gates_sc[...] = gin.reshape(T, Bb, G)

        def step(t, carry, w_hh=w_hh):
            h, c = carry
            # Only the recurrent h @ W_hh matmul sits on the serial chain.
            g = gates_sc[t] + jnp.dot(h.astype(w_hh.dtype), w_hh,
                                      preferred_element_type=jnp.float32)
            # One full-width sigmoid; tanh on the g-quarter via
            # tanh(x) = 2*sigmoid(2x) - 1 (lane-mask select, no pre-act slicing).
            gs = jnp.where(g_lanes, g + g, g)
            s = jax.nn.sigmoid(gs)
            act = jnp.where(g_lanes, s + s - 1.0, s)
            i_g = act[:, 0 * E:1 * E]
            f_g = act[:, 1 * E:2 * E]
            g_g = act[:, 2 * E:3 * E]
            o_g = act[:, 3 * E:4 * E]
            c = f_g * c + i_g * g_g
            h = o_g * jnp.tanh(c)
            h_seq[t] = h                               # clean leading-axis store
            return h, c

        h0 = jnp.zeros((Bb, E), jnp.float32)
        c0 = jnp.zeros((Bb, E), jnp.float32)
        jax.lax.fori_loop(0, T, step, (h0, c0), unroll=True)

    # ---- MLP head (position-wise, runs on the time-major row slab) ----------
    y = h_seq[...].reshape(T * Bb, E)
    for (kind, n_true), (a_ref, b_ref) in zip(head_meta, head_refs):
        if kind == "linear":
            y = jnp.dot(y.astype(a_ref.dtype), a_ref[...],
                        preferred_element_type=jnp.float32) + b_ref[...]
        else:
            # LayerNorm over the true (unpadded) width: padded lanes of y are
            # exactly zero, so padded-lane sums drop out; zero-padded gamma/beta
            # keep those lanes zero afterwards.
            inv_n = 1.0 / float(n_true)
            mean = jnp.sum(y, axis=-1, keepdims=True) * inv_n
            ms = jnp.sum(y * y, axis=-1, keepdims=True) * inv_n
            var = jnp.maximum(ms - mean * mean, 0.0)
            y = (y - mean) * jax.lax.rsqrt(var + eps) * a_ref[...] + b_ref[...]
        y = jnp.maximum(y, 0.0)

    # Single lane-dense (T*Bb, 128k) store — the only HBM write of the kernel.
    out_ref[...] = y


# ---------------------------------------------------------------------------
# Wrapper
# ---------------------------------------------------------------------------
def _pick_batch_block(B, T):
    """Split the batch across 2 TensorCores on v7x; single block elsewhere."""
    try:
        kind = jax.devices()[0].device_kind.lower()
    except Exception:
        kind = ""
    two_cores = ("v7" in kind) or ("7x" in kind)
    bb = B
    if two_cores and B % 2 == 0:
        bb = B // 2
    # When blocked (>1 grid step) the output block sublane dim (T*bb) must be a
    # multiple of 8 to satisfy the (8,128) BlockSpec rule.
    if bb != B and (T * bb) % 8 != 0:
        bb = B
    return bb


def predict_model_lstm_forward(params, logs, *, batch_block=None,
                               matmul_dtype=jnp.bfloat16, eps=1e-5):
    """logs: (B, T, E) batch-first, like the PyTorch module.  Returns (B, T, E)."""
    B, T, E = logs.shape
    f32 = jnp.float32
    if batch_block is None:
        batch_block = _pick_batch_block(B, T)
    assert B % batch_block == 0
    Bb = batch_block
    nb = B // Bb

    # ---- Pad head linears / LN params to 128-lane-multiple widths (zero fill).
    # (In practice this would be done once at parameter-load time.)
    head_meta = []
    head_args = []
    cur_true, cur_pad = E, E          # width of y entering the layer
    for layer in params["head"]:
        if layer[0] == "linear":
            _, w, b = layer
            d_in, d_out = w.shape
            assert d_in == cur_true
            d_out_p = _round_up(d_out, _LANE)
            w_p = jnp.zeros((cur_pad, d_out_p), f32).at[:d_in, :d_out].set(w)
            b_p = jnp.zeros((1, d_out_p), f32).at[:, :d_out].set(b.reshape(1, d_out))
            head_args += [w_p.astype(matmul_dtype), b_p]
            head_meta.append(("linear", 0))
            cur_true, cur_pad = d_out, d_out_p
        else:
            _, gmm, beta = layer
            d = gmm.shape[-1]
            assert d == cur_true
            g_p = jnp.zeros((1, cur_pad), f32).at[:, :d].set(gmm.reshape(1, d))
            be_p = jnp.zeros((1, cur_pad), f32).at[:, :d].set(beta.reshape(1, d))
            head_args += [g_p, be_p]
            head_meta.append(("layernorm", d))
    out_true, out_pad = cur_true, cur_pad

    # ---- Assemble args / specs ----------------------------------------------
    x_map = lambda b: (b, 0, 0)
    w_map = lambda b: (0, 0)                      # weights: same block every step

    args = [logs]
    in_specs = [pl.BlockSpec((Bb, T, E), x_map)]
    for (w_ih_t, w_hh_t, bias) in params["lstm"]:
        args += [w_ih_t.astype(matmul_dtype), w_hh_t.astype(matmul_dtype), bias]
        in_specs += [pl.BlockSpec(w_ih_t.shape, w_map),
                     pl.BlockSpec(w_hh_t.shape, w_map),
                     pl.BlockSpec(bias.shape, w_map)]
    for a in head_args:
        args.append(a)
        in_specs.append(pl.BlockSpec(a.shape, w_map))

    kernel = functools.partial(
        _fused_forward_kernel,
        n_lstm=len(params["lstm"]),
        head_meta=tuple(head_meta),
        eps=eps,
    )

    out = pl.pallas_call(
        kernel,
        out_shape=jax.ShapeDtypeStruct((B * T, out_pad), jnp.float32),
        grid=(nb,),
        in_specs=in_specs,
        out_specs=pl.BlockSpec((Bb * T, out_pad), lambda b: (b, 0)),
        scratch_shapes=[
            pltpu.VMEM((T, Bb, 4 * E), jnp.float32),   # time-major gate scratch
            pltpu.VMEM((T, Bb, E), jnp.float32),       # time-major hidden seq
        ],
        compiler_params=pltpu.CompilerParams(
            dimension_semantics=("parallel",),         # batch blocks -> v7x TCs
            vmem_limit_bytes=32 * 1024 * 1024,
        ),
    )(*args)

    # Rows come out as (batch_block, t, local_batch); undo the time-major row
    # order and strip the lane padding on the XLA side (tiny arrays, free).
    out = out.reshape(nb, T, Bb, out_pad)[..., :out_true]
    out = jnp.transpose(out, (0, 2, 1, 3)).reshape(B, T, out_true)
    return out


# ---------------------------------------------------------------------------
# Parameter construction (deterministic, synthetic) mirroring the PyTorch
# module structure.  LSTM weights stored pre-transposed as (in, 4E); biases
# combined (b_ih + b_hh).
# ---------------------------------------------------------------------------
def init_params(key, embedding_dim, lstm_layers, linear_width, linear_layers,
                layer_norm):
    E, W = embedding_dim, linear_width
    params = {"lstm": [], "head": []}
    scale = 0.1

    for _ in range(lstm_layers):
        key, k1, k2, k3, k4 = jax.random.split(key, 5)
        w_ih_t = scale * jax.random.normal(k1, (E, 4 * E), jnp.float32)
        w_hh_t = scale * jax.random.normal(k2, (E, 4 * E), jnp.float32)
        b_ih = scale * jax.random.normal(k3, (4 * E,), jnp.float32)
        b_hh = scale * jax.random.normal(k4, (4 * E,), jnp.float32)
        params["lstm"].append((w_ih_t, w_hh_t, (b_ih + b_hh).reshape(1, 4 * E)))

    def make_linear(key, din, dout):
        key, k1, k2 = jax.random.split(key, 3)
        w_t = scale * jax.random.normal(k1, (din, dout), jnp.float32)
        b = scale * jax.random.normal(k2, (dout,), jnp.float32).reshape(1, dout)
        return key, ("linear", w_t, b)

    def make_ln(dim):
        return ("layernorm", jnp.ones((1, dim), jnp.float32),
                jnp.zeros((1, dim), jnp.float32))

    key, layer = make_linear(key, E, W)
    params["head"].append(layer)
    if layer_norm:
        params["head"].append(make_ln(W))
    for _ in range(1, linear_layers):
        key, layer = make_linear(key, W, W)
        params["head"].append(layer)
        if layer_norm:
            params["head"].append(make_ln(W))
    key, layer = make_linear(key, W, E)
    params["head"].append(layer)
    return params


# ---------------------------------------------------------------------------
# Pure-JAX reference at matched matmul precision (bf16 MXU operands, f32
# accumulation) for validating the fused kernel.  Note: relative to a full-f32
# reference, the bf16-operand path drifts at the ~1e-2 level (amplified by the
# LayerNorms), which is the intended mixed-precision numerics here.
# ---------------------------------------------------------------------------
def _reference_forward(params, logs, *, matmul_dtype=jnp.bfloat16, eps=1e-5):
    B, T, E = logs.shape

    def mm(a, b):
        return jnp.dot(a.astype(matmul_dtype), b.astype(matmul_dtype),
                       preferred_element_type=jnp.float32)

    x = logs
    for (w_ih_t, w_hh_t, bias) in params["lstm"]:
        h = jnp.zeros((B, E), jnp.float32)
        c = jnp.zeros((B, E), jnp.float32)
        outs = []
        for t in range(T):
            g = mm(x[:, t, :], w_ih_t) + mm(h, w_hh_t) + bias
            i_g = jax.nn.sigmoid(g[:, 0 * E:1 * E])
            f_g = jax.nn.sigmoid(g[:, 1 * E:2 * E])
            g_g = jnp.tanh(g[:, 2 * E:3 * E])
            o_g = jax.nn.sigmoid(g[:, 3 * E:4 * E])
            c = f_g * c + i_g * g_g
            h = o_g * jnp.tanh(c)
            outs.append(h)
        x = jnp.stack(outs, axis=1)
    y = x.reshape(B * T, E)
    for layer in params["head"]:
        if layer[0] == "linear":
            _, w, b = layer
            y = mm(y, w) + b
        else:
            _, gmm, beta = layer
            mean = jnp.mean(y, axis=-1, keepdims=True)
            var = jnp.mean((y - mean) ** 2, axis=-1, keepdims=True)
            y = (y - mean) * jax.lax.rsqrt(var + eps) * gmm + beta
        y = jnp.maximum(y, 0.0)
    return y.reshape(B, T, E)


if __name__ == "__main__":
    # Small shapes consistent with the module: batch=2, seq=8, embedding=32.
    B, T, E = 2, 8, 32
    LSTM_LAYERS = 2
    LINEAR_WIDTH = 64
    LINEAR_LAYERS = 2
    LAYER_NORM = True

    key = jax.random.PRNGKey(0)
    key, pk, xk = jax.random.split(key, 3)
    params = init_params(pk, E, LSTM_LAYERS, LINEAR_WIDTH, LINEAR_LAYERS,
                         LAYER_NORM)
    logs = jax.random.normal(xk, (B, T, E), jnp.float32)

    out = predict_model_lstm_forward(params, logs)
    jax.block_until_ready(out)
    assert out.shape == (B, T, E), out.shape

    ref = _reference_forward(params, logs)
    jax.block_until_ready(ref)
    max_err = float(jnp.max(jnp.abs(out - ref)))
    assert max_err < 5e-3, f"mismatch vs matched-precision reference: {max_err}"

    print("KERNEL_OK")
</pallas_src>

<mosaic_0001>
module attributes {stable_mosaic.version = 11 : i64} {
  func.func @_fused_forward_kernel(%arg0: i32, %arg1: memref<2x8x32xf32, #tpu.memory_space<vmem>>, %arg2: memref<32x128xbf16, #tpu.memory_space<vmem>>, %arg3: memref<32x128xbf16, #tpu.memory_space<vmem>>, %arg4: memref<1x128xf32, #tpu.memory_space<vmem>>, %arg5: memref<32x128xbf16, #tpu.memory_space<vmem>>, %arg6: memref<32x128xbf16, #tpu.memory_space<vmem>>, %arg7: memref<1x128xf32, #tpu.memory_space<vmem>>, %arg8: memref<32x128xbf16, #tpu.memory_space<vmem>>, %arg9: memref<1x128xf32, #tpu.memory_space<vmem>>, %arg10: memref<1x128xf32, #tpu.memory_space<vmem>>, %arg11: memref<1x128xf32, #tpu.memory_space<vmem>>, %arg12: memref<128x128xbf16, #tpu.memory_space<vmem>>, %arg13: memref<1x128xf32, #tpu.memory_space<vmem>>, %arg14: memref<1x128xf32, #tpu.memory_space<vmem>>, %arg15: memref<1x128xf32, #tpu.memory_space<vmem>>, %arg16: memref<128x128xbf16, #tpu.memory_space<vmem>>, %arg17: memref<1x128xf32, #tpu.memory_space<vmem>>, %arg18: memref<16x128xf32, #tpu.memory_space<vmem>>, %arg19: memref<8x2x128xf32, #tpu.memory_space<vmem>>, %arg20: memref<8x2x32xf32, #tpu.memory_space<vmem>>) attributes {dimension_semantics = [#tpu.dimension_semantics<parallel>], iteration_bounds = array<i64: 1>, scalar_prefetch = 0 : i64, scratch_operands = 2 : i64, tpu.core_type = #tpu.core_type<tc>, window_params = [{transform_indices = @transform_0, window_bounds = array<i64: 2, 8, 32>}, {pipeline_mode = #tpu.pipeline_mode<synchronous>, transform_indices = @transform_1, window_bounds = array<i64: 32, 128>}, {pipeline_mode = #tpu.pipeline_mode<synchronous>, transform_indices = @transform_2, window_bounds = array<i64: 32, 128>}, {pipeline_mode = #tpu.pipeline_mode<synchronous>, transform_indices = @transform_3, window_bounds = array<i64: 1, 128>}, {pipeline_mode = #tpu.pipeline_mode<synchronous>, transform_indices = @transform_4, window_bounds = array<i64: 32, 128>}, {pipeline_mode = #tpu.pipeline_mode<synchronous>, transform_indices = @transform_5, window_bounds = array<i64: 32, 128>}, {pipeline_mode = #tpu.pipeline_mode<synchronous>, transform_indices = @transform_6, window_bounds = array<i64: 1, 128>}, {pipeline_mode = #tpu.pipeline_mode<synchronous>, transform_indices = @transform_7, window_bounds = array<i64: 32, 128>}, {pipeline_mode = #tpu.pipeline_mode<synchronous>, transform_indices = @transform_8, window_bounds = array<i64: 1, 128>}, {pipeline_mode = #tpu.pipeline_mode<synchronous>, transform_indices = @transform_9, window_bounds = array<i64: 1, 128>}, {pipeline_mode = #tpu.pipeline_mode<synchronous>, transform_indices = @transform_10, window_bounds = array<i64: 1, 128>}, {pipeline_mode = #tpu.pipeline_mode<synchronous>, transform_indices = @transform_11, window_bounds = array<i64: 128, 128>}, {pipeline_mode = #tpu.pipeline_mode<synchronous>, transform_indices = @transform_12, window_bounds = array<i64: 1, 128>}, {pipeline_mode = #tpu.pipeline_mode<synchronous>, transform_indices = @transform_13, window_bounds = array<i64: 1, 128>}, {pipeline_mode = #tpu.pipeline_mode<synchronous>, transform_indices = @transform_14, window_bounds = array<i64: 1, 128>}, {pipeline_mode = #tpu.pipeline_mode<synchronous>, transform_indices = @transform_15, window_bounds = array<i64: 128, 128>}, {pipeline_mode = #tpu.pipeline_mode<synchronous>, transform_indices = @transform_16, window_bounds = array<i64: 1, 128>}, {transform_indices = @transform_17, window_bounds = array<i64: 16, 128>}]} {
    %0 = tpu.iota {dimensions = array<i32: 1>} : vector<2x128xi32>
    %c64_i32 = arith.constant 64 : i32
    %1 = vector.broadcast %c64_i32 : i32 to vector<2x128xi32>
    %2 = arith.cmpi sge, %0, %1 : vector<2x128xi32>
    %c96_i32 = arith.constant 96 : i32
    %3 = vector.broadcast %c96_i32 : i32 to vector<2x128xi32>
    %4 = arith.cmpi slt, %0, %3 : vector<2x128xi32>
    %5 = arith.andi %2, %4 : vector<2x128xi1>
    %c0 = arith.constant 0 : index
    %c0_0 = arith.constant 0 : index
    %6 = vector.load %arg2[%c0, %c0_0] : memref<32x128xbf16, #tpu.memory_space<vmem>>, vector<32x128xbf16>
    %c0_1 = arith.constant 0 : index
    %c0_2 = arith.constant 0 : index
    %7 = vector.load %arg3[%c0_1, %c0_2] : memref<32x128xbf16, #tpu.memory_space<vmem>>, vector<32x128xbf16>
    %c0_3 = arith.constant 0 : index
    %c0_4 = arith.constant 0 : index
    %8 = vector.load %arg4[%c0_3, %c0_4] : memref<1x128xf32, #tpu.memory_space<vmem>>, vector<1x128xf32>
    %c0_5 = arith.constant 0 : index
    %c0_6 = arith.constant 0 : index
    %c0_7 = arith.constant 0 : index
    %9 = vector.load %arg1[%c0_5, %c0_6, %c0_7] : memref<2x8x32xf32, #tpu.memory_space<vmem>>, vector<2x8x32xf32>
    %10 = vector.shape_cast %9 : vector<2x8x32xf32> to vector<16x32xf32>
    %11 = arith.truncf %10 : vector<16x32xf32> to vector<16x32xbf16>
    %cst = arith.constant dense<0.000000e+00> : vector<16x128xf32>
    %12 = tpu.matmul %11, %6, %cst {dimension_numbers = #tpu.dot_dimension_numbers<[1], [0], [0], [1], [0, 0, 1, 1], [], []>} : vector<16x32xbf16>, vector<32x128xbf16>, vector<16x128xf32> -> vector<16x128xf32>
    %13 = vector.broadcast %8 : vector<1x128xf32> to vector<16x128xf32>
    %14 = arith.addf %12, %13 : vector<16x128xf32>
    %15 = vector.shape_cast %14 : vector<16x128xf32> to vector<2x8x128xf32>
    %16 = vector.extract_strided_slice %15 {offsets = [0, 0, 0], sizes = [2, 1, 128], strides = [1, 1, 1]} : vector<2x8x128xf32> to vector<2x1x128xf32>
    %17 = vector.shape_cast %16 : vector<2x1x128xf32> to vector<2x128xf32>
    %c0_8 = arith.constant 0 : index
    %c0_9 = arith.constant 0 : index
    %c0_10 = arith.constant 0 : index
    %18 = vector.load %arg19[%c0_8, %c0_9, %c0_10] : memref<8x2x128xf32, #tpu.memory_space<vmem>>, vector<1x2x128xf32>
    %19 = vector.shape_cast %18 : vector<1x2x128xf32> to vector<2x128xf32>
    %20 = vector.shape_cast %17 : vector<2x128xf32> to vector<1x2x128xf32>
    tpu.vector_store %arg19[%c0_8, %c0_9, %c0_10], %20 {strides = array<i32>} : memref<8x2x128xf32, #tpu.memory_space<vmem>>, vector<1x2x128xf32>,
    %21 = vector.extract_strided_slice %15 {offsets = [0, 1, 0], sizes = [2, 1, 128], strides = [1, 1, 1]} : vector<2x8x128xf32> to vector<2x1x128xf32>
    %22 = vector.shape_cast %21 : vector<2x1x128xf32> to vector<2x128xf32>
    %c1 = arith.constant 1 : index
    %c0_11 = arith.constant 0 : index
    %c0_12 = arith.constant 0 : index
    %23 = vector.load %arg19[%c1, %c0_11, %c0_12] : memref<8x2x128xf32, #tpu.memory_space<vmem>>, vector<1x2x128xf32>
    %24 = vector.shape_cast %23 : vector<1x2x128xf32> to vector<2x128xf32>
    %25 = vector.shape_cast %22 : vector<2x128xf32> to vector<1x2x128xf32>
    tpu.vector_store %arg19[%c1, %c0_11, %c0_12], %25 {strides = array<i32>} : memref<8x2x128xf32, #tpu.memory_space<vmem>>, vector<1x2x128xf32>,
    %26 = vector.extract_strided_slice %15 {offsets = [0, 2, 0], sizes = [2, 1, 128], strides = [1, 1, 1]} : vector<2x8x128xf32> to vector<2x1x128xf32>
    %27 = vector.shape_cast %26 : vector<2x1x128xf32> to vector<2x128xf32>
    %c2 = arith.constant 2 : index
    %c0_13 = arith.constant 0 : index
    %c0_14 = arith.constant 0 : index
    %28 = vector.load %arg19[%c2, %c0_13, %c0_14] : memref<8x2x128xf32, #tpu.memory_space<vmem>>, vector<1x2x128xf32>
    %29 = vector.shape_cast %28 : vector<1x2x128xf32> to vector<2x128xf32>
    %30 = vector.shape_cast %27 : vector<2x128xf32> to vector<1x2x128xf32>
    tpu.vector_store %arg19[%c2, %c0_13, %c0_14], %30 {strides = array<i32>} : memref<8x2x128xf32, #tpu.memory_space<vmem>>, vector<1x2x128xf32>,
    %31 = vector.extract_strided_slice %15 {offsets = [0, 3, 0], sizes = [2, 1, 128], strides = [1, 1, 1]} : vector<2x8x128xf32> to vector<2x1x128xf32>
    %32 = vector.shape_cast %31 : vector<2x1x128xf32> to vector<2x128xf32>
    %c3 = arith.constant 3 : index
    %c0_15 = arith.constant 0 : index
    %c0_16 = arith.constant 0 : index
    %33 = vector.load %arg19[%c3, %c0_15, %c0_16] : memref<8x2x128xf32, #tpu.memory_space<vmem>>, vector<1x2x128xf32>
    %34 = vector.shape_cast %33 : vector<1x2x128xf32> to vector<2x128xf32>
    %35 = vector.shape_cast %32 : vector<2x128xf32> to vector<1x2x128xf32>
    tpu.vector_store %arg19[%c3, %c0_15, %c0_16], %35 {strides = array<i32>} : memref<8x2x128xf32, #tpu.memory_space<vmem>>, vector<1x2x128xf32>,
    %36 = vector.extract_strided_slice %15 {offsets = [0, 4, 0], sizes = [2, 1, 128], strides = [1, 1, 1]} : vector<2x8x128xf32> to vector<2x1x128xf32>
    %37 = vector.shape_cast %36 : vector<2x1x128xf32> to vector<2x128xf32>
    %c4 = arith.constant 4 : index
    %c0_17 = arith.constant 0 : index
    %c0_18 = arith.constant 0 : index
    %38 = vector.load %arg19[%c4, %c0_17, %c0_18] : memref<8x2x128xf32, #tpu.memory_space<vmem>>, vector<1x2x128xf32>
    %39 = vector.shape_cast %38 : vector<1x2x128xf32> to vector<2x128xf32>
    %40 = vector.shape_cast %37 : vector<2x128xf32> to vector<1x2x128xf32>
    tpu.vector_store %arg19[%c4, %c0_17, %c0_18], %40 {strides = array<i32>} : memref<8x2x128xf32, #tpu.memory_space<vmem>>, vector<1x2x128xf32>,
    %41 = vector.extract_strided_slice %15 {offsets = [0, 5, 0], sizes = [2, 1, 128], strides = [1, 1, 1]} : vector<2x8x128xf32> to vector<2x1x128xf32>
    %42 = vector.shape_cast %41 : vector<2x1x128xf32> to vector<2x128xf32>
    %c5 = arith.constant 5 : index
    %c0_19 = arith.constant 0 : index
    %c0_20 = arith.constant 0 : index
    %43 = vector.load %arg19[%c5, %c0_19, %c0_20] : memref<8x2x128xf32, #tpu.memory_space<vmem>>, vector<1x2x128xf32>
    %44 = vector.shape_cast %43 : vector<1x2x128xf32> to vector<2x128xf32>
    %45 = vector.shape_cast %42 : vector<2x128xf32> to vector<1x2x128xf32>
    tpu.vector_store %arg19[%c5, %c0_19, %c0_20], %45 {strides = array<i32>} : memref<8x2x128xf32, #tpu.memory_space<vmem>>, vector<1x2x128xf32>,
    %46 = vector.extract_strided_slice %15 {offsets = [0, 6, 0], sizes = [2, 1, 128], strides = [1, 1, 1]} : vector<2x8x128xf32> to vector<2x1x128xf32>
    %47 = vector.shape_cast %46 : vector<2x1x128xf32> to vector<2x128xf32>
    %c6 = arith.constant 6 : index
    %c0_21 = arith.constant 0 : index
    %c0_22 = arith.constant 0 : index
    %48 = vector.load %arg19[%c6, %c0_21, %c0_22] : memref<8x2x128xf32, #tpu.memory_space<vmem>>, vector<1x2x128xf32>
    %49 = vector.shape_cast %48 : vector<1x2x128xf32> to vector<2x128xf32>
    %50 = vector.shape_cast %47 : vector<2x128xf32> to vector<1x2x128xf32>
    tpu.vector_store %arg19[%c6, %c0_21, %c0_22], %50 {strides = array<i32>} : memref<8x2x128xf32, #tpu.memory_space<vmem>>, vector<1x2x128xf32>,
    %51 = vector.extract_strided_slice %15 {offsets = [0, 7, 0], sizes = [2, 1, 128], strides = [1, 1, 1]} : vector<2x8x128xf32> to vector<2x1x128xf32>
    %52 = vector.shape_cast %51 : vector<2x1x128xf32> to vector<2x128xf32>
    %c7 = arith.constant 7 : index
    %c0_23 = arith.constant 0 : index
    %c0_24 = arith.constant 0 : index
    %53 = vector.load %arg19[%c7, %c0_23, %c0_24] : memref<8x2x128xf32, #tpu.memory_space<vmem>>, vector<1x2x128xf32>
    %54 = vector.shape_cast %53 : vector<1x2x128xf32> to vector<2x128xf32>
    %55 = vector.shape_cast %52 : vector<2x128xf32> to vector<1x2x128xf32>
    tpu.vector_store %arg19[%c7, %c0_23, %c0_24], %55 {strides = array<i32>} : memref<8x2x128xf32, #tpu.memory_space<vmem>>, vector<1x2x128xf32>,
    %cst_25 = arith.constant 0.000000e+00 : f32
    %56 = vector.broadcast %cst_25 : f32 to vector<2x32xf32>
    %cst_26 = arith.constant 0.000000e+00 : f32
    %57 = vector.broadcast %cst_26 : f32 to vector<2x32xf32>
    %c0_i32 = arith.constant 0 : i32
    %58 = arith.index_cast %c0_i32 : i32 to index
    %c0_27 = arith.constant 0 : index
    %c0_28 = arith.constant 0 : index
    %59 = vector.load %arg19[%58, %c0_27, %c0_28] : memref<8x2x128xf32, #tpu.memory_space<vmem>>, vector<1x2x128xf32>
    %60 = vector.shape_cast %59 : vector<1x2x128xf32> to vector<2x128xf32>
    %61 = arith.truncf %56 : vector<2x32xf32> to vector<2x32xbf16>
    %cst_29 = arith.constant dense<0.000000e+00> : vector<2x128xf32>
    %62 = tpu.matmul %61, %7, %cst_29 {dimension_numbers = #tpu.dot_dimension_numbers<[1], [0], [0], [1], [0, 0, 1, 1], [], []>} : vector<2x32xbf16>, vector<32x128xbf16>, vector<2x128xf32> -> vector<2x128xf32>
    %63 = arith.addf %60, %62 : vector<2x128xf32>
    %64 = arith.addf %63, %63 : vector<2x128xf32>
    %65 = arith.select %5, %64, %63 : vector<2x128xi1>, vector<2x128xf32>
    %66 = arith.negf %65 : vector<2x128xf32>
    %67 = math.exp %66 : vector<2x128xf32>
    %cst_30 = arith.constant 1.000000e+00 : f32
    %68 = vector.broadcast %cst_30 : f32 to vector<2x128xf32>
    %69 = arith.addf %68, %67 : vector<2x128xf32>
    %70 = arith.divf %68, %69 : vector<2x128xf32>
    %71 = arith.addf %70, %70 : vector<2x128xf32>
    %cst_31 = arith.constant 1.000000e+00 : f32
    %72 = vector.broadcast %cst_31 : f32 to vector<2x128xf32>
    %73 = arith.subf %71, %72 : vector<2x128xf32>
    %74 = arith.select %5, %73, %70 : vector<2x128xi1>, vector<2x128xf32>
    %75 = vector.extract_strided_slice %74 {offsets = [0, 0], sizes = [2, 32], strides = [1, 1]} : vector<2x128xf32> to vector<2x32xf32>
    %76 = vector.extract_strided_slice %74 {offsets = [0, 32], sizes = [2, 32], strides = [1, 1]} : vector<2x128xf32> to vector<2x32xf32>
    %77 = vector.extract_strided_slice %74 {offsets = [0, 64], sizes = [2, 32], strides = [1, 1]} : vector<2x128xf32> to vector<2x32xf32>
    %78 = vector.extract_strided_slice %74 {offsets = [0, 96], sizes = [2, 32], strides = [1, 1]} : vector<2x128xf32> to vector<2x32xf32>
    %79 = arith.mulf %76, %57 : vector<2x32xf32>
    %80 = arith.mulf %75, %77 : vector<2x32xf32>
    %81 = arith.addf %79, %80 : vector<2x32xf32>
    %82 = math.tanh %81 : vector<2x32xf32>
    %83 = arith.mulf %78, %82 : vector<2x32xf32>
    %84 = arith.index_cast %c0_i32 : i32 to index
    %c0_32 = arith.constant 0 : index
    %c0_33 = arith.constant 0 : index
    %85 = vector.load %arg20[%84, %c0_32, %c0_33] : memref<8x2x32xf32, #tpu.memory_space<vmem>>, vector<1x2x32xf32>
    %86 = vector.shape_cast %85 : vector<1x2x32xf32> to vector<2x32xf32>
    %87 = vector.shape_cast %83 : vector<2x32xf32> to vector<1x2x32xf32>
    tpu.vector_store %arg20[%84, %c0_32, %c0_33], %87 {strides = array<i32>} : memref<8x2x32xf32, #tpu.memory_space<vmem>>, vector<1x2x32xf32>,
    %c1_i32 = arith.constant 1 : i32
    %88 = arith.index_cast %c1_i32 : i32 to index
    %c0_34 = arith.constant 0 : index
    %c0_35 = arith.constant 0 : index
    %89 = vector.load %arg19[%88, %c0_34, %c0_35] : memref<8x2x128xf32, #tpu.memory_space<vmem>>, vector<1x2x128xf32>
    %90 = vector.shape_cast %89 : vector<1x2x128xf32> to vector<2x128xf32>
    %91 = arith.truncf %83 : vector<2x32xf32> to vector<2x32xbf16>
    %cst_36 = arith.constant dense<0.000000e+00> : vector<2x128xf32>
    %92 = tpu.matmul %91, %7, %cst_36 {dimension_numbers = #tpu.dot_dimension_numbers<[1], [0], [0], [1], [0, 0, 1, 1], [], []>} : vector<2x32xbf16>, vector<32x128xbf16>, vector<2x128xf32> -> vector<2x128xf32>
    %93 = arith.addf %90, %92 : vector<2x128xf32>
    %94 = arith.addf %93, %93 : vector<2x128xf32>
    %95 = arith.select %5, %94, %93 : vector<2x128xi1>, vector<2x128xf32>
    %96 = arith.negf %95 : vector<2x128xf32>
    %97 = math.exp %96 : vector<2x128xf32>
    %cst_37 = arith.constant 1.000000e+00 : f32
    %98 = vector.broadcast %cst_37 : f32 to vector<2x128xf32>
    %99 = arith.addf %98, %97 : vector<2x128xf32>
    %100 = arith.divf %98, %99 : vector<2x128xf32>
    %101 = arith.addf %100, %100 : vector<2x128xf32>
    %cst_38 = arith.constant 1.000000e+00 : f32
    %102 = vector.broadcast %cst_38 : f32 to vector<2x128xf32>
    %103 = arith.subf %101, %102 : vector<2x128xf32>
    %104 = arith.select %5, %103, %100 : vector<2x128xi1>, vector<2x128xf32>
    %105 = vector.extract_strided_slice %104 {offsets = [0, 0], sizes = [2, 32], strides = [1, 1]} : vector<2x128xf32> to vector<2x32xf32>
    %106 = vector.extract_strided_slice %104 {offsets = [0, 32], sizes = [2, 32], strides = [1, 1]} : vector<2x128xf32> to vector<2x32xf32>
    %107 = vector.extract_strided_slice %104 {offsets = [0, 64], sizes = [2, 32], strides = [1, 1]} : vector<2x128xf32> to vector<2x32xf32>
    %108 = vector.extract_strided_slice %104 {offsets = [0, 96], sizes = [2, 32], strides = [1, 1]} : vector<2x128xf32> to vector<2x32xf32>
    %109 = arith.mulf %106, %81 : vector<2x32xf32>
    %110 = arith.mulf %105, %107 : vector<2x32xf32>
    %111 = arith.addf %109, %110 : vector<2x32xf32>
    %112 = math.tanh %111 : vector<2x32xf32>
    %113 = arith.mulf %108, %112 : vector<2x32xf32>
    %114 = arith.index_cast %c1_i32 : i32 to index
    %c0_39 = arith.constant 0 : index
    %c0_40 = arith.constant 0 : index
    %115 = vector.load %arg20[%114, %c0_39, %c0_40] : memref<8x2x32xf32, #tpu.memory_space<vmem>>, vector<1x2x32xf32>
    %116 = vector.shape_cast %115 : vector<1x2x32xf32> to vector<2x32xf32>
    %117 = vector.shape_cast %113 : vector<2x32xf32> to vector<1x2x32xf32>
    tpu.vector_store %arg20[%114, %c0_39, %c0_40], %117 {strides = array<i32>} : memref<8x2x32xf32, #tpu.memory_space<vmem>>, vector<1x2x32xf32>,
    %c2_i32 = arith.constant 2 : i32
    %118 = arith.index_cast %c2_i32 : i32 to index
    %c0_41 = arith.constant 0 : index
    %c0_42 = arith.constant 0 : index
    %119 = vector.load %arg19[%118, %c0_41, %c0_42] : memref<8x2x128xf32, #tpu.memory_space<vmem>>, vector<1x2x128xf32>
    %120 = vector.shape_cast %119 : vector<1x2x128xf32> to vector<2x128xf32>
    %121 = arith.truncf %113 : vector<2x32xf32> to vector<2x32xbf16>
    %cst_43 = arith.constant dense<0.000000e+00> : vector<2x128xf32>
    %122 = tpu.matmul %121, %7, %cst_43 {dimension_numbers = #tpu.dot_dimension_numbers<[1], [0], [0], [1], [0, 0, 1, 1], [], []>} : vector<2x32xbf16>, vector<32x128xbf16>, vector<2x128xf32> -> vector<2x128xf32>
    %123 = arith.addf %120, %122 : vector<2x128xf32>
    %124 = arith.addf %123, %123 : vector<2x128xf32>
    %125 = arith.select %5, %124, %123 : vector<2x128xi1>, vector<2x128xf32>
    %126 = arith.negf %125 : vector<2x128xf32>
    %127 = math.exp %126 : vector<2x128xf32>
    %cst_44 = arith.constant 1.000000e+00 : f32
    %128 = vector.broadcast %cst_44 : f32 to vector<2x128xf32>
    %129 = arith.addf %128, %127 : vector<2x128xf32>
    %130 = arith.divf %128, %129 : vector<2x128xf32>
    %131 = arith.addf %130, %130 : vector<2x128xf32>
    %cst_45 = arith.constant 1.000000e+00 : f32
    %132 = vector.broadcast %cst_45 : f32 to vector<2x128xf32>
    %133 = arith.subf %131, %132 : vector<2x128xf32>
    %134 = arith.select %5, %133, %130 : vector<2x128xi1>, vector<2x128xf32>
    %135 = vector.extract_strided_slice %134 {offsets = [0, 0], sizes = [2, 32], strides = [1, 1]} : vector<2x128xf32> to vector<2x32xf32>
    %136 = vector.extract_strided_slice %134 {offsets = [0, 32], sizes = [2, 32], strides = [1, 1]} : vector<2x128xf32> to vector<2x32xf32>
    %137 = vector.extract_strided_slice %134 {offsets = [0, 64], sizes = [2, 32], strides = [1, 1]} : vector<2x128xf32> to vector<2x32xf32>
    %138 = vector.extract_strided_slice %134 {offsets = [0, 96], sizes = [2, 32], strides = [1, 1]} : vector<2x128xf32> to vector<2x32xf32>
    %139 = arith.mulf %136, %111 : vector<2x32xf32>
    %140 = arith.mulf %135, %137 : vector<2x32xf32>
    %141 = arith.addf %139, %140 : vector<2x32xf32>
    %142 = math.tanh %141 : vector<2x32xf32>
    %143 = arith.mulf %138, %142 : vector<2x32xf32>
    %144 = arith.index_cast %c2_i32 : i32 to index
    %c0_46 = arith.constant 0 : index
    %c0_47 = arith.constant 0 : index
    %145 = vector.load %arg20[%144, %c0_46, %c0_47] : memref<8x2x32xf32, #tpu.memory_space<vmem>>, vector<1x2x32xf32>
    %146 = vector.shape_cast %145 : vector<1x2x32xf32> to vector<2x32xf32>
    %147 = vector.shape_cast %143 : vector<2x32xf32> to vector<1x2x32xf32>
    tpu.vector_store %arg20[%144, %c0_46, %c0_47], %147 {strides = array<i32>} : memref<8x2x32xf32, #tpu.memory_space<vmem>>, vector<1x2x32xf32>,
    %c3_i32 = arith.constant 3 : i32
    %148 = arith.index_cast %c3_i32 : i32 to index
    %c0_48 = arith.constant 0 : index
    %c0_49 = arith.constant 0 : index
    %149 = vector.load %arg19[%148, %c0_48, %c0_49] : memref<8x2x128xf32, #tpu.memory_space<vmem>>, vector<1x2x128xf32>
    %150 = vector.shape_cast %149 : vector<1x2x128xf32> to vector<2x128xf32>
    %151 = arith.truncf %143 : vector<2x32xf32> to vector<2x32xbf16>
    %cst_50 = arith.constant dense<0.000000e+00> : vector<2x128xf32>
    %152 = tpu.matmul %151, %7, %cst_50 {dimension_numbers = #tpu.dot_dimension_numbers<[1], [0], [0], [1], [0, 0, 1, 1], [], []>} : vector<2x32xbf16>, vector<32x128xbf16>, vector<2x128xf32> -> vector<2x128xf32>
    %153 = arith.addf %150, %152 : vector<2x128xf32>
    %154 = arith.addf %153, %153 : vector<2x128xf32>
    %155 = arith.select %5, %154, %153 : vector<2x128xi1>, vector<2x128xf32>
    %156 = arith.negf %155 : vector<2x128xf32>
    %157 = math.exp %156 : vector<2x128xf32>
    %cst_51 = arith.constant 1.000000e+00 : f32
    %158 = vector.broadcast %cst_51 : f32 to vector<2x128xf32>
    %159 = arith.addf %158, %157 : vector<2x128xf32>
    %160 = arith.divf %158, %159 : vector<2x128xf32>
    %161 = arith.addf %160, %160 : vector<2x128xf32>
    %cst_52 = arith.constant 1.000000e+00 : f32
    %162 = vector.broadcast %cst_52 : f32 to vector<2x128xf32>
    %163 = arith.subf %161, %162 : vector<2x128xf32>
    %164 = arith.select %5, %163, %160 : vector<2x128xi1>, vector<2x128xf32>
    %165 = vector.extract_strided_slice %164 {offsets = [0, 0], sizes = [2, 32], strides = [1, 1]} : vector<2x128xf32> to vector<2x32xf32>
    %166 = vector.extract_strided_slice %164 {offsets = [0, 32], sizes = [2, 32], strides = [1, 1]} : vector<2x128xf32> to vector<2x32xf32>
    %167 = vector.extract_strided_slice %164 {offsets = [0, 64], sizes = [2, 32], strides = [1, 1]} : vector<2x128xf32> to vector<2x32xf32>
    %168 = vector.extract_strided_slice %164 {offsets = [0, 96], sizes = [2, 32], strides = [1, 1]} : vector<2x128xf32> to vector<2x32xf32>
    %169 = arith.mulf %166, %141 : vector<2x32xf32>
    %170 = arith.mulf %165, %167 : vector<2x32xf32>
    %171 = arith.addf %169, %170 : vector<2x32xf32>
    %172 = math.tanh %171 : vector<2x32xf32>
    %173 = arith.mulf %168, %172 : vector<2x32xf32>
    %174 = arith.index_cast %c3_i32 : i32 to index
    %c0_53 = arith.constant 0 : index
    %c0_54 = arith.constant 0 : index
    %175 = vector.load %arg20[%174, %c0_53, %c0_54] : memref<8x2x32xf32, #tpu.memory_space<vmem>>, vector<1x2x32xf32>
    %176 = vector.shape_cast %175 : vector<1x2x32xf32> to vector<2x32xf32>
    %177 = vector.shape_cast %173 : vector<2x32xf32> to vector<1x2x32xf32>
    tpu.vector_store %arg20[%174, %c0_53, %c0_54], %177 {strides = array<i32>} : memref<8x2x32xf32, #tpu.memory_space<vmem>>, vector<1x2x32xf32>,
    %c4_i32 = arith.constant 4 : i32
    %178 = arith.index_cast %c4_i32 : i32 to index
    %c0_55 = arith.constant 0 : index
    %c0_56 = arith.constant 0 : index
    %179 = vector.load %arg19[%178, %c0_55, %c0_56] : memref<8x2x128xf32, #tpu.memory_space<vmem>>, vector<1x2x128xf32>
    %180 = vector.shape_cast %179 : vector<1x2x128xf32> to vector<2x128xf32>
    %181 = arith.truncf %173 : vector<2x32xf32> to vector<2x32xbf16>
    %cst_57 = arith.constant dense<0.000000e+00> : vector<2x128xf32>
    %182 = tpu.matmul %181, %7, %cst_57 {dimension_numbers = #tpu.dot_dimension_numbers<[1], [0], [0], [1], [0, 0, 1, 1], [], []>} : vector<2x32xbf16>, vector<32x128xbf16>, vector<2x128xf32> -> vector<2x128xf32>
    %183 = arith.addf %180, %182 : vector<2x128xf32>
    %184 = arith.addf %183, %183 : vector<2x128xf32>
    %185 = arith.select %5, %184, %183 : vector<2x128xi1>, vector<2x128xf32>
    %186 = arith.negf %185 : vector<2x128xf32>
    %187 = math.exp %186 : vector<2x128xf32>
    %cst_58 = arith.constant 1.000000e+00 : f32
    %188 = vector.broadcast %cst_58 : f32 to vector<2x128xf32>
    %189 = arith.addf %188, %187 : vector<2x128xf32>
    %190 = arith.divf %188, %189 : vector<2x128xf32>
    %191 = arith.addf %190, %190 : vector<2x128xf32>
    %cst_59 = arith.constant 1.000000e+00 : f32
    %192 = vector.broadcast %cst_59 : f32 to vector<2x128xf32>
    %193 = arith.subf %191, %192 : vector<2x128xf32>
    %194 = arith.select %5, %193, %190 : vector<2x128xi1>, vector<2x128xf32>
    %195 = vector.extract_strided_slice %194 {offsets = [0, 0], sizes = [2, 32], strides = [1, 1]} : vector<2x128xf32> to vector<2x32xf32>
    %196 = vector.extract_strided_slice %194 {offsets = [0, 32], sizes = [2, 32], strides = [1, 1]} : vector<2x128xf32> to vector<2x32xf32>
    %197 = vector.extract_strided_slice %194 {offsets = [0, 64], sizes = [2, 32], strides = [1, 1]} : vector<2x128xf32> to vector<2x32xf32>
    %198 = vector.extract_strided_slice %194 {offsets = [0, 96], sizes = [2, 32], strides = [1, 1]} : vector<2x128xf32> to vector<2x32xf32>
    %199 = arith.mulf %196, %171 : vector<2x32xf32>
    %200 = arith.mulf %195, %197 : vector<2x32xf32>
    %201 = arith.addf %199, %200 : vector<2x32xf32>
    %202 = math.tanh %201 : vector<2x32xf32>
    %203 = arith.mulf %198, %202 : vector<2x32xf32>
    %204 = arith.index_cast %c4_i32 : i32 to index
    %c0_60 = arith.constant 0 : index
    %c0_61 = arith.constant 0 : index
    %205 = vector.load %arg20[%204, %c0_60, %c0_61] : memref<8x2x32xf32, #tpu.memory_space<vmem>>, vector<1x2x32xf32>
    %206 = vector.shape_cast %205 : vector<1x2x32xf32> to vector<2x32xf32>
    %207 = vector.shape_cast %203 : vector<2x32xf32> to vector<1x2x32xf32>
    tpu.vector_store %arg20[%204, %c0_60, %c0_61], %207 {strides = array<i32>} : memref<8x2x32xf32, #tpu.memory_space<vmem>>, vector<1x2x32xf32>,
    %c5_i32 = arith.constant 5 : i32
    %208 = arith.index_cast %c5_i32 : i32 to index
    %c0_62 = arith.constant 0 : index
    %c0_63 = arith.constant 0 : index
    %209 = vector.load %arg19[%208, %c0_62, %c0_63] : memref<8x2x128xf32, #tpu.memory_space<vmem>>, vector<1x2x128xf32>
    %210 = vector.shape_cast %209 : vector<1x2x128xf32> to vector<2x128xf32>
    %211 = arith.truncf %203 : vector<2x32xf32> to vector<2x32xbf16>
    %cst_64 = arith.constant dense<0.000000e+00> : vector<2x128xf32>
    %212 = tpu.matmul %211, %7, %cst_64 {dimension_numbers = #tpu.dot_dimension_numbers<[1], [0], [0], [1], [0, 0, 1, 1], [], []>} : vector<2x32xbf16>, vector<32x128xbf16>, vector<2x128xf32> -> vector<2x128xf32>
    %213 = arith.addf %210, %212 : vector<2x128xf32>
    %214 = arith.addf %213, %213 : vector<2x128xf32>
    %215 = arith.select %5, %214, %213 : vector<2x128xi1>, vector<2x128xf32>
    %216 = arith.negf %215 : vector<2x128xf32>
    %217 = math.exp %216 : vector<2x128xf32>
    %cst_65 = arith.constant 1.000000e+00 : f32
    %218 = vector.broadcast %cst_65 : f32 to vector<2x128xf32>
    %219 = arith.addf %218, %217 : vector<2x128xf32>
    %220 = arith.divf %218, %219 : vector<2x128xf32>
    %221 = arith.addf %220, %220 : vector<2x128xf32>
    %cst_66 = arith.constant 1.000000e+00 : f32
    %222 = vector.broadcast %cst_66 : f32 to vector<2x128xf32>
    %223 = arith.subf %221, %222 : vector<2x128xf32>
    %224 = arith.select %5, %223, %220 : vector<2x128xi1>, vector<2x128xf32>
    %225 = vector.extract_strided_slice %224 {offsets = [0, 0], sizes = [2, 32], strides = [1, 1]} : vector<2x128xf32> to vector<2x32xf32>
    %226 = vector.extract_strided_slice %224 {offsets = [0, 32], sizes = [2, 32], strides = [1, 1]} : vector<2x128xf32> to vector<2x32xf32>
    %227 = vector.extract_strided_slice %224 {offsets = [0, 64], sizes = [2, 32], strides = [1, 1]} : vector<2x128xf32> to vector<2x32xf32>
    %228 = vector.extract_strided_slice %224 {offsets = [0, 96], sizes = [2, 32], strides = [1, 1]} : vector<2x128xf32> to vector<2x32xf32>
    %229 = arith.mulf %226, %201 : vector<2x32xf32>
    %230 = arith.mulf %225, %227 : vector<2x32xf32>
    %231 = arith.addf %229, %230 : vector<2x32xf32>
    %232 = math.tanh %231 : vector<2x32xf32>
    %233 = arith.mulf %228, %232 : vector<2x32xf32>
    %234 = arith.index_cast %c5_i32 : i32 to index
    %c0_67 = arith.constant 0 : index
    %c0_68 = arith.constant 0 : index
    %235 = vector.load %arg20[%234, %c0_67, %c0_68] : memref<8x2x32xf32, #tpu.memory_space<vmem>>, vector<1x2x32xf32>
    %236 = vector.shape_cast %235 : vector<1x2x32xf32> to vector<2x32xf32>
    %237 = vector.shape_cast %233 : vector<2x32xf32> to vector<1x2x32xf32>
    tpu.vector_store %arg20[%234, %c0_67, %c0_68], %237 {strides = array<i32>} : memref<8x2x32xf32, #tpu.memory_space<vmem>>, vector<1x2x32xf32>,
    %c6_i32 = arith.constant 6 : i32
    %238 = arith.index_cast %c6_i32 : i32 to index
    %c0_69 = arith.constant 0 : index
    %c0_70 = arith.constant 0 : index
    %239 = vector.load %arg19[%238, %c0_69, %c0_70] : memref<8x2x128xf32, #tpu.memory_space<vmem>>, vector<1x2x128xf32>
    %240 = vector.shape_cast %239 : vector<1x2x128xf32> to vector<2x128xf32>
    %241 = arith.truncf %233 : vector<2x32xf32> to vector<2x32xbf16>
    %cst_71 = arith.constant dense<0.000000e+00> : vector<2x128xf32>
    %242 = tpu.matmul %241, %7, %cst_71 {dimension_numbers = #tpu.dot_dimension_numbers<[1], [0], [0], [1], [0, 0, 1, 1], [], []>} : vector<2x32xbf16>, vector<32x128xbf16>, vector<2x128xf32> -> vector<2x128xf32>
    %243 = arith.addf %240, %242 : vector<2x128xf32>
    %244 = arith.addf %243, %243 : vector<2x128xf32>
    %245 = arith.select %5, %244, %243 : vector<2x128xi1>, vector<2x128xf32>
    %246 = arith.negf %245 : vector<2x128xf32>
    %247 = math.exp %246 : vector<2x128xf32>
    %cst_72 = arith.constant 1.000000e+00 : f32
    %248 = vector.broadcast %cst_72 : f32 to vector<2x128xf32>
    %249 = arith.addf %248, %247 : vector<2x128xf32>
    %250 = arith.divf %248, %249 : vector<2x128xf32>
    %251 = arith.addf %250, %250 : vector<2x128xf32>
    %cst_73 = arith.constant 1.000000e+00 : f32
    %252 = vector.broadcast %cst_73 : f32 to vector<2x128xf32>
    %253 = arith.subf %251, %252 : vector<2x128xf32>
    %254 = arith.select %5, %253, %250 : vector<2x128xi1>, vector<2x128xf32>
    %255 = vector.extract_strided_slice %254 {offsets = [0, 0], sizes = [2, 32], strides = [1, 1]} : vector<2x128xf32> to vector<2x32xf32>
    %256 = vector.extract_strided_slice %254 {offsets = [0, 32], sizes = [2, 32], strides = [1, 1]} : vector<2x128xf32> to vector<2x32xf32>
    %257 = vector.extract_strided_slice %254 {offsets = [0, 64], sizes = [2, 32], strides = [1, 1]} : vector<2x128xf32> to vector<2x32xf32>
    %258 = vector.extract_strided_slice %254 {offsets = [0, 96], sizes = [2, 32], strides = [1, 1]} : vector<2x128xf32> to vector<2x32xf32>
    %259 = arith.mulf %256, %231 : vector<2x32xf32>
    %260 = arith.mulf %255, %257 : vector<2x32xf32>
    %261 = arith.addf %259, %260 : vector<2x32xf32>
    %262 = math.tanh %261 : vector<2x32xf32>
    %263 = arith.mulf %258, %262 : vector<2x32xf32>
    %264 = arith.index_cast %c6_i32 : i32 to index
    %c0_74 = arith.constant 0 : index
    %c0_75 = arith.constant 0 : index
    %265 = vector.load %arg20[%264, %c0_74, %c0_75] : memref<8x2x32xf32, #tpu.memory_space<vmem>>, vector<1x2x32xf32>
    %266 = vector.shape_cast %265 : vector<1x2x32xf32> to vector<2x32xf32>
    %267 = vector.shape_cast %263 : vector<2x32xf32> to vector<1x2x32xf32>
    tpu.vector_store %arg20[%264, %c0_74, %c0_75], %267 {strides = array<i32>} : memref<8x2x32xf32, #tpu.memory_space<vmem>>, vector<1x2x32xf32>,
    %c7_i32 = arith.constant 7 : i32
    %268 = arith.index_cast %c7_i32 : i32 to index
    %c0_76 = arith.constant 0 : index
    %c0_77 = arith.constant 0 : index
    %269 = vector.load %arg19[%268, %c0_76, %c0_77] : memref<8x2x128xf32, #tpu.memory_space<vmem>>, vector<1x2x128xf32>
    %270 = vector.shape_cast %269 : vector<1x2x128xf32> to vector<2x128xf32>
    %271 = arith.truncf %263 : vector<2x32xf32> to vector<2x32xbf16>
    %cst_78 = arith.constant dense<0.000000e+00> : vector<2x128xf32>
    %272 = tpu.matmul %271, %7, %cst_78 {dimension_numbers = #tpu.dot_dimension_numbers<[1], [0], [0], [1], [0, 0, 1, 1], [], []>} : vector<2x32xbf16>, vector<32x128xbf16>, vector<2x128xf32> -> vector<2x128xf32>
    %273 = arith.addf %270, %272 : vector<2x128xf32>
    %274 = arith.addf %273, %273 : vector<2x128xf32>
    %275 = arith.select %5, %274, %273 : vector<2x128xi1>, vector<2x128xf32>
    %276 = arith.negf %275 : vector<2x128xf32>
    %277 = math.exp %276 : vector<2x128xf32>
    %cst_79 = arith.constant 1.000000e+00 : f32
    %278 = vector.broadcast %cst_79 : f32 to vector<2x128xf32>
    %279 = arith.addf %278, %277 : vector<2x128xf32>
    %280 = arith.divf %278, %279 : vector<2x128xf32>
    %281 = arith.addf %280, %280 : vector<2x128xf32>
    %cst_80 = arith.constant 1.000000e+00 : f32
    %282 = vector.broadcast %cst_80 : f32 to vector<2x128xf32>
    %283 = arith.subf %281, %282 : vector<2x128xf32>
    %284 = arith.select %5, %283, %280 : vector<2x128xi1>, vector<2x128xf32>
    %285 = vector.extract_strided_slice %284 {offsets = [0, 0], sizes = [2, 32], strides = [1, 1]} : vector<2x128xf32> to vector<2x32xf32>
    %286 = vector.extract_strided_slice %284 {offsets = [0, 32], sizes = [2, 32], strides = [1, 1]} : vector<2x128xf32> to vector<2x32xf32>
    %287 = vector.extract_strided_slice %284 {offsets = [0, 64], sizes = [2, 32], strides = [1, 1]} : vector<2x128xf32> to vector<2x32xf32>
    %288 = vector.extract_strided_slice %284 {offsets = [0, 96], sizes = [2, 32], strides = [1, 1]} : vector<2x128xf32> to vector<2x32xf32>
    %289 = arith.mulf %286, %261 : vector<2x32xf32>
    %290 = arith.mulf %285, %287 : vector<2x32xf32>
    %291 = arith.addf %289, %290 : vector<2x32xf32>
    %292 = math.tanh %291 : vector<2x32xf32>
    %293 = arith.mulf %288, %292 : vector<2x32xf32>
    %294 = arith.index_cast %c7_i32 : i32 to index
    %c0_81 = arith.constant 0 : index
    %c0_82 = arith.constant 0 : index
    %295 = vector.load %arg20[%294, %c0_81, %c0_82] : memref<8x2x32xf32, #tpu.memory_space<vmem>>, vector<1x2x32xf32>
    %296 = vector.shape_cast %295 : vector<1x2x32xf32> to vector<2x32xf32>
    %297 = vector.shape_cast %293 : vector<2x32xf32> to vector<1x2x32xf32>
    tpu.vector_store %arg20[%294, %c0_81, %c0_82], %297 {strides = array<i32>} : memref<8x2x32xf32, #tpu.memory_space<vmem>>, vector<1x2x32xf32>,
    %c8_i32 = arith.constant 8 : i32
    %c0_83 = arith.constant 0 : index
    %c0_84 = arith.constant 0 : index
    %298 = vector.load %arg5[%c0_83, %c0_84] : memref<32x128xbf16, #tpu.memory_space<vmem>>, vector<32x128xbf16>
    %c0_85 = arith.constant 0 : index
    %c0_86 = arith.constant 0 : index
    %299 = vector.load %arg6[%c0_85, %c0_86] : memref<32x128xbf16, #tpu.memory_space<vmem>>, vector<32x128xbf16>
    %c0_87 = arith.constant 0 : index
    %c0_88 = arith.constant 0 : index
    %300 = vector.load %arg7[%c0_87, %c0_88] : memref<1x128xf32, #tpu.memory_space<vmem>>, vector<1x128xf32>
    %c0_89 = arith.constant 0 : index
    %c0_90 = arith.constant 0 : index
    %c0_91 = arith.constant 0 : index
    %301 = vector.load %arg20[%c0_89, %c0_90, %c0_91] : memref<8x2x32xf32, #tpu.memory_space<vmem>>, vector<8x2x32xf32>
    %302 = vector.shape_cast %301 : vector<8x2x32xf32> to vector<16x32xf32>
    %303 = arith.truncf %302 : vector<16x32xf32> to vector<16x32xbf16>
    %cst_92 = arith.constant dense<0.000000e+00> : vector<16x128xf32>
    %304 = tpu.matmul %303, %298, %cst_92 {dimension_numbers = #tpu.dot_dimension_numbers<[1], [0], [0], [1], [0, 0, 1, 1], [], []>} : vector<16x32xbf16>, vector<32x128xbf16>, vector<16x128xf32> -> vector<16x128xf32>
    %305 = vector.broadcast %300 : vector<1x128xf32> to vector<16x128xf32>
    %306 = arith.addf %304, %305 : vector<16x128xf32>
    %307 = vector.shape_cast %306 : vector<16x128xf32> to vector<8x2x128xf32>
    %c0_93 = arith.constant 0 : index
    %c0_94 = arith.constant 0 : index
    %c0_95 = arith.constant 0 : index
    %308 = vector.load %arg19[%c0_93, %c0_94, %c0_95] : memref<8x2x128xf32, #tpu.memory_space<vmem>>, vector<8x2x128xf32>
    tpu.vector_store %arg19[%c0_93, %c0_94, %c0_95], %307 {strides = array<i32>} : memref<8x2x128xf32, #tpu.memory_space<vmem>>, vector<8x2x128xf32>,
    %cst_96 = arith.constant 0.000000e+00 : f32
    %309 = vector.broadcast %cst_96 : f32 to vector<2x32xf32>
    %cst_97 = arith.constant 0.000000e+00 : f32
    %310 = vector.broadcast %cst_97 : f32 to vector<2x32xf32>
    %c0_i32_98 = arith.constant 0 : i32
    %311 = arith.index_cast %c0_i32_98 : i32 to index
    %c0_99 = arith.constant 0 : index
    %c0_100 = arith.constant 0 : index
    %312 = vector.load %arg19[%311, %c0_99, %c0_100] : memref<8x2x128xf32, #tpu.memory_space<vmem>>, vector<1x2x128xf32>
    %313 = vector.shape_cast %312 : vector<1x2x128xf32> to vector<2x128xf32>
    %314 = arith.truncf %309 : vector<2x32xf32> to vector<2x32xbf16>
    %cst_101 = arith.constant dense<0.000000e+00> : vector<2x128xf32>
    %315 = tpu.matmul %314, %299, %cst_101 {dimension_numbers = #tpu.dot_dimension_numbers<[1], [0], [0], [1], [0, 0, 1, 1], [], []>} : vector<2x32xbf16>, vector<32x128xbf16>, vector<2x128xf32> -> vector<2x128xf32>
    %316 = arith.addf %313, %315 : vector<2x128xf32>
    %317 = arith.addf %316, %316 : vector<2x128xf32>
    %318 = arith.select %5, %317, %316 : vector<2x128xi1>, vector<2x128xf32>
    %319 = arith.negf %318 : vector<2x128xf32>
    %320 = math.exp %319 : vector<2x128xf32>
    %cst_102 = arith.constant 1.000000e+00 : f32
    %321 = vector.broadcast %cst_102 : f32 to vector<2x128xf32>
    %322 = arith.addf %321, %320 : vector<2x128xf32>
    %323 = arith.divf %321, %322 : vector<2x128xf32>
    %324 = arith.addf %323, %323 : vector<2x128xf32>
    %cst_103 = arith.constant 1.000000e+00 : f32
    %325 = vector.broadcast %cst_103 : f32 to vector<2x128xf32>
    %326 = arith.subf %324, %325 : vector<2x128xf32>
    %327 = arith.select %5, %326, %323 : vector<2x128xi1>, vector<2x128xf32>
    %328 = vector.extract_strided_slice %327 {offsets = [0, 0], sizes = [2, 32], strides = [1, 1]} : vector<2x128xf32> to vector<2x32xf32>
    %329 = vector.extract_strided_slice %327 {offsets = [0, 32], sizes = [2, 32], strides = [1, 1]} : vector<2x128xf32> to vector<2x32xf32>
    %330 = vector.extract_strided_slice %327 {offsets = [0, 64], sizes = [2, 32], strides = [1, 1]} : vector<2x128xf32> to vector<2x32xf32>
    %331 = vector.extract_strided_slice %327 {offsets = [0, 96], sizes = [2, 32], strides = [1, 1]} : vector<2x128xf32> to vector<2x32xf32>
    %332 = arith.mulf %329, %310 : vector<2x32xf32>
    %333 = arith.mulf %328, %330 : vector<2x32xf32>
    %334 = arith.addf %332, %333 : vector<2x32xf32>
    %335 = math.tanh %334 : vector<2x32xf32>
    %336 = arith.mulf %331, %335 : vector<2x32xf32>
    %337 = arith.index_cast %c0_i32_98 : i32 to index
    %c0_104 = arith.constant 0 : index
    %c0_105 = arith.constant 0 : index
    %338 = vector.load %arg20[%337, %c0_104, %c0_105] : memref<8x2x32xf32, #tpu.memory_space<vmem>>, vector<1x2x32xf32>
    %339 = vector.shape_cast %338 : vector<1x2x32xf32> to vector<2x32xf32>
    %340 = vector.shape_cast %336 : vector<2x32xf32> to vector<1x2x32xf32>
    tpu.vector_store %arg20[%337, %c0_104, %c0_105], %340 {strides = array<i32>} : memref<8x2x32xf32, #tpu.memory_space<vmem>>, vector<1x2x32xf32>,
    %c1_i32_106 = arith.constant 1 : i32
    %341 = arith.index_cast %c1_i32_106 : i32 to index
    %c0_107 = arith.constant 0 : index
    %c0_108 = arith.constant 0 : index
    %342 = vector.load %arg19[%341, %c0_107, %c0_108] : memref<8x2x128xf32, #tpu.memory_space<vmem>>, vector<1x2x128xf32>
    %343 = vector.shape_cast %342 : vector<1x2x128xf32> to vector<2x128xf32>
    %344 = arith.truncf %336 : vector<2x32xf32> to vector<2x32xbf16>
    %cst_109 = arith.constant dense<0.000000e+00> : vector<2x128xf32>
    %345 = tpu.matmul %344, %299, %cst_109 {dimension_numbers = #tpu.dot_dimension_numbers<[1], [0], [0], [1], [0, 0, 1, 1], [], []>} : vector<2x32xbf16>, vector<32x128xbf16>, vector<2x128xf32> -> vector<2x128xf32>
    %346 = arith.addf %343, %345 : vector<2x128xf32>
    %347 = arith.addf %346, %346 : vector<2x128xf32>
    %348 = arith.select %5, %347, %346 : vector<2x128xi1>, vector<2x128xf32>
    %349 = arith.negf %348 : vector<2x128xf32>
    %350 = math.exp %349 : vector<2x128xf32>
    %cst_110 = arith.constant 1.000000e+00 : f32
    %351 = vector.broadcast %cst_110 : f32 to vector<2x128xf32>
    %352 = arith.addf %351, %350 : vector<2x128xf32>
    %353 = arith.divf %351, %352 : vector<2x128xf32>
    %354 = arith.addf %353, %353 : vector<2x128xf32>
    %cst_111 = arith.constant 1.000000e+00 : f32
    %355 = vector.broadcast %cst_111 : f32 to vector<2x128xf32>
    %356 = arith.subf %354, %355 : vector<2x128xf32>
    %357 = arith.select %5, %356, %353 : vector<2x128xi1>, vector<2x128xf32>
    %358 = vector.extract_strided_slice %357 {offsets = [0, 0], sizes = [2, 32], strides = [1, 1]} : vector<2x128xf32> to vector<2x32xf32>
    %359 = vector.extract_strided_slice %357 {offsets = [0, 32], sizes = [2, 32], strides = [1, 1]} : vector<2x128xf32> to vector<2x32xf32>
    %360 = vector.extract_strided_slice %357 {offsets = [0, 64], sizes = [2, 32], strides = [1, 1]} : vector<2x128xf32> to vector<2x32xf32>
    %361 = vector.extract_strided_slice %357 {offsets = [0, 96], sizes = [2, 32], strides = [1, 1]} : vector<2x128xf32> to vector<2x32xf32>
    %362 = arith.mulf %359, %334 : vector<2x32xf32>
    %363 = arith.mulf %358, %360 : vector<2x32xf32>
    %364 = arith.addf %362, %363 : vector<2x32xf32>
    %365 = math.tanh %364 : vector<2x32xf32>
    %366 = arith.mulf %361, %365 : vector<2x32xf32>
    %367 = arith.index_cast %c1_i32_106 : i32 to index
    %c0_112 = arith.constant 0 : index
    %c0_113 = arith.constant 0 : index
    %368 = vector.load %arg20[%367, %c0_112, %c0_113] : memref<8x2x32xf32, #tpu.memory_space<vmem>>, vector<1x2x32xf32>
    %369 = vector.shape_cast %368 : vector<1x2x32xf32> to vector<2x32xf32>
    %370 = vector.shape_cast %366 : vector<2x32xf32> to vector<1x2x32xf32>
    tpu.vector_store %arg20[%367, %c0_112, %c0_113], %370 {strides = array<i32>} : memref<8x2x32xf32, #tpu.memory_space<vmem>>, vector<1x2x32xf32>,
    %c2_i32_114 = arith.constant 2 : i32
    %371 = arith.index_cast %c2_i32_114 : i32 to index
    %c0_115 = arith.constant 0 : index
    %c0_116 = arith.constant 0 : index
    %372 = vector.load %arg19[%371, %c0_115, %c0_116] : memref<8x2x128xf32, #tpu.memory_space<vmem>>, vector<1x2x128xf32>
    %373 = vector.shape_cast %372 : vector<1x2x128xf32> to vector<2x128xf32>
    %374 = arith.truncf %366 : vector<2x32xf32> to vector<2x32xbf16>
    %cst_117 = arith.constant dense<0.000000e+00> : vector<2x128xf32>
    %375 = tpu.matmul %374, %299, %cst_117 {dimension_numbers = #tpu.dot_dimension_numbers<[1], [0], [0], [1], [0, 0, 1, 1], [], []>} : vector<2x32xbf16>, vector<32x128xbf16>, vector<2x128xf32> -> vector<2x128xf32>
    %376 = arith.addf %373, %375 : vector<2x128xf32>
    %377 = arith.addf %376, %376 : vector<2x128xf32>
    %378 = arith.select %5, %377, %376 : vector<2x128xi1>, vector<2x128xf32>
    %379 = arith.negf %378 : vector<2x128xf32>
    %380 = math.exp %379 : vector<2x128xf32>
    %cst_118 = arith.constant 1.000000e+00 : f32
    %381 = vector.broadcast %cst_118 : f32 to vector<2x128xf32>
    %382 = arith.addf %381, %380 : vector<2x128xf32>
    %383 = arith.divf %381, %382 : vector<2x128xf32>
    %384 = arith.addf %383, %383 : vector<2x128xf32>
    %cst_119 = arith.constant 1.000000e+00 : f32
    %385 = vector.broadcast %cst_119 : f32 to vector<2x128xf32>
    %386 = arith.subf %384, %385 : vector<2x128xf32>
    %387 = arith.select %5, %386, %383 : vector<2x128xi1>, vector<2x128xf32>
    %388 = vector.extract_strided_slice %387 {offsets = [0, 0], sizes = [2, 32], strides = [1, 1]} : vector<2x128xf32> to vector<2x32xf32>
    %389 = vector.extract_strided_slice %387 {offsets = [0, 32], sizes = [2, 32], strides = [1, 1]} : vector<2x128xf32> to vector<2x32xf32>
    %390 = vector.extract_strided_slice %387 {offsets = [0, 64], sizes = [2, 32], strides = [1, 1]} : vector<2x128xf32> to vector<2x32xf32>
    %391 = vector.extract_strided_slice %387 {offsets = [0, 96], sizes = [2, 32], strides = [1, 1]} : vector<2x128xf32> to vector<2x32xf32>
    %392 = arith.mulf %389, %364 : vector<2x32xf32>
    %393 = arith.mulf %388, %390 : vector<2x32xf32>
    %394 = arith.addf %392, %393 : vector<2x32xf32>
    %395 = math.tanh %394 : vector<2x32xf32>
    %396 = arith.mulf %391, %395 : vector<2x32xf32>
    %397 = arith.index_cast %c2_i32_114 : i32 to index
    %c0_120 = arith.constant 0 : index
    %c0_121 = arith.constant 0 : index
    %398 = vector.load %arg20[%397, %c0_120, %c0_121] : memref<8x2x32xf32, #tpu.memory_space<vmem>>, vector<1x2x32xf32>
    %399 = vector.shape_cast %398 : vector<1x2x32xf32> to vector<2x32xf32>
    %400 = vector.shape_cast %396 : vector<2x32xf32> to vector<1x2x32xf32>
    tpu.vector_store %arg20[%397, %c0_120, %c0_121], %400 {strides = array<i32>} : memref<8x2x32xf32, #tpu.memory_space<vmem>>, vector<1x2x32xf32>,
    %c3_i32_122 = arith.constant 3 : i32
    %401 = arith.index_cast %c3_i32_122 : i32 to index
    %c0_123 = arith.constant 0 : index
    %c0_124 = arith.constant 0 : index
    %402 = vector.load %arg19[%401, %c0_123, %c0_124] : memref<8x2x128xf32, #tpu.memory_space<vmem>>, vector<1x2x128xf32>
    %403 = vector.shape_cast %402 : vector<1x2x128xf32> to vector<2x128xf32>
    %404 = arith.truncf %396 : vector<2x32xf32> to vector<2x32xbf16>
    %cst_125 = arith.constant dense<0.000000e+00> : vector<2x128xf32>
    %405 = tpu.matmul %404, %299, %cst_125 {dimension_numbers = #tpu.dot_dimension_numbers<[1], [0], [0], [1], [0, 0, 1, 1], [], []>} : vector<2x32xbf16>, vector<32x128xbf16>, vector<2x128xf32> -> vector<2x128xf32>
    %406 = arith.addf %403, %405 : vector<2x128xf32>
    %407 = arith.addf %406, %406 : vector<2x128xf32>
    %408 = arith.select %5, %407, %406 : vector<2x128xi1>, vector<2x128xf32>
    %409 = arith.negf %408 : vector<2x128xf32>
    %410 = math.exp %409 : vector<2x128xf32>
    %cst_126 = arith.constant 1.000000e+00 : f32
    %411 = vector.broadcast %cst_126 : f32 to vector<2x128xf32>
    %412 = arith.addf %411, %410 : vector<2x128xf32>
    %413 = arith.divf %411, %412 : vector<2x128xf32>
    %414 = arith.addf %413, %413 : vector<2x128xf32>
    %cst_127 = arith.constant 1.000000e+00 : f32
    %415 = vector.broadcast %cst_127 : f32 to vector<2x128xf32>
    %416 = arith.subf %414, %415 : vector<2x128xf32>
    %417 = arith.select %5, %416, %413 : vector<2x128xi1>, vector<2x128xf32>
    %418 = vector.extract_strided_slice %417 {offsets = [0, 0], sizes = [2, 32], strides = [1, 1]} : vector<2x128xf32> to vector<2x32xf32>
    %419 = vector.extract_strided_slice %417 {offsets = [0, 32], sizes = [2, 32], strides = [1, 1]} : vector<2x128xf32> to vector<2x32xf32>
    %420 = vector.extract_strided_slice %417 {offsets = [0, 64], sizes = [2, 32], strides = [1, 1]} : vector<2x128xf32> to vector<2x32xf32>
    %421 = vector.extract_strided_slice %417 {offsets = [0, 96], sizes = [2, 32], strides = [1, 1]} : vector<2x128xf32> to vector<2x32xf32>
    %422 = arith.mulf %419, %394 : vector<2x32xf32>
    %423 = arith.mulf %418, %420 : vector<2x32xf32>
    %424 = arith.addf %422, %423 : vector<2x32xf32>
    %425 = math.tanh %424 : vector<2x32xf32>
    %426 = arith.mulf %421, %425 : vector<2x32xf32>
    %427 = arith.index_cast %c3_i32_122 : i32 to index
    %c0_128 = arith.constant 0 : index
    %c0_129 = arith.constant 0 : index
    %428 = vector.load %arg20[%427, %c0_128, %c0_129] : memref<8x2x32xf32, #tpu.memory_space<vmem>>, vector<1x2x32xf32>
    %429 = vector.shape_cast %428 : vector<1x2x32xf32> to vector<2x32xf32>
    %430 = vector.shape_cast %426 : vector<2x32xf32> to vector<1x2x32xf32>
    tpu.vector_store %arg20[%427, %c0_128, %c0_129], %430 {strides = array<i32>} : memref<8x2x32xf32, #tpu.memory_space<vmem>>, vector<1x2x32xf32>,
    %c4_i32_130 = arith.constant 4 : i32
    %431 = arith.index_cast %c4_i32_130 : i32 to index
    %c0_131 = arith.constant 0 : index
    %c0_132 = arith.constant 0 : index
    %432 = vector.load %arg19[%431, %c0_131, %c0_132] : memref<8x2x128xf32, #tpu.memory_space<vmem>>, vector<1x2x128xf32>
    %433 = vector.shape_cast %432 : vector<1x2x128xf32> to vector<2x128xf32>
    %434 = arith.truncf %426 : vector<2x32xf32> to vector<2x32xbf16>
    %cst_133 = arith.constant dense<0.000000e+00> : vector<2x128xf32>
    %435 = tpu.matmul %434, %299, %cst_133 {dimension_numbers = #tpu.dot_dimension_numbers<[1], [0], [0], [1], [0, 0, 1, 1], [], []>} : vector<2x32xbf16>, vector<32x128xbf16>, vector<2x128xf32> -> vector<2x128xf32>
    %436 = arith.addf %433, %435 : vector<2x128xf32>
    %437 = arith.addf %436, %436 : vector<2x128xf32>
    %438 = arith.select %5, %437, %436 : vector<2x128xi1>, vector<2x128xf32>
    %439 = arith.negf %438 : vector<2x128xf32>
    %440 = math.exp %439 : vector<2x128xf32>
    %cst_134 = arith.constant 1.000000e+00 : f32
    %441 = vector.broadcast %cst_134 : f32 to vector<2x128xf32>
    %442 = arith.addf %441, %440 : vector<2x128xf32>
    %443 = arith.divf %441, %442 : vector<2x128xf32>
    %444 = arith.addf %443, %443 : vector<2x128xf32>
    %cst_135 = arith.constant 1.000000e+00 : f32
    %445 = vector.broadcast %cst_135 : f32 to vector<2x128xf32>
    %446 = arith.subf %444, %445 : vector<2x128xf32>
    %447 = arith.select %5, %446, %443 : vector<2x128xi1>, vector<2x128xf32>
    %448 = vector.extract_strided_slice %447 {offsets = [0, 0], sizes = [2, 32], strides = [1, 1]} : vector<2x128xf32> to vector<2x32xf32>
    %449 = vector.extract_strided_slice %447 {offsets = [0, 32], sizes = [2, 32], strides = [1, 1]} : vector<2x128xf32> to vector<2x32xf32>
    %450 = vector.extract_strided_slice %447 {offsets = [0, 64], sizes = [2, 32], strides = [1, 1]} : vector<2x128xf32> to vector<2x32xf32>
    %451 = vector.extract_strided_slice %447 {offsets = [0, 96], sizes = [2, 32], strides = [1, 1]} : vector<2x128xf32> to vector<2x32xf32>
    %452 = arith.mulf %449, %424 : vector<2x32xf32>
    %453 = arith.mulf %448, %450 : vector<2x32xf32>
    %454 = arith.addf %452, %453 : vector<2x32xf32>
    %455 = math.tanh %454 : vector<2x32xf32>
    %456 = arith.mulf %451, %455 : vector<2x32xf32>
    %457 = arith.index_cast %c4_i32_130 : i32 to index
    %c0_136 = arith.constant 0 : index
    %c0_137 = arith.constant 0 : index
    %458 = vector.load %arg20[%457, %c0_136, %c0_137] : memref<8x2x32xf32, #tpu.memory_space<vmem>>, vector<1x2x32xf32>
    %459 = vector.shape_cast %458 : vector<1x2x32xf32> to vector<2x32xf32>
    %460 = vector.shape_cast %456 : vector<2x32xf32> to vector<1x2x32xf32>
    tpu.vector_store %arg20[%457, %c0_136, %c0_137], %460 {strides = array<i32>} : memref<8x2x32xf32, #tpu.memory_space<vmem>>, vector<1x2x32xf32>,
    %c5_i32_138 = arith.constant 5 : i32
    %461 = arith.index_cast %c5_i32_138 : i32 to index
    %c0_139 = arith.constant 0 : index
    %c0_140 = arith.constant 0 : index
    %462 = vector.load %arg19[%461, %c0_139, %c0_140] : memref<8x2x128xf32, #tpu.memory_space<vmem>>, vector<1x2x128xf32>
    %463 = vector.shape_cast %462 : vector<1x2x128xf32> to vector<2x128xf32>
    %464 = arith.truncf %456 : vector<2x32xf32> to vector<2x32xbf16>
    %cst_141 = arith.constant dense<0.000000e+00> : vector<2x128xf32>
    %465 = tpu.matmul %464, %299, %cst_141 {dimension_numbers = #tpu.dot_dimension_numbers<[1], [0], [0], [1], [0, 0, 1, 1], [], []>} : vector<2x32xbf16>, vector<32x128xbf16>, vector<2x128xf32> -> vector<2x128xf32>
    %466 = arith.addf %463, %465 : vector<2x128xf32>
    %467 = arith.addf %466, %466 : vector<2x128xf32>
    %468 = arith.select %5, %467, %466 : vector<2x128xi1>, vector<2x128xf32>
    %469 = arith.negf %468 : vector<2x128xf32>
    %470 = math.exp %469 : vector<2x128xf32>
    %cst_142 = arith.constant 1.000000e+00 : f32
    %471 = vector.broadcast %cst_142 : f32 to vector<2x128xf32>
    %472 = arith.addf %471, %470 : vector<2x128xf32>
    %473 = arith.divf %471, %472 : vector<2x128xf32>
    %474 = arith.addf %473, %473 : vector<2x128xf32>
    %cst_143 = arith.constant 1.000000e+00 : f32
    %475 = vector.broadcast %cst_143 : f32 to vector<2x128xf32>
    %476 = arith.subf %474, %475 : vector<2x128xf32>
    %477 = arith.select %5, %476, %473 : vector<2x128xi1>, vector<2x128xf32>
    %478 = vector.extract_strided_slice %477 {offsets = [0, 0], sizes = [2, 32], strides = [1, 1]} : vector<2x128xf32> to vector<2x32xf32>
    %479 = vector.extract_strided_slice %477 {offsets = [0, 32], sizes = [2, 32], strides = [1, 1]} : vector<2x128xf32> to vector<2x32xf32>
    %480 = vector.extract_strided_slice %477 {offsets = [0, 64], sizes = [2, 32], strides = [1, 1]} : vector<2x128xf32> to vector<2x32xf32>
    %481 = vector.extract_strided_slice %477 {offsets = [0, 96], sizes = [2, 32], strides = [1, 1]} : vector<2x128xf32> to vector<2x32xf32>
    %482 = arith.mulf %479, %454 : vector<2x32xf32>
    %483 = arith.mulf %478, %480 : vector<2x32xf32>
    %484 = arith.addf %482, %483 : vector<2x32xf32>
    %485 = math.tanh %484 : vector<2x32xf32>
    %486 = arith.mulf %481, %485 : vector<2x32xf32>
    %487 = arith.index_cast %c5_i32_138 : i32 to index
    %c0_144 = arith.constant 0 : index
    %c0_145 = arith.constant 0 : index
    %488 = vector.load %arg20[%487, %c0_144, %c0_145] : memref<8x2x32xf32, #tpu.memory_space<vmem>>, vector<1x2x32xf32>
    %489 = vector.shape_cast %488 : vector<1x2x32xf32> to vector<2x32xf32>
    %490 = vector.shape_cast %486 : vector<2x32xf32> to vector<1x2x32xf32>
    tpu.vector_store %arg20[%487, %c0_144, %c0_145], %490 {strides = array<i32>} : memref<8x2x32xf32, #tpu.memory_space<vmem>>, vector<1x2x32xf32>,
    %c6_i32_146 = arith.constant 6 : i32
    %491 = arith.index_cast %c6_i32_146 : i32 to index
    %c0_147 = arith.constant 0 : index
    %c0_148 = arith.constant 0 : index
    %492 = vector.load %arg19[%491, %c0_147, %c0_148] : memref<8x2x128xf32, #tpu.memory_space<vmem>>, vector<1x2x128xf32>
    %493 = vector.shape_cast %492 : vector<1x2x128xf32> to vector<2x128xf32>
    %494 = arith.truncf %486 : vector<2x32xf32> to vector<2x32xbf16>
    %cst_149 = arith.constant dense<0.000000e+00> : vector<2x128xf32>
    %495 = tpu.matmul %494, %299, %cst_149 {dimension_numbers = #tpu.dot_dimension_numbers<[1], [0], [0], [1], [0, 0, 1, 1], [], []>} : vector<2x32xbf16>, vector<32x128xbf16>, vector<2x128xf32> -> vector<2x128xf32>
    %496 = arith.addf %493, %495 : vector<2x128xf32>
    %497 = arith.addf %496, %496 : vector<2x128xf32>
    %498 = arith.select %5, %497, %496 : vector<2x128xi1>, vector<2x128xf32>
    %499 = arith.negf %498 : vector<2x128xf32>
    %500 = math.exp %499 : vector<2x128xf32>
    %cst_150 = arith.constant 1.000000e+00 : f32
    %501 = vector.broadcast %cst_150 : f32 to vector<2x128xf32>
    %502 = arith.addf %501, %500 : vector<2x128xf32>
    %503 = arith.divf %501, %502 : vector<2x128xf32>
    %504 = arith.addf %503, %503 : vector<2x128xf32>
    %cst_151 = arith.constant 1.000000e+00 : f32
    %505 = vector.broadcast %cst_151 : f32 to vector<2x128xf32>
    %506 = arith.subf %504, %505 : vector<2x128xf32>
    %507 = arith.select %5, %506, %503 : vector<2x128xi1>, vector<2x128xf32>
    %508 = vector.extract_strided_slice %507 {offsets = [0, 0], sizes = [2, 32], strides = [1, 1]} : vector<2x128xf32> to vector<2x32xf32>
    %509 = vector.extract_strided_slice %507 {offsets = [0, 32], sizes = [2, 32], strides = [1, 1]} : vector<2x128xf32> to vector<2x32xf32>
    %510 = vector.extract_strided_slice %507 {offsets = [0, 64], sizes = [2, 32], strides = [1, 1]} : vector<2x128xf32> to vector<2x32xf32>
    %511 = vector.extract_strided_slice %507 {offsets = [0, 96], sizes = [2, 32], strides = [1, 1]} : vector<2x128xf32> to vector<2x32xf32>
    %512 = arith.mulf %509, %484 : vector<2x32xf32>
    %513 = arith.mulf %508, %510 : vector<2x32xf32>
    %514 = arith.addf %512, %513 : vector<2x32xf32>
    %515 = math.tanh %514 : vector<2x32xf32>
    %516 = arith.mulf %511, %515 : vector<2x32xf32>
    %517 = arith.index_cast %c6_i32_146 : i32 to index
    %c0_152 = arith.constant 0 : index
    %c0_153 = arith.constant 0 : index
    %518 = vector.load %arg20[%517, %c0_152, %c0_153] : memref<8x2x32xf32, #tpu.memory_space<vmem>>, vector<1x2x32xf32>
    %519 = vector.shape_cast %518 : vector<1x2x32xf32> to vector<2x32xf32>
    %520 = vector.shape_cast %516 : vector<2x32xf32> to vector<1x2x32xf32>
    tpu.vector_store %arg20[%517, %c0_152, %c0_153], %520 {strides = array<i32>} : memref<8x2x32xf32, #tpu.memory_space<vmem>>, vector<1x2x32xf32>,
    %c7_i32_154 = arith.constant 7 : i32
    %521 = arith.index_cast %c7_i32_154 : i32 to index
    %c0_155 = arith.constant 0 : index
    %c0_156 = arith.constant 0 : index
    %522 = vector.load %arg19[%521, %c0_155, %c0_156] : memref<8x2x128xf32, #tpu.memory_space<vmem>>, vector<1x2x128xf32>
    %523 = vector.shape_cast %522 : vector<1x2x128xf32> to vector<2x128xf32>
    %524 = arith.truncf %516 : vector<2x32xf32> to vector<2x32xbf16>
    %cst_157 = arith.constant dense<0.000000e+00> : vector<2x128xf32>
    %525 = tpu.matmul %524, %299, %cst_157 {dimension_numbers = #tpu.dot_dimension_numbers<[1], [0], [0], [1], [0, 0, 1, 1], [], []>} : vector<2x32xbf16>, vector<32x128xbf16>, vector<2x128xf32> -> vector<2x128xf32>
    %526 = arith.addf %523, %525 : vector<2x128xf32>
    %527 = arith.addf %526, %526 : vector<2x128xf32>
    %528 = arith.select %5, %527, %526 : vector<2x128xi1>, vector<2x128xf32>
    %529 = arith.negf %528 : vector<2x128xf32>
    %530 = math.exp %529 : vector<2x128xf32>
    %cst_158 = arith.constant 1.000000e+00 : f32
    %531 = vector.broadcast %cst_158 : f32 to vector<2x128xf32>
    %532 = arith.addf %531, %530 : vector<2x128xf32>
    %533 = arith.divf %531, %532 : vector<2x128xf32>
    %534 = arith.addf %533, %533 : vector<2x128xf32>
    %cst_159 = arith.constant 1.000000e+00 : f32
    %535 = vector.broadcast %cst_159 : f32 to vector<2x128xf32>
    %536 = arith.subf %534, %535 : vector<2x128xf32>
    %537 = arith.select %5, %536, %533 : vector<2x128xi1>, vector<2x128xf32>
    %538 = vector.extract_strided_slice %537 {offsets = [0, 0], sizes = [2, 32], strides = [1, 1]} : vector<2x128xf32> to vector<2x32xf32>
    %539 = vector.extract_strided_slice %537 {offsets = [0, 32], sizes = [2, 32], strides = [1, 1]} : vector<2x128xf32> to vector<2x32xf32>
    %540 = vector.extract_strided_slice %537 {offsets = [0, 64], sizes = [2, 32], strides = [1, 1]} : vector<2x128xf32> to vector<2x32xf32>
    %541 = vector.extract_strided_slice %537 {offsets = [0, 96], sizes = [2, 32], strides = [1, 1]} : vector<2x128xf32> to vector<2x32xf32>
    %542 = arith.mulf %539, %514 : vector<2x32xf32>
    %543 = arith.mulf %538, %540 : vector<2x32xf32>
    %544 = arith.addf %542, %543 : vector<2x32xf32>
    %545 = math.tanh %544 : vector<2x32xf32>
    %546 = arith.mulf %541, %545 : vector<2x32xf32>
    %547 = arith.index_cast %c7_i32_154 : i32 to index
    %c0_160 = arith.constant 0 : index
    %c0_161 = arith.constant 0 : index
    %548 = vector.load %arg20[%547, %c0_160, %c0_161] : memref<8x2x32xf32, #tpu.memory_space<vmem>>, vector<1x2x32xf32>
    %549 = vector.shape_cast %548 : vector<1x2x32xf32> to vector<2x32xf32>
    %550 = vector.shape_cast %546 : vector<2x32xf32> to vector<1x2x32xf32>
    tpu.vector_store %arg20[%547, %c0_160, %c0_161], %550 {strides = array<i32>} : memref<8x2x32xf32, #tpu.memory_space<vmem>>, vector<1x2x32xf32>,
    %c8_i32_162 = arith.constant 8 : i32
    %c0_163 = arith.constant 0 : index
    %c0_164 = arith.constant 0 : index
    %c0_165 = arith.constant 0 : index
    %551 = vector.load %arg20[%c0_163, %c0_164, %c0_165] : memref<8x2x32xf32, #tpu.memory_space<vmem>>, vector<8x2x32xf32>
    %552 = vector.shape_cast %551 : vector<8x2x32xf32> to vector<16x32xf32>
    %553 = arith.truncf %552 : vector<16x32xf32> to vector<16x32xbf16>
    %c0_166 = arith.constant 0 : index
    %c0_167 = arith.constant 0 : index
    %554 = vector.load %arg8[%c0_166, %c0_167] : memref<32x128xbf16, #tpu.memory_space<vmem>>, vector<32x128xbf16>
    %cst_168 = arith.constant dense<0.000000e+00> : vector<16x128xf32>
    %555 = tpu.matmul %553, %554, %cst_168 {dimension_numbers = #tpu.dot_dimension_numbers<[1], [0], [0], [1], [0, 0, 1, 1], [], []>} : vector<16x32xbf16>, vector<32x128xbf16>, vector<16x128xf32> -> vector<16x128xf32>
    %c0_169 = arith.constant 0 : index
    %c0_170 = arith.constant 0 : index
    %556 = vector.load %arg9[%c0_169, %c0_170] : memref<1x128xf32, #tpu.memory_space<vmem>>, vector<1x128xf32>
    %557 = vector.broadcast %556 : vector<1x128xf32> to vector<16x128xf32>
    %558 = arith.addf %555, %557 : vector<16x128xf32>
    %cst_171 = arith.constant 0.000000e+00 : f32
    %559 = vector.broadcast %cst_171 : f32 to vector<16x128xf32>
    %560 = arith.maximumf %558, %559 : vector<16x128xf32>
    %cst_172 = arith.constant dense<0.000000e+00> : vector<16xf32>
    %561 = vector.multi_reduction <add>, %560, %cst_172 [1] : vector<16x128xf32> to vector<16xf32>
    %562 = vector.shape_cast %561 : vector<16xf32> to vector<16x1xf32>
    %cst_173 = arith.constant 1.562500e-02 : f32
    %563 = vector.broadcast %cst_173 : f32 to vector<16x1xf32>
    %564 = arith.mulf %562, %563 : vector<16x1xf32>
    %565 = arith.mulf %560, %560 : vector<16x128xf32>
    %cst_174 = arith.constant dense<0.000000e+00> : vector<16xf32>
    %566 = vector.multi_reduction <add>, %565, %cst_174 [1] : vector<16x128xf32> to vector<16xf32>
    %567 = vector.shape_cast %566 : vector<16xf32> to vector<16x1xf32>
    %cst_175 = arith.constant 1.562500e-02 : f32
    %568 = vector.broadcast %cst_175 : f32 to vector<16x1xf32>
    %569 = arith.mulf %567, %568 : vector<16x1xf32>
    %570 = arith.mulf %564, %564 : vector<16x1xf32>
    %571 = arith.subf %569, %570 : vector<16x1xf32>
    %cst_176 = arith.constant 0.000000e+00 : f32
    %572 = vector.broadcast %cst_176 : f32 to vector<16x1xf32>
    %573 = arith.maximumf %571, %572 : vector<16x1xf32>
    %574 = vector.broadcast %564 : vector<16x1xf32> to vector<16x128xf32>
    %575 = arith.subf %560, %574 : vector<16x128xf32>
    %cst_177 = arith.constant 9.99999974E-6 : f32
    %576 = vector.broadcast %cst_177 : f32 to vector<16x1xf32>
    %577 = arith.addf %573, %576 : vector<16x1xf32>
    %578 = math.rsqrt %577 : vector<16x1xf32>
    %579 = vector.broadcast %578 : vector<16x1xf32> to vector<16x128xf32>
    %580 = arith.mulf %575, %579 : vector<16x128xf32>
    %c0_178 = arith.constant 0 : index
    %c0_179 = arith.constant 0 : index
    %581 = vector.load %arg10[%c0_178, %c0_179] : memref<1x128xf32, #tpu.memory_space<vmem>>, vector<1x128xf32>
    %582 = vector.broadcast %581 : vector<1x128xf32> to vector<16x128xf32>
    %583 = arith.mulf %580, %582 : vector<16x128xf32>
    %c0_180 = arith.constant 0 : index
    %c0_181 = arith.constant 0 : index
    %584 = vector.load %arg11[%c0_180, %c0_181] : memref<1x128xf32, #tpu.memory_space<vmem>>, vector<1x128xf32>
    %585 = vector.broadcast %584 : vector<1x128xf32> to vector<16x128xf32>
    %586 = arith.addf %583, %585 : vector<16x128xf32>
    %cst_182 = arith.constant 0.000000e+00 : f32
    %587 = vector.broadcast %cst_182 : f32 to vector<16x128xf32>
    %588 = arith.maximumf %586, %587 : vector<16x128xf32>
    %589 = arith.truncf %588 : vector<16x128xf32> to vector<16x128xbf16>
    %c0_183 = arith.constant 0 : index
    %c0_184 = arith.constant 0 : index
    %590 = vector.load %arg12[%c0_183, %c0_184] : memref<128x128xbf16, #tpu.memory_space<vmem>>, vector<128x128xbf16>
    %cst_185 = arith.constant dense<0.000000e+00> : vector<16x128xf32>
    %591 = tpu.matmul %589, %590, %cst_185 {dimension_numbers = #tpu.dot_dimension_numbers<[1], [0], [0], [1], [0, 0, 1, 1], [], []>} : vector<16x128xbf16>, vector<128x128xbf16>, vector<16x128xf32> -> vector<16x128xf32>
    %c0_186 = arith.constant 0 : index
    %c0_187 = arith.constant 0 : index
    %592 = vector.load %arg13[%c0_186, %c0_187] : memref<1x128xf32, #tpu.memory_space<vmem>>, vector<1x128xf32>
    %593 = vector.broadcast %592 : vector<1x128xf32> to vector<16x128xf32>
    %594 = arith.addf %591, %593 : vector<16x128xf32>
    %cst_188 = arith.constant 0.000000e+00 : f32
    %595 = vector.broadcast %cst_188 : f32 to vector<16x128xf32>
    %596 = arith.maximumf %594, %595 : vector<16x128xf32>
    %cst_189 = arith.constant dense<0.000000e+00> : vector<16xf32>
    %597 = vector.multi_reduction <add>, %596, %cst_189 [1] : vector<16x128xf32> to vector<16xf32>
    %598 = vector.shape_cast %597 : vector<16xf32> to vector<16x1xf32>
    %cst_190 = arith.constant 1.562500e-02 : f32
    %599 = vector.broadcast %cst_190 : f32 to vector<16x1xf32>
    %600 = arith.mulf %598, %599 : vector<16x1xf32>
    %601 = arith.mulf %596, %596 : vector<16x128xf32>
    %cst_191 = arith.constant dense<0.000000e+00> : vector<16xf32>
    %602 = vector.multi_reduction <add>, %601, %cst_191 [1] : vector<16x128xf32> to vector<16xf32>
    %603 = vector.shape_cast %602 : vector<16xf32> to vector<16x1xf32>
    %cst_192 = arith.constant 1.562500e-02 : f32
    %604 = vector.broadcast %cst_192 : f32 to vector<16x1xf32>
    %605 = arith.mulf %603, %604 : vector<16x1xf32>
    %606 = arith.mulf %600, %600 : vector<16x1xf32>
    %607 = arith.subf %605, %606 : vector<16x1xf32>
    %cst_193 = arith.constant 0.000000e+00 : f32
    %608 = vector.broadcast %cst_193 : f32 to vector<16x1xf32>
    %609 = arith.maximumf %607, %608 : vector<16x1xf32>
    %610 = vector.broadcast %600 : vector<16x1xf32> to vector<16x128xf32>
    %611 = arith.subf %596, %610 : vector<16x128xf32>
    %cst_194 = arith.constant 9.99999974E-6 : f32
    %612 = vector.broadcast %cst_194 : f32 to vector<16x1xf32>
    %613 = arith.addf %609, %612 : vector<16x1xf32>
    %614 = math.rsqrt %613 : vector<16x1xf32>
    %615 = vector.broadcast %614 : vector<16x1xf32> to vector<16x128xf32>
    %616 = arith.mulf %611, %615 : vector<16x128xf32>
    %c0_195 = arith.constant 0 : index
    %c0_196 = arith.constant 0 : index
    %617 = vector.load %arg14[%c0_195, %c0_196] : memref<1x128xf32, #tpu.memory_space<vmem>>, vector<1x128xf32>
    %618 = vector.broadcast %617 : vector<1x128xf32> to vector<16x128xf32>
    %619 = arith.mulf %616, %618 : vector<16x128xf32>
    %c0_197 = arith.constant 0 : index
    %c0_198 = arith.constant 0 : index
    %620 = vector.load %arg15[%c0_197, %c0_198] : memref<1x128xf32, #tpu.memory_space<vmem>>, vector<1x128xf32>
    %621 = vector.broadcast %620 : vector<1x128xf32> to vector<16x128xf32>
    %622 = arith.addf %619, %621 : vector<16x128xf32>
    %cst_199 = arith.constant 0.000000e+00 : f32
    %623 = vector.broadcast %cst_199 : f32 to vector<16x128xf32>
    %624 = arith.maximumf %622, %623 : vector<16x128xf32>
    %625 = arith.truncf %624 : vector<16x128xf32> to vector<16x128xbf16>
    %c0_200 = arith.constant 0 : index
    %c0_201 = arith.constant 0 : index
    %626 = vector.load %arg16[%c0_200, %c0_201] : memref<128x128xbf16, #tpu.memory_space<vmem>>, vector<128x128xbf16>
    %cst_202 = arith.constant dense<0.000000e+00> : vector<16x128xf32>
    %627 = tpu.matmul %625, %626, %cst_202 {dimension_numbers = #tpu.dot_dimension_numbers<[1], [0], [0], [1], [0, 0, 1, 1], [], []>} : vector<16x128xbf16>, vector<128x128xbf16>, vector<16x128xf32> -> vector<16x128xf32>
    %c0_203 = arith.constant 0 : index
    %c0_204 = arith.constant 0 : index
    %628 = vector.load %arg17[%c0_203, %c0_204] : memref<1x128xf32, #tpu.memory_space<vmem>>, vector<1x128xf32>
    %629 = vector.broadcast %628 : vector<1x128xf32> to vector<16x128xf32>
    %630 = arith.addf %627, %629 : vector<16x128xf32>
    %cst_205 = arith.constant 0.000000e+00 : f32
    %631 = vector.broadcast %cst_205 : f32 to vector<16x128xf32>
    %632 = arith.maximumf %630, %631 : vector<16x128xf32>
    %c0_206 = arith.constant 0 : index
    %c0_207 = arith.constant 0 : index
    %633 = vector.load %arg18[%c0_206, %c0_207] : memref<16x128xf32, #tpu.memory_space<vmem>>, vector<16x128xf32>
    tpu.vector_store %arg18[%c0_206, %c0_207], %632 {strides = array<i32>} : memref<16x128xf32, #tpu.memory_space<vmem>>, vector<16x128xf32>,
    return
  }
  func.func @transform_0(%arg0: i32) -> (i32, i32, i32) {
    %c0_i32 = arith.constant 0 : i32
    %c0_i32_0 = arith.constant 0 : i32
    %c0_i32_1 = arith.constant 0 : i32
    return %arg0, %c0_i32, %c0_i32_0 : i32, i32, i32
  }
  func.func @transform_1(%arg0: i32) -> (i32, i32) {
    %c0_i32 = arith.constant 0 : i32
    %c0_i32_0 = arith.constant 0 : i32
    %c0_i32_1 = arith.constant 0 : i32
    return %c0_i32, %c0_i32_0 : i32, i32
  }
  func.func @transform_2(%arg0: i32) -> (i32, i32) {
    %c0_i32 = arith.constant 0 : i32
    %c0_i32_0 = arith.constant 0 : i32
    %c0_i32_1 = arith.constant 0 : i32
    return %c0_i32, %c0_i32_0 : i32, i32
  }
  func.func @transform_3(%arg0: i32) -> (i32, i32) {
    %c0_i32 = arith.constant 0 : i32
    %c0_i32_0 = arith.constant 0 : i32
    %c0_i32_1 = arith.constant 0 : i32
    return %c0_i32, %c0_i32_0 : i32, i32
  }
  func.func @transform_4(%arg0: i32) -> (i32, i32) {
    %c0_i32 = arith.constant 0 : i32
    %c0_i32_0 = arith.constant 0 : i32
    %c0_i32_1 = arith.constant 0 : i32
    return %c0_i32, %c0_i32_0 : i32, i32
  }
  func.func @transform_5(%arg0: i32) -> (i32, i32) {
    %c0_i32 = arith.constant 0 : i32
    %c0_i32_0 = arith.constant 0 : i32
    %c0_i32_1 = arith.constant 0 : i32
    return %c0_i32, %c0_i32_0 : i32, i32
  }
  func.func @transform_6(%arg0: i32) -> (i32, i32) {
    %c0_i32 = arith.constant 0 : i32
    %c0_i32_0 = arith.constant 0 : i32
    %c0_i32_1 = arith.constant 0 : i32
    return %c0_i32, %c0_i32_0 : i32, i32
  }
  func.func @transform_7(%arg0: i32) -> (i32, i32) {
    %c0_i32 = arith.constant 0 : i32
    %c0_i32_0 = arith.constant 0 : i32
    %c0_i32_1 = arith.constant 0 : i32
    return %c0_i32, %c0_i32_0 : i32, i32
  }
  func.func @transform_8(%arg0: i32) -> (i32, i32) {
    %c0_i32 = arith.constant 0 : i32
    %c0_i32_0 = arith.constant 0 : i32
    %c0_i32_1 = arith.constant 0 : i32
    return %c0_i32, %c0_i32_0 : i32, i32
  }
  func.func @transform_9(%arg0: i32) -> (i32, i32) {
    %c0_i32 = arith.constant 0 : i32
    %c0_i32_0 = arith.constant 0 : i32
    %c0_i32_1 = arith.constant 0 : i32
    return %c0_i32, %c0_i32_0 : i32, i32
  }
  func.func @transform_10(%arg0: i32) -> (i32, i32) {
    %c0_i32 = arith.constant 0 : i32
    %c0_i32_0 = arith.constant 0 : i32
    %c0_i32_1 = arith.constant 0 : i32
    return %c0_i32, %c0_i32_0 : i32, i32
  }
  func.func @transform_11(%arg0: i32) -> (i32, i32) {
    %c0_i32 = arith.constant 0 : i32
    %c0_i32_0 = arith.constant 0 : i32
    %c0_i32_1 = arith.constant 0 : i32
    return %c0_i32, %c0_i32_0 : i32, i32
  }
  func.func @transform_12(%arg0: i32) -> (i32, i32) {
    %c0_i32 = arith.constant 0 : i32
    %c0_i32_0 = arith.constant 0 : i32
    %c0_i32_1 = arith.constant 0 : i32
    return %c0_i32, %c0_i32_0 : i32, i32
  }
  func.func @transform_13(%arg0: i32) -> (i32, i32) {
    %c0_i32 = arith.constant 0 : i32
    %c0_i32_0 = arith.constant 0 : i32
    %c0_i32_1 = arith.constant 0 : i32
    return %c0_i32, %c0_i32_0 : i32, i32
  }
  func.func @transform_14(%arg0: i32) -> (i32, i32) {
    %c0_i32 = arith.constant 0 : i32
    %c0_i32_0 = arith.constant 0 : i32
    %c0_i32_1 = arith.constant 0 : i32
    return %c0_i32, %c0_i32_0 : i32, i32
  }
  func.func @transform_15(%arg0: i32) -> (i32, i32) {
    %c0_i32 = arith.constant 0 : i32
    %c0_i32_0 = arith.constant 0 : i32
    %c0_i32_1 = arith.constant 0 : i32
    return %c0_i32, %c0_i32_0 : i32, i32
  }
  func.func @transform_16(%arg0: i32) -> (i32, i32) {
    %c0_i32 = arith.constant 0 : i32
    %c0_i32_0 = arith.constant 0 : i32
    %c0_i32_1 = arith.constant 0 : i32
    return %c0_i32, %c0_i32_0 : i32, i32
  }
  func.func @transform_17(%arg0: i32) -> (i32, i32) {
    %c0_i32 = arith.constant 0 : i32
    %c0_i32_0 = arith.constant 0 : i32
    return %arg0, %c0_i32 : i32, i32
  }
}

</mosaic_0001>

<llo_original>
// kernel: tpu_custom_call.1
$region0: #{tpu_custom_call.1}
  #allocation0 [shape = 'u32[]', space=smem, size = 0x4, offset = 0x4, fixed_abs, tag = 'smem constant byte address 0x4 - core index']
  #allocation1 [shape = 'u32[144,128]{1,0:T(1,128)}', space=vmem, size = 0x12000, scoped, tag = 'internal scratch']
  #allocation2 [shape = 'f32[8,2,128]{2,1,0:T(2,128)}', space=vmem, size = 0x2000, scoped, tag = 'scratch operand']
  #allocation3 [shape = 'f32[8,2,32]{2,1,0:T(2,128)}', space=vmem, size = 0x2000, scoped, tag = 'scratch operand']
  %s0 = inlined_call_operand.hbm [shape: f32[2,8,32], index: 0, kind: input, shape index: {}]
  %s1 = inlined_call_operand.hbm [shape: bf16[32,128], index: 1, kind: input, shape index: {}]
  %s2 = inlined_call_operand.hbm [shape: bf16[32,128], index: 2, kind: input, shape index: {}]
  %s3 = inlined_call_operand.vmem [shape: f32[1,128], index: 3, kind: input, shape index: {}]
  %s4 = inlined_call_operand.hbm [shape: bf16[32,128], index: 4, kind: input, shape index: {}]
  %s5 = inlined_call_operand.vmem [shape: bf16[32,128], index: 5, kind: input, shape index: {}]
  %s6 = inlined_call_operand.vmem [shape: f32[1,128], index: 6, kind: input, shape index: {}]
  %s7 = inlined_call_operand.hbm [shape: bf16[32,128], index: 7, kind: input, shape index: {}]
  %s8 = inlined_call_operand.vmem [shape: f32[1,128], index: 8, kind: input, shape index: {}]
  %s9 = inlined_call_operand.vmem [shape: f32[1,128], index: 9, kind: input, shape index: {}]
  %s10 = inlined_call_operand.vmem [shape: f32[1,128], index: 10, kind: input, shape index: {}]
  %s11 = inlined_call_operand.hbm [shape: bf16[128,128], index: 11, kind: input, shape index: {}]
  %s12 = inlined_call_operand.vmem [shape: f32[1,128], index: 12, kind: input, shape index: {}]
  %s13 = inlined_call_operand.vmem [shape: f32[1,128], index: 13, kind: input, shape index: {}]
  %s14 = inlined_call_operand.vmem [shape: f32[1,128], index: 14, kind: input, shape index: {}]
  %s15 = inlined_call_operand.hbm [shape: bf16[128,128], index: 15, kind: input, shape index: {}]
  %s16 = inlined_call_operand.vmem [shape: f32[1,128], index: 16, kind: input, shape index: {}]
  %s17 = inlined_call_operand.hbm [shape: f32[16,128], index: 17, kind: output, shape index: {}]
  %s18 = sld [smem:[#allocation0]]
  $region106: #{tpu_custom_call.1} parent=0
    _
  %s20 = ssub.s32 1, %s18
  %s21 = scalar_select 0, %s20, %s18
  $region1: #{tpu_custom_call.1} parent=0
    #allocation4 [shape = 'u8[8192]{0}', space=vmem, size = 0x2000, scoped, tag = 'input window, operand 0, single buffered']
    #allocation5 [shape = 's32[1]{0}', space=sflag, size = 0x4, scoped, tag = 'scoped memory for tpu_custom_call.1']
    #allocation6 [shape = 's32[1]{0}', space=sflag, size = 0x4, scoped, tag = 'scoped memory for tpu_custom_call.1']
    #allocation7 [shape = 'u8[8192]{0}', space=vmem, size = 0x2000, scoped, tag = 'input window, operand 1, single buffered']
    #allocation8 [shape = 's32[1]{0}', space=sflag, size = 0x4, scoped, tag = 'scoped memory for tpu_custom_call.1']
    #allocation9 [shape = 'u8[8192]{0}', space=vmem, size = 0x2000, scoped, tag = 'input window, operand 2, single buffered']
    #allocation10 [shape = 'u8[8192]{0}', space=vmem, size = 0x2000, scoped, tag = 'input window, operand 4, single buffered']
    #allocation11 [shape = 's32[1]{0}', space=sflag, size = 0x4, scoped, tag = 'scoped memory for tpu_custom_call.1']
    #allocation12 [shape = 'u8[8192]{0}', space=vmem, size = 0x2000, scoped, tag = 'input window, operand 7, single buffered']
    #allocation13 [shape = 'u8[32768]{0}', space=vmem, size = 0x8000, scoped, tag = 'input window, operand 11, single buffered']
    #allocation14 [shape = 's32[1]{0}', space=sflag, size = 0x4, scoped, tag = 'scoped memory for tpu_custom_call.1']
    #allocation15 [shape = 'u8[32768]{0}', space=vmem, size = 0x8000, scoped, tag = 'input window, operand 15, single buffered']
    #allocation16 [shape = 'u8[8192]{0}', space=vmem, size = 0x2000, scoped, tag = 'output window, operand 0, single buffered']
    %22 = vsyncpa [#allocation5], 0
    %23 = vsyncpa [#allocation8], 0
    %24 = vsyncpa [#allocation11], 0
    %25 = vsyncpa [#allocation14], 0
    %26 = vsyncpa [#allocation6], 0
    // Predicated region
    $region2: #{tpu_custom_call.1} parent=1 // pred_check
      _
    $region3: #{tpu_custom_call.1} parent=1 // pred_check_branch
      %28 = sbr.rel (0) target = $region5
    $region4: #{tpu_custom_call.1} parent=1 // pred_region
      %s30 = ssub.s32 256, 256
      %31 = vsyncadd [#allocation5], %s30
      %s32 = sshll.u32 [#allocation4], 4
      %s33 = int_to_ptr.vmem [resolvable:$true] %s32
      %38 = dma.hbm_to_vmem [thread:$0]  %s0, 256, %s33, [#allocation5], 128, 128, 8
    $region5: #{tpu_custom_call.1} parent=1 // pred_fallthru
      _
    // Predicated region
    $region6: #{tpu_custom_call.1} parent=1 // pred_check
      _
    $region7: #{tpu_custom_call.1} parent=1 // pred_check_branch
      %40 = sbr.rel (0) target = $region9
    $region8: #{tpu_custom_call.1} parent=1 // pred_region
      %s42 = ssub.s32 256, 256
      %43 = vsyncadd [#allocation8], %s42
      %s44 = sshll.u32 [#allocation7], 4
      %s45 = int_to_ptr.vmem [resolvable:$true] %s44
      %50 = dma.hbm_to_vmem [thread:$0]  %s1, 256, %s45, [#allocation8], 64, 64, 4
    $region9: #{tpu_custom_call.1} parent=1 // pred_fallthru
      _
    // Predicated region
    $region10: #{tpu_custom_call.1} parent=1 // pred_check
      _
    $region11: #{tpu_custom_call.1} parent=1 // pred_check_branch
      %52 = sbr.rel (0) target = $region13
    $region12: #{tpu_custom_call.1} parent=1 // pred_region
      %s54 = ssub.s32 256, 256
      %55 = vsyncadd [#allocation8], %s54
      %s56 = sshll.u32 [#allocation9], 4
      %s57 = int_to_ptr.vmem [resolvable:$true] %s56
      %62 = dma.hbm_to_vmem [thread:$0]  %s2, 256, %s57, [#allocation8], 64, 64, 4
    $region13: #{tpu_custom_call.1} parent=1 // pred_fallthru
      _
    // Predicated region
    $region14: #{tpu_custom_call.1} parent=1 // pred_check
      _
    $region15: #{tpu_custom_call.1} parent=1 // pred_check_branch
      %64 = sbr.rel (0) target = $region17
    $region16: #{tpu_custom_call.1} parent=1 // pred_region
      _
    $region17: #{tpu_custom_call.1} parent=1 // pred_fallthru
      _
    // Predicated region
    $region18: #{tpu_custom_call.1} parent=1 // pred_check
      _
    $region19: #{tpu_custom_call.1} parent=1 // pred_check_branch
      %66 = sbr.rel (0) target = $region21
    $region20: #{tpu_custom_call.1} parent=1 // pred_region
      %s68 = ssub.s32 256, 256
      %69 = vsyncadd [#allocation11], %s68
      %s70 = sshll.u32 [#allocation10], 4
      %s71 = int_to_ptr.vmem [resolvable:$true] %s70
      %76 = dma.hbm_to_vmem [thread:$0]  %s4, 256, %s71, [#allocation11], 64, 64, 4
    $region21: #{tpu_custom_call.1} parent=1 // pred_fallthru
      _
    // Predicated region
    $region22: #{tpu_custom_call.1} parent=1 // pred_check
      _
    $region23: #{tpu_custom_call.1} parent=1 // pred_check_branch
      %78 = sbr.rel (0) target = $region25
    $region24: #{tpu_custom_call.1} parent=1 // pred_region
      _
    $region25: #{tpu_custom_call.1} parent=1 // pred_fallthru
      _
    // Predicated region
    $region26: #{tpu_custom_call.1} parent=1 // pred_check
      _
    $region27: #{tpu_custom_call.1} parent=1 // pred_check_branch
      %80 = sbr.rel (0) target = $region29
    $region28: #{tpu_custom_call.1} parent=1 // pred_region
      _
    $region29: #{tpu_custom_call.1} parent=1 // pred_fallthru
      _
    // Predicated region
    $region30: #{tpu_custom_call.1} parent=1 // pred_check
      _
    $region31: #{tpu_custom_call.1} parent=1 // pred_check_branch
      %82 = sbr.rel (0) target = $region33
    $region32: #{tpu_custom_call.1} parent=1 // pred_region
      %s84 = ssub.s32 256, 256
      %85 = vsyncadd [#allocation11], %s84
      %s86 = sshll.u32 [#allocation12], 4
      %s87 = int_to_ptr.vmem [resolvable:$true] %s86
      %92 = dma.hbm_to_vmem [thread:$0]  %s7, 256, %s87, [#allocation11], 64, 64, 4
    $region33: #{tpu_custom_call.1} parent=1 // pred_fallthru
      _
    // Predicated region
    $region34: #{tpu_custom_call.1} parent=1 // pred_check
      _
    $region35: #{tpu_custom_call.1} parent=1 // pred_check_branch
      %94 = sbr.rel (0) target = $region37
    $region36: #{tpu_custom_call.1} parent=1 // pred_region
      _
    $region37: #{tpu_custom_call.1} parent=1 // pred_fallthru
      _
    // Predicated region
    $region38: #{tpu_custom_call.1} parent=1 // pred_check
      _
    $region39: #{tpu_custom_call.1} parent=1 // pred_check_branch
      %96 = sbr.rel (0) target = $region41
    $region40: #{tpu_custom_call.1} parent=1 // pred_region
      _
    $region41: #{tpu_custom_call.1} parent=1 // pred_fallthru
      _
    // Predicated region
    $region42: #{tpu_custom_call.1} parent=1 // pred_check
      _
    $region43: #{tpu_custom_call.1} parent=1 // pred_check_branch
      %98 = sbr.rel (0) target = $region45
    $region44: #{tpu_custom_call.1} parent=1 // pred_region
      _
    $region45: #{tpu_custom_call.1} parent=1 // pred_fallthru
      _
    // Predicated region
    $region46: #{tpu_custom_call.1} parent=1 // pred_check
      _
    $region47: #{tpu_custom_call.1} parent=1 // pred_check_branch
      %100 = sbr.rel (0) target = $region49
    $region48: #{tpu_custom_call.1} parent=1 // pred_region
      %s102 = ssub.s32 1024, 1024
      %103 = vsyncadd [#allocation14], %s102
      %s104 = sshll.u32 [#allocation13], 4
      %s105 = int_to_ptr.vmem [resolvable:$true] %s104
      %110 = dma.hbm_to_vmem [thread:$0]  %s11, 1024, %s105, [#allocation14], 64, 64, 4
    $region49: #{tpu_custom_call.1} parent=1 // pred_fallthru
      _
    // Predicated region
    $region50: #{tpu_custom_call.1} parent=1 // pred_check
      _
    $region51: #{tpu_custom_call.1} parent=1 // pred_check_branch
      %112 = sbr.rel (0) target = $region53
    $region52: #{tpu_custom_call.1} parent=1 // pred_region
      _
    $region53: #{tpu_custom_call.1} parent=1 // pred_fallthru
      _
    // Predicated region
    $region54: #{tpu_custom_call.1} parent=1 // pred_check
      _
    $region55: #{tpu_custom_call.1} parent=1 // pred_check_branch
      %114 = sbr.rel (0) target = $region57
    $region56: #{tpu_custom_call.1} parent=1 // pred_region
      _
    $region57: #{tpu_custom_call.1} parent=1 // pred_fallthru
      _
    // Predicated region
    $region58: #{tpu_custom_call.1} parent=1 // pred_check
      _
    $region59: #{tpu_custom_call.1} parent=1 // pred_check_branch
      %116 = sbr.rel (0) target = $region61
    $region60: #{tpu_custom_call.1} parent=1 // pred_region
      _
    $region61: #{tpu_custom_call.1} parent=1 // pred_fallthru
      _
    // Predicated region
    $region62: #{tpu_custom_call.1} parent=1 // pred_check
      _
    $region63: #{tpu_custom_call.1} parent=1 // pred_check_branch
      %118 = sbr.rel (0) target = $region65
    $region64: #{tpu_custom_call.1} parent=1 // pred_region
      %s120 = ssub.s32 1024, 1024
      %121 = vsyncadd [#allocation14], %s120
      %s122 = sshll.u32 [#allocation15], 4
      %s123 = int_to_ptr.vmem [resolvable:$true] %s122
      %128 = dma.hbm_to_vmem [thread:$0]  %s15, 1024, %s123, [#allocation14], 64, 64, 4
    $region65: #{tpu_custom_call.1} parent=1 // pred_fallthru
      _
    // Predicated region
    $region66: #{tpu_custom_call.1} parent=1 // pred_check
      _
    $region67: #{tpu_custom_call.1} parent=1 // pred_check_branch
      %130 = sbr.rel (0) target = $region69
    $region68: #{tpu_custom_call.1} parent=1 // pred_region
      _
    $region69: #{tpu_custom_call.1} parent=1 // pred_fallthru
      _
    // Predicated region
    $region70: #{tpu_custom_call.1} parent=1 // pred_check
      _
    $region71: #{tpu_custom_call.1} parent=1 // pred_check_branch
      %132 = sbr.rel (0) target = $region73
    $region72: #{tpu_custom_call.1} parent=1 // pred_region
      %133 = dma.done [#allocation5], 256
    $region73: #{tpu_custom_call.1} parent=1 // pred_fallthru
      _
    // Predicated region
    $region74: #{tpu_custom_call.1} parent=1 // pred_check
      _
    $region75: #{tpu_custom_call.1} parent=1 // pred_check_branch
      %135 = sbr.rel (0) target = $region77
    $region76: #{tpu_custom_call.1} parent=1 // pred_region
      %136 = dma.done [#allocation8], 256
    $region77: #{tpu_custom_call.1} parent=1 // pred_fallthru
      _
    // Predicated region
    $region78: #{tpu_custom_call.1} parent=1 // pred_check
      _
    $region79: #{tpu_custom_call.1} parent=1 // pred_check_branch
      %138 = sbr.rel (0) target = $region81
    $region80: #{tpu_custom_call.1} parent=1 // pred_region
      %139 = dma.done [#allocation8], 256
    $region81: #{tpu_custom_call.1} parent=1 // pred_fallthru
      _
    // Predicated region
    $region82: #{tpu_custom_call.1} parent=1 // pred_check
      _
    $region83: #{tpu_custom_call.1} parent=1 // pred_check_branch
      %141 = sbr.rel (0) target = $region85
    $region84: #{tpu_custom_call.1} parent=1 // pred_region
      %142 = dma.done [#allocation11], 256
    $region85: #{tpu_custom_call.1} parent=1 // pred_fallthru
      _
    // Predicated region
    $region86: #{tpu_custom_call.1} parent=1 // pred_check
      _
    $region87: #{tpu_custom_call.1} parent=1 // pred_check_branch
      %144 = sbr.rel (0) target = $region89
    $region88: #{tpu_custom_call.1} parent=1 // pred_region
      %145 = dma.done [#allocation11], 256
    $region89: #{tpu_custom_call.1} parent=1 // pred_fallthru
      _
    // Predicated region
    $region90: #{tpu_custom_call.1} parent=1 // pred_check
      _
    $region91: #{tpu_custom_call.1} parent=1 // pred_check_branch
      %147 = sbr.rel (0) target = $region93
    $region92: #{tpu_custom_call.1} parent=1 // pred_region
      %148 = dma.done [#allocation14], 1024
    $region93: #{tpu_custom_call.1} parent=1 // pred_fallthru
      _
    // Predicated region
    $region94: #{tpu_custom_call.1} parent=1 // pred_check
      _
    $region95: #{tpu_custom_call.1} parent=1 // pred_check_branch
      %150 = sbr.rel (0) target = $region97
    $region96: #{tpu_custom_call.1} parent=1 // pred_region
      %151 = dma.done [#allocation14], 1024
    $region97: #{tpu_custom_call.1} parent=1 // pred_fallthru
      _
    %v153 = vlaneseq
    %v154 = vand.u32 %v153, 127
    %vm155 = vcmp.ge.s32.totalorder %v154, 64
    %vm156 = vcmp.lt.s32.totalorder %v154, 96
    %vm157 = vmand %vm155, %vm156
    %v158 = vld [vmem:[#allocation7] sm:$0xf]
    %v159 = vld [vmem:[#allocation7 + $0x4] sm:$0xf]
    %v160 = vld [vmem:[#allocation7 + $0x8] sm:$0xf]
    %v161 = vld [vmem:[#allocation7 + $0xc] sm:$0xf]
    %v162 = vld [vmem:[#allocation9] sm:$0xf]
    %v163 = vld [vmem:[#allocation9 + $0x4] sm:$0xf]
    %v164 = vld [vmem:[#allocation9 + $0x8] sm:$0xf]
    %v165 = vld [vmem:[#allocation9 + $0xc] sm:$0xf]
    %v166 = vld [vmem:[%s3] sm:$0x1]
    %v167 = vld [vmem:[#allocation4] sm:$0xff]
    %v168 = vld [vmem:[#allocation4 + $0x8] sm:$0xff]
    %v169 = vpack.c.bf16 %v168, %v167
    %v171 = vlaneseq
    %v172 = vshrl.u32 %v171, 7
    %v173 = vsub.s32 0, %v172
    %v174 = vrot.slane %v166, %v173
    %v180 = vunpack.c.l.b16 %v158
    %v181 = vunpack.c.l.b16 %v159
    %v182 = vunpack.c.l.b16 %v160
    %v183 = vunpack.c.l.b16 %v161
    %v184 = vpack.c.b16 %v181, %v180
    %v185 = vpack.c.b16 %v183, %v182
    %vm188 = vcmask 261120
    %v190 = vsel %vm188, %v169, 0
    %192 = vmatprep.subr.bf16.mxu0 0
    %193 = vmatpush1.bf16.msra.mxu0 %v184
    %194 = vmatprep.subr.bf16.mxu0 0
    %195 = vmatpush1.bf16.msra.mxu0 %v185
    %196 = vmatprep.subr.bf16.mxu0 0
    %197 = vmatpush1.bf16.msra.mxu0 0
    %198 = vmatprep.subr.bf16.mxu0 0
    %199 = vmatpush1.bf16.msra.mxu0 0
    %200 = vmatprep.subr.bf16.mxu0 0
    %201 = vmatpush1.bf16.msra.mxu0 0
    %202 = vmatprep.subr.bf16.mxu0 0
    %203 = vmatpush1.bf16.msra.mxu0 0
    %204 = vmatprep.subr.bf16.mxu0 0
    %205 = vmatpush1.bf16.msra.mxu0 0
    %206 = vmatprep.subr.bf16.mxu0 0
    %207 = vmatpush1.bf16.msra.mxu0 0
    %208 = vmatprep.subr.bf16.mxu0 0
    %209 = vmatpush1.bf16.msra.mxu0 0
    %210 = vmatprep.subr.bf16.mxu0 0
    %211 = vmatpush1.bf16.msra.mxu0 0
    %212 = vmatprep.subr.bf16.mxu0 0
    %213 = vmatpush1.bf16.msra.mxu0 0
    %214 = vmatprep.subr.bf16.mxu0 0
    %215 = vmatpush1.bf16.msra.mxu0 0
    %216 = vmatprep.subr.bf16.mxu0 0
    %217 = vmatpush1.bf16.msra.mxu0 0
    %218 = vmatprep.subr.bf16.mxu0 0
    %219 = vmatpush1.bf16.msra.mxu0 0
    %220 = vmatprep.subr.bf16.mxu0 0
    %221 = vmatpush1.bf16.msra.mxu0 0
    %222 = vmatprep.subr.bf16.mxu0 0
    %223 = vmatpush1.bf16.msra.mxu0 0
    %224 = vmatprep.mubr.bf16.mxu0 0
    %225 = vmatmul.mubr.bf16.gmra.mrb[0].mxu0 %v190
    %v226 = vpop.f32.mrb[0].mxu0
    %v227 = vadd.f32 %v174, %v226
    %v228 = vpop.f32.mrb[0].mxu0
    %v229 = vpop.f32.mrb[0].mxu0
    %v230 = vadd.f32 %v174, %v229
    %v231 = vpop.f32.mrb[0].mxu0
    %232 = vdwg.mxu0
    %v235 = vrot.slane %v230, 7
    %vm236 = vcmask 1041409
    %v237 = vsel %vm236, %v235, %v227
    %239 = vst [vmem:[#allocation2] sm:$0x3] %v237
    %vm240 = vcmask 1042434
    %v241 = vsel %vm240, %v235, %v227
    %s243 = scalar_lea.vmem [#allocation2], 2
    %244 = vst [vmem:[%s243 - $0x1] sm:$0x6] %v241
    %vm245 = vcmask 1043459
    %v246 = vsel %vm245, %v235, %v227
    %s248 = scalar_lea.vmem [#allocation2], 4
    %249 = vst [vmem:[%s248 - $0x2] sm:$0xc] %v246
    %vm250 = vcmask 1044484
    %v251 = vsel %vm250, %v235, %v227
    %s253 = scalar_lea.vmem [#allocation2], 6
    %254 = vst [vmem:[%s253 - $0x3] sm:$0x18] %v251
    %vm255 = vcmask 1045509
    %v256 = vsel %vm255, %v235, %v227
    %s258 = scalar_lea.vmem [#allocation2], 8
    %259 = vst [vmem:[%s258 - $0x4] sm:$0x30] %v256
    %vm260 = vcmask 1046534
    %v261 = vsel %vm260, %v235, %v227
    %s263 = scalar_lea.vmem [#allocation2], 10
    %264 = vst [vmem:[%s263 - $0x5] sm:$0x60] %v261
    %vm265 = vcmask 1047559
    %v266 = vsel %vm265, %v235, %v227
    %s268 = scalar_lea.vmem [#allocation2], 12
    %269 = vst [vmem:[%s268 - $0x6] sm:$0xc0] %v266
    %s272 = scalar_lea.vmem [#allocation2], 14
    %273 = vst [vmem:[%s272 - $0x7] sm:$0x80] %v227
    %274 = vst [vmem:[%s272 + $0x1] sm:$0x1] %v235
    %v275 = vld [vmem:[#allocation2] sm:$0x3]
    %v280 = vunpack.c.l.b16 %v162
    %v281 = vunpack.c.l.b16 %v163
    %v282 = vunpack.c.l.b16 %v164
    %v283 = vunpack.c.l.b16 %v165
    %v284 = vpack.c.b16 %v281, %v280
    %v285 = vpack.c.b16 %v283, %v282
    %v289 = vsel %vm188, 0, 0
    %291 = vmatprep.subr.bf16.mxu0 0
    %292 = vmatpush1.bf16.msra.mxu0 %v284
    %293 = vmatprep.subr.bf16.mxu0 0
    %294 = vmatpush1.bf16.msra.mxu0 %v285
    %295 = vmatprep.subr.bf16.mxu0 0
    %296 = vmatpush1.bf16.msra.mxu0 0
    %297 = vmatprep.subr.bf16.mxu0 0
    %298 = vmatpush1.bf16.msra.mxu0 0
    %299 = vmatprep.subr.bf16.mxu0 0
    %300 = vmatpush1.bf16.msra.mxu0 0
    %301 = vmatprep.subr.bf16.mxu0 0
    %302 = vmatpush1.bf16.msra.mxu0 0
    %303 = vmatprep.subr.bf16.mxu0 0
    %304 = vmatpush1.bf16.msra.mxu0 0
    %305 = vmatprep.subr.bf16.mxu0 0
    %306 = vmatpush1.bf16.msra.mxu0 0
    %307 = vmatprep.subr.bf16.mxu0 0
    %308 = vmatpush1.bf16.msra.mxu0 0
    %309 = vmatprep.subr.bf16.mxu0 0
    %310 = vmatpush1.bf16.msra.mxu0 0
    %311 = vmatprep.subr.bf16.mxu0 0
    %312 = vmatpush1.bf16.msra.mxu0 0
    %313 = vmatprep.subr.bf16.mxu0 0
    %314 = vmatpush1.bf16.msra.mxu0 0
    %315 = vmatprep.subr.bf16.mxu0 0
    %316 = vmatpush1.bf16.msra.mxu0 0
    %317 = vmatprep.subr.bf16.mxu0 0
    %318 = vmatpush1.bf16.msra.mxu0 0
    %319 = vmatprep.subr.bf16.mxu0 0
    %320 = vmatpush1.bf16.msra.mxu0 0
    %321 = vmatprep.subr.bf16.mxu0 0
    %322 = vmatpush1.bf16.msra.mxu0 0
    %323 = vmatprep.mubr.bf16.mxu0 0
    %324 = vmatmul.mubr.bf16.gmra.mrb[0].mxu0 %v289
    %v325 = vpop.f32.mrb[0].mxu0
    %v326 = vadd.f32 0.0, %v325
    %v327 = vpop.f32.mrb[0].mxu0
    %v328 = vpop.f32.mrb[0].mxu0
    %v329 = vpop.f32.mrb[0].mxu0
    %330 = vdwg.mxu0
    %v331 = vadd.f32 %v275, %v326
    %v332 = vadd.f32 %v331, %v331
    %v333 = vsel %vm157, %v332, %v331
    %v334 = vxor.u32 %v333, 2147483648
    %v335 = vmul.f32 %v334, 1.442695
    %v336 = vpow.pop %v335
    %v337 = vadd.f32 %v336, 1.0
    %v338 = vrcp.pop %v337
    %v339 = vmul.f32 1.0, %v338
    %v340 = vadd.f32 %v339, %v339
    %v341 = vsub.f32 %v340, 1.0
    %v342 = vsel %vm157, %v341, %v339
    %v343 = vmul.f32 %v342, 0.0
    %345 = vrot.lane.b32.xlu0 %v342, 64
    %v346 = vpop.permute.xlu0 %345
    %v348 = vmul.f32 %v342, %v346
    %350 = vrot.lane.b32.xlu0 %v348, 32
    %v351 = vpop.permute.xlu0 %350
    %v353 = vadd.f32 %v343, %v351
    %v354 = vtanh.pop %v353
    %356 = vrot.lane.b32.xlu0 %v354, 64
    %v357 = vpop.permute.xlu0 %356
    %v359 = vmul.f32 %v342, %v357
    %361 = vrot.lane.b32.xlu0 %v359, 32
    %v362 = vpop.permute.xlu0 %361
    %vm364 = vcmask 254976
    %365 = vst.msk [vmem:[#allocation3] sm:$0x3] %vm364, %v362
    %v366 = vld [vmem:[%s243] sm:$0x3]
    %v367 = vpack.c.bf16 %v359, %v359
    %369 = vrot.lane.b32.xlu0 %v367, 32
    %v370 = vpop.permute.xlu0 %369
    %v372 = vsel %vm188, %v370, 0
    %374 = vmatprep.subr.bf16.mxu0 0
    %375 = vmatpush1.bf16.msra.mxu0 %v284
    %376 = vmatprep.subr.bf16.mxu0 0
    %377 = vmatpush1.bf16.msra.mxu0 %v285
    %378 = vmatprep.subr.bf16.mxu0 0
    %379 = vmatpush1.bf16.msra.mxu0 0
    %380 = vmatprep.subr.bf16.mxu0 0
    %381 = vmatpush1.bf16.msra.mxu0 0
    %382 = vmatprep.subr.bf16.mxu0 0
    %383 = vmatpush1.bf16.msra.mxu0 0
    %384 = vmatprep.subr.bf16.mxu0 0
    %385 = vmatpush1.bf16.msra.mxu0 0
    %386 = vmatprep.subr.bf16.mxu0 0
    %387 = vmatpush1.bf16.msra.mxu0 0
    %388 = vmatprep.subr.bf16.mxu0 0
    %389 = vmatpush1.bf16.msra.mxu0 0
    %390 = vmatprep.subr.bf16.mxu0 0
    %391 = vmatpush1.bf16.msra.mxu0 0
    %392 = vmatprep.subr.bf16.mxu0 0
    %393 = vmatpush1.bf16.msra.mxu0 0
    %394 = vmatprep.subr.bf16.mxu0 0
    %395 = vmatpush1.bf16.msra.mxu0 0
    %396 = vmatprep.subr.bf16.mxu0 0
    %397 = vmatpush1.bf16.msra.mxu0 0
    %398 = vmatprep.subr.bf16.mxu0 0
    %399 = vmatpush1.bf16.msra.mxu0 0
    %400 = vmatprep.subr.bf16.mxu0 0
    %401 = vmatpush1.bf16.msra.mxu0 0
    %402 = vmatprep.subr.bf16.mxu0 0
    %403 = vmatpush1.bf16.msra.mxu0 0
    %404 = vmatprep.subr.bf16.mxu0 0
    %405 = vmatpush1.bf16.msra.mxu0 0
    %406 = vmatprep.mubr.bf16.mxu0 0
    %407 = vmatmul.mubr.bf16.gmra.mrb[0].mxu0 %v372
    %v408 = vpop.f32.mrb[0].mxu0
    %v409 = vadd.f32 0.0, %v408
    %v410 = vpop.f32.mrb[0].mxu0
    %v411 = vpop.f32.mrb[0].mxu0
    %v412 = vpop.f32.mrb[0].mxu0
    %413 = vdwg.mxu0
    %v414 = vadd.f32 %v366, %v409
    %v415 = vadd.f32 %v414, %v414
    %v416 = vsel %vm157, %v415, %v414
    %v417 = vxor.u32 %v416, 2147483648
    %v418 = vmul.f32 %v417, 1.442695
    %v419 = vpow.pop %v418
    %v420 = vadd.f32 %v419, 1.0
    %v421 = vrcp.pop %v420
    %v422 = vmul.f32 1.0, %v421
    %v423 = vadd.f32 %v422, %v422
    %v424 = vsub.f32 %v423, 1.0
    %v425 = vsel %vm157, %v424, %v422
    %v426 = vmul.f32 %v425, %v353
    %428 = vrot.lane.b32.xlu0 %v425, 64
    %v429 = vpop.permute.xlu0 %428
    %v431 = vmul.f32 %v425, %v429
    %433 = vrot.lane.b32.xlu0 %v431, 32
    %v434 = vpop.permute.xlu0 %433
    %v436 = vadd.f32 %v426, %v434
    %v437 = vtanh.pop %v436
    %439 = vrot.lane.b32.xlu0 %v437, 64
    %v440 = vpop.permute.xlu0 %439
    %v442 = vmul.f32 %v425, %v440
    %444 = vrot.lane.b32.xlu0 %v442, 32
    %v445 = vpop.permute.xlu0 %444
    %s447 = scalar_lea.vmem [#allocation3], 2
    %448 = vst.msk [vmem:[%s447] sm:$0x3] %vm364, %v445
    %v449 = vld [vmem:[%s248] sm:$0x3]
    %v450 = vpack.c.bf16 %v442, %v442
    %452 = vrot.lane.b32.xlu0 %v450, 32
    %v453 = vpop.permute.xlu0 %452
    %v455 = vsel %vm188, %v453, 0
    %457 = vmatprep.subr.bf16.mxu0 0
    %458 = vmatpush1.bf16.msra.mxu0 %v284
    %459 = vmatprep.subr.bf16.mxu0 0
    %460 = vmatpush1.bf16.msra.mxu0 %v285
    %461 = vmatprep.subr.bf16.mxu0 0
    %462 = vmatpush1.bf16.msra.mxu0 0
    %463 = vmatprep.subr.bf16.mxu0 0
    %464 = vmatpush1.bf16.msra.mxu0 0
    %465 = vmatprep.subr.bf16.mxu0 0
    %466 = vmatpush1.bf16.msra.mxu0 0
    %467 = vmatprep.subr.bf16.mxu0 0
    %468 = vmatpush1.bf16.msra.mxu0 0
    %469 = vmatprep.subr.bf16.mxu0 0
    %470 = vmatpush1.bf16.msra.mxu0 0
    %471 = vmatprep.subr.bf16.mxu0 0
    %472 = vmatpush1.bf16.msra.mxu0 0
    %473 = vmatprep.subr.bf16.mxu0 0
    %474 = vmatpush1.bf16.msra.mxu0 0
    %475 = vmatprep.subr.bf16.mxu0 0
    %476 = vmatpush1.bf16.msra.mxu0 0
    %477 = vmatprep.subr.bf16.mxu0 0
    %478 = vmatpush1.bf16.msra.mxu0 0
    %479 = vmatprep.subr.bf16.mxu0 0
    %480 = vmatpush1.bf16.msra.mxu0 0
    %481 = vmatprep.subr.bf16.mxu0 0
    %482 = vmatpush1.bf16.msra.mxu0 0
    %483 = vmatprep.subr.bf16.mxu0 0
    %484 = vmatpush1.bf16.msra.mxu0 0
    %485 = vmatprep.subr.bf16.mxu0 0
    %486 = vmatpush1.bf16.msra.mxu0 0
    %487 = vmatprep.subr.bf16.mxu0 0
    %488 = vmatpush1.bf16.msra.mxu0 0
    %489 = vmatprep.mubr.bf16.mxu0 0
    %490 = vmatmul.mubr.bf16.gmra.mrb[0].mxu0 %v455
    %v491 = vpop.f32.mrb[0].mxu0
    %v492 = vadd.f32 0.0, %v491
    %v493 = vpop.f32.mrb[0].mxu0
    %v494 = vpop.f32.mrb[0].mxu0
    %v495 = vpop.f32.mrb[0].mxu0
    %496 = vdwg.mxu0
    %v497 = vadd.f32 %v449, %v492
    %v498 = vadd.f32 %v497, %v497
    %v499 = vsel %vm157, %v498, %v497
    %v500 = vxor.u32 %v499, 2147483648
    %v501 = vmul.f32 %v500, 1.442695
    %v502 = vpow.pop %v501
    %v503 = vadd.f32 %v502, 1.0
    %v504 = vrcp.pop %v503
    %v505 = vmul.f32 1.0, %v504
    %v506 = vadd.f32 %v505, %v505
    %v507 = vsub.f32 %v506, 1.0
    %v508 = vsel %vm157, %v507, %v505
    %v509 = vmul.f32 %v508, %v436
    %511 = vrot.lane.b32.xlu0 %v508, 64
    %v512 = vpop.permute.xlu0 %511
    %v514 = vmul.f32 %v508, %v512
    %516 = vrot.lane.b32.xlu0 %v514, 32
    %v517 = vpop.permute.xlu0 %516
    %v519 = vadd.f32 %v509, %v517
    %v520 = vtanh.pop %v519
    %522 = vrot.lane.b32.xlu0 %v520, 64
    %v523 = vpop.permute.xlu0 %522
    %v525 = vmul.f32 %v508, %v523
    %527 = vrot.lane.b32.xlu0 %v525, 32
    %v528 = vpop.permute.xlu0 %527
    %s530 = scalar_lea.vmem [#allocation3], 4
    %531 = vst.msk [vmem:[%s530] sm:$0x3] %vm364, %v528
    %v532 = vld [vmem:[%s253] sm:$0x3]
    %v533 = vpack.c.bf16 %v525, %v525
    %535 = vrot.lane.b32.xlu0 %v533, 32
    %v536 = vpop.permute.xlu0 %535
    %v538 = vsel %vm188, %v536, 0
    %540 = vmatprep.subr.bf16.mxu0 0
    %541 = vmatpush1.bf16.msra.mxu0 %v284
    %542 = vmatprep.subr.bf16.mxu0 0
    %543 = vmatpush1.bf16.msra.mxu0 %v285
    %544 = vmatprep.subr.bf16.mxu0 0
    %545 = vmatpush1.bf16.msra.mxu0 0
    %546 = vmatprep.subr.bf16.mxu0 0
    %547 = vmatpush1.bf16.msra.mxu0 0
    %548 = vmatprep.subr.bf16.mxu0 0
    %549 = vmatpush1.bf16.msra.mxu0 0
    %550 = vmatprep.subr.bf16.mxu0 0
    %551 = vmatpush1.bf16.msra.mxu0 0
    %552 = vmatprep.subr.bf16.mxu0 0
    %553 = vmatpush1.bf16.msra.mxu0 0
    %554 = vmatprep.subr.bf16.mxu0 0
    %555 = vmatpush1.bf16.msra.mxu0 0
    %556 = vmatprep.subr.bf16.mxu0 0
    %557 = vmatpush1.bf16.msra.mxu0 0
    %558 = vmatprep.subr.bf16.mxu0 0
    %559 = vmatpush1.bf16.msra.mxu0 0
    %560 = vmatprep.subr.bf16.mxu0 0
    %561 = vmatpush1.bf16.msra.mxu0 0
    %562 = vmatprep.subr.bf16.mxu0 0
    %563 = vmatpush1.bf16.msra.mxu0 0
    %564 = vmatprep.subr.bf16.mxu0 0
    %565 = vmatpush1.bf16.msra.mxu0 0
    %566 = vmatprep.subr.bf16.mxu0 0
    %567 = vmatpush1.bf16.msra.mxu0 0
    %568 = vmatprep.subr.bf16.mxu0 0
    %569 = vmatpush1.bf16.msra.mxu0 0
    %570 = vmatprep.subr.bf16.mxu0 0
    %571 = vmatpush1.bf16.msra.mxu0 0
    %572 = vmatprep.mubr.bf16.mxu0 0
    %573 = vmatmul.mubr.bf16.gmra.mrb[0].mxu0 %v538
    %v574 = vpop.f32.mrb[0].mxu0
    %v575 = vadd.f32 0.0, %v574
    %v576 = vpop.f32.mrb[0].mxu0
    %v577 = vpop.f32.mrb[0].mxu0
    %v578 = vpop.f32.mrb[0].mxu0
    %579 = vdwg.mxu0
    %v580 = vadd.f32 %v532, %v575
    %v581 = vadd.f32 %v580, %v580
    %v582 = vsel %vm157, %v581, %v580
    %v583 = vxor.u32 %v582, 2147483648
    %v584 = vmul.f32 %v583, 1.442695
    %v585 = vpow.pop %v584
    %v586 = vadd.f32 %v585, 1.0
    %v587 = vrcp.pop %v586
    %v588 = vmul.f32 1.0, %v587
    %v589 = vadd.f32 %v588, %v588
    %v590 = vsub.f32 %v589, 1.0
    %v591 = vsel %vm157, %v590, %v588
    %v592 = vmul.f32 %v591, %v519
    %594 = vrot.lane.b32.xlu0 %v591, 64
    %v595 = vpop.permute.xlu0 %594
    %v597 = vmul.f32 %v591, %v595
    %599 = vrot.lane.b32.xlu0 %v597, 32
    %v600 = vpop.permute.xlu0 %599
    %v602 = vadd.f32 %v592, %v600
    %v603 = vtanh.pop %v602
    %605 = vrot.lane.b32.xlu0 %v603, 64
    %v606 = vpop.permute.xlu0 %605
    %v608 = vmul.f32 %v591, %v606
    %610 = vrot.lane.b32.xlu0 %v608, 32
    %v611 = vpop.permute.xlu0 %610
    %s613 = scalar_lea.vmem [#allocation3], 6
    %614 = vst.msk [vmem:[%s613] sm:$0x3] %vm364, %v611
    %v615 = vld [vmem:[%s258] sm:$0x3]
    %v616 = vpack.c.bf16 %v608, %v608
    %618 = vrot.lane.b32.xlu0 %v616, 32
    %v619 = vpop.permute.xlu0 %618
    %v621 = vsel %vm188, %v619, 0
    %623 = vmatprep.subr.bf16.mxu0 0
    %624 = vmatpush1.bf16.msra.mxu0 %v284
    %625 = vmatprep.subr.bf16.mxu0 0
    %626 = vmatpush1.bf16.msra.mxu0 %v285
    %627 = vmatprep.subr.bf16.mxu0 0
    %628 = vmatpush1.bf16.msra.mxu0 0
    %629 = vmatprep.subr.bf16.mxu0 0
    %630 = vmatpush1.bf16.msra.mxu0 0
    %631 = vmatprep.subr.bf16.mxu0 0
    %632 = vmatpush1.bf16.msra.mxu0 0
    %633 = vmatprep.subr.bf16.mxu0 0
    %634 = vmatpush1.bf16.msra.mxu0 0
    %635 = vmatprep.subr.bf16.mxu0 0
    %636 = vmatpush1.bf16.msra.mxu0 0
    %637 = vmatprep.subr.bf16.mxu0 0
    %638 = vmatpush1.bf16.msra.mxu0 0
    %639 = vmatprep.subr.bf16.mxu0 0
    %640 = vmatpush1.bf16.msra.mxu0 0
    %641 = vmatprep.subr.bf16.mxu0 0
    %642 = vmatpush1.bf16.msra.mxu0 0
    %643 = vmatprep.subr.bf16.mxu0 0
    %644 = vmatpush1.bf16.msra.mxu0 0
    %645 = vmatprep.subr.bf16.mxu0 0
    %646 = vmatpush1.bf16.msra.mxu0 0
    %647 = vmatprep.subr.bf16.mxu0 0
    %648 = vmatpush1.bf16.msra.mxu0 0
    %649 = vmatprep.subr.bf16.mxu0 0
    %650 = vmatpush1.bf16.msra.mxu0 0
    %651 = vmatprep.subr.bf16.mxu0 0
    %652 = vmatpush1.bf16.msra.mxu0 0
    %653 = vmatprep.subr.bf16.mxu0 0
    %654 = vmatpush1.bf16.msra.mxu0 0
    %655 = vmatprep.mubr.bf16.mxu0 0
    %656 = vmatmul.mubr.bf16.gmra.mrb[0].mxu0 %v621
    %v657 = vpop.f32.mrb[0].mxu0
    %v658 = vadd.f32 0.0, %v657
    %v659 = vpop.f32.mrb[0].mxu0
    %v660 = vpop.f32.mrb[0].mxu0
    %v661 = vpop.f32.mrb[0].mxu0
    %662 = vdwg.mxu0
    %v663 = vadd.f32 %v615, %v658
    %v664 = vadd.f32 %v663, %v663
    %v665 = vsel %vm157, %v664, %v663
    %v666 = vxor.u32 %v665, 2147483648
    %v667 = vmul.f32 %v666, 1.442695
    %v668 = vpow.pop %v667
    %v669 = vadd.f32 %v668, 1.0
    %v670 = vrcp.pop %v669
    %v671 = vmul.f32 1.0, %v670
    %v672 = vadd.f32 %v671, %v671
    %v673 = vsub.f32 %v672, 1.0
    %v674 = vsel %vm157, %v673, %v671
    %v675 = vmul.f32 %v674, %v602
    %677 = vrot.lane.b32.xlu0 %v674, 64
    %v678 = vpop.permute.xlu0 %677
    %v680 = vmul.f32 %v674, %v678
    %682 = vrot.lane.b32.xlu0 %v680, 32
    %v683 = vpop.permute.xlu0 %682
    %v685 = vadd.f32 %v675, %v683
    %v686 = vtanh.pop %v685
    %688 = vrot.lane.b32.xlu0 %v686, 64
    %v689 = vpop.permute.xlu0 %688
    %v691 = vmul.f32 %v674, %v689
    %693 = vrot.lane.b32.xlu0 %v691, 32
    %v694 = vpop.permute.xlu0 %693
    %s696 = scalar_lea.vmem [#allocation3], 8
    %697 = vst.msk [vmem:[%s696] sm:$0x3] %vm364, %v694
    %v698 = vld [vmem:[%s263] sm:$0x3]
    %v699 = vpack.c.bf16 %v691, %v691
    %701 = vrot.lane.b32.xlu0 %v699, 32
    %v702 = vpop.permute.xlu0 %701
    %v704 = vsel %vm188, %v702, 0
    %706 = vmatprep.subr.bf16.mxu0 0
    %707 = vmatpush1.bf16.msra.mxu0 %v284
    %708 = vmatprep.subr.bf16.mxu0 0
    %709 = vmatpush1.bf16.msra.mxu0 %v285
    %710 = vmatprep.subr.bf16.mxu0 0
    %711 = vmatpush1.bf16.msra.mxu0 0
    %712 = vmatprep.subr.bf16.mxu0 0
    %713 = vmatpush1.bf16.msra.mxu0 0
    %714 = vmatprep.subr.bf16.mxu0 0
    %715 = vmatpush1.bf16.msra.mxu0 0
    %716 = vmatprep.subr.bf16.mxu0 0
    %717 = vmatpush1.bf16.msra.mxu0 0
    %718 = vmatprep.subr.bf16.mxu0 0
    %719 = vmatpush1.bf16.msra.mxu0 0
    %720 = vmatprep.subr.bf16.mxu0 0
    %721 = vmatpush1.bf16.msra.mxu0 0
    %722 = vmatprep.subr.bf16.mxu0 0
    %723 = vmatpush1.bf16.msra.mxu0 0
    %724 = vmatprep.subr.bf16.mxu0 0
    %725 = vmatpush1.bf16.msra.mxu0 0
    %726 = vmatprep.subr.bf16.mxu0 0
    %727 = vmatpush1.bf16.msra.mxu0 0
    %728 = vmatprep.subr.bf16.mxu0 0
    %729 = vmatpush1.bf16.msra.mxu0 0
    %730 = vmatprep.subr.bf16.mxu0 0
    %731 = vmatpush1.bf16.msra.mxu0 0
    %732 = vmatprep.subr.bf16.mxu0 0
    %733 = vmatpush1.bf16.msra.mxu0 0
    %734 = vmatprep.subr.bf16.mxu0 0
    %735 = vmatpush1.bf16.msra.mxu0 0
    %736 = vmatprep.subr.bf16.mxu0 0
    %737 = vmatpush1.bf16.msra.mxu0 0
    %738 = vmatprep.mubr.bf16.mxu0 0
    %739 = vmatmul.mubr.bf16.gmra.mrb[0].mxu0 %v704
    %v740 = vpop.f32.mrb[0].mxu0
    %v741 = vadd.f32 0.0, %v740
    %v742 = vpop.f32.mrb[0].mxu0
    %v743 = vpop.f32.mrb[0].mxu0
    %v744 = vpop.f32.mrb[0].mxu0
    %745 = vdwg.mxu0
    %v746 = vadd.f32 %v698, %v741
    %v747 = vadd.f32 %v746, %v746
    %v748 = vsel %vm157, %v747, %v746
    %v749 = vxor.u32 %v748, 2147483648
    %v750 = vmul.f32 %v749, 1.442695
    %v751 = vpow.pop %v750
    %v752 = vadd.f32 %v751, 1.0
    %v753 = vrcp.pop %v752
    %v754 = vmul.f32 1.0, %v753
    %v755 = vadd.f32 %v754, %v754
    %v756 = vsub.f32 %v755, 1.0
    %v757 = vsel %vm157, %v756, %v754
    %v758 = vmul.f32 %v757, %v685
    %760 = vrot.lane.b32.xlu0 %v757, 64
    %v761 = vpop.permute.xlu0 %760
    %v763 = vmul.f32 %v757, %v761
    %765 = vrot.lane.b32.xlu0 %v763, 32
    %v766 = vpop.permute.xlu0 %765
    %v768 = vadd.f32 %v758, %v766
    %v769 = vtanh.pop %v768
    %771 = vrot.lane.b32.xlu0 %v769, 64
    %v772 = vpop.permute.xlu0 %771
    %v774 = vmul.f32 %v757, %v772
    %776 = vrot.lane.b32.xlu0 %v774, 32
    %v777 = vpop.permute.xlu0 %776
    %s779 = scalar_lea.vmem [#allocation3], 10
    %780 = vst.msk [vmem:[%s779] sm:$0x3] %vm364, %v777
    %v781 = vld [vmem:[%s268] sm:$0x3]
    %v782 = vpack.c.bf16 %v774, %v774
    %784 = vrot.lane.b32.xlu0 %v782, 32
    %v785 = vpop.permute.xlu0 %784
    %v787 = vsel %vm188, %v785, 0
    %789 = vmatprep.subr.bf16.mxu0 0
    %790 = vmatpush1.bf16.msra.mxu0 %v284
    %791 = vmatprep.subr.bf16.mxu0 0
    %792 = vmatpush1.bf16.msra.mxu0 %v285
    %793 = vmatprep.subr.bf16.mxu0 0
    %794 = vmatpush1.bf16.msra.mxu0 0
    %795 = vmatprep.subr.bf16.mxu0 0
    %796 = vmatpush1.bf16.msra.mxu0 0
    %797 = vmatprep.subr.bf16.mxu0 0
    %798 = vmatpush1.bf16.msra.mxu0 0
    %799 = vmatprep.subr.bf16.mxu0 0
    %800 = vmatpush1.bf16.msra.mxu0 0
    %801 = vmatprep.subr.bf16.mxu0 0
    %802 = vmatpush1.bf16.msra.mxu0 0
    %803 = vmatprep.subr.bf16.mxu0 0
    %804 = vmatpush1.bf16.msra.mxu0 0
    %805 = vmatprep.subr.bf16.mxu0 0
    %806 = vmatpush1.bf16.msra.mxu0 0
    %807 = vmatprep.subr.bf16.mxu0 0
    %808 = vmatpush1.bf16.msra.mxu0 0
    %809 = vmatprep.subr.bf16.mxu0 0
    %810 = vmatpush1.bf16.msra.mxu0 0
    %811 = vmatprep.subr.bf16.mxu0 0
    %812 = vmatpush1.bf16.msra.mxu0 0
    %813 = vmatprep.subr.bf16.mxu0 0
    %814 = vmatpush1.bf16.msra.mxu0 0
    %815 = vmatprep.subr.bf16.mxu0 0
    %816 = vmatpush1.bf16.msra.mxu0 0
    %817 = vmatprep.subr.bf16.mxu0 0
    %818 = vmatpush1.bf16.msra.mxu0 0
    %819 = vmatprep.subr.bf16.mxu0 0
    %820 = vmatpush1.bf16.msra.mxu0 0
    %821 = vmatprep.mubr.bf16.mxu0 0
    %822 = vmatmul.mubr.bf16.gmra.mrb[0].mxu0 %v787
    %v823 = vpop.f32.mrb[0].mxu0
    %v824 = vadd.f32 0.0, %v823
    %v825 = vpop.f32.mrb[0].mxu0
    %v826 = vpop.f32.mrb[0].mxu0
    %v827 = vpop.f32.mrb[0].mxu0
    %828 = vdwg.mxu0
    %v829 = vadd.f32 %v781, %v824
    %v830 = vadd.f32 %v829, %v829
    %v831 = vsel %vm157, %v830, %v829
    %v832 = vxor.u32 %v831, 2147483648
    %v833 = vmul.f32 %v832, 1.442695
    %v834 = vpow.pop %v833
    %v835 = vadd.f32 %v834, 1.0
    %v836 = vrcp.pop %v835
    %v837 = vmul.f32 1.0, %v836
    %v838 = vadd.f32 %v837, %v837
    %v839 = vsub.f32 %v838, 1.0
    %v840 = vsel %vm157, %v839, %v837
    %v841 = vmul.f32 %v840, %v768
    %843 = vrot.lane.b32.xlu0 %v840, 64
    %v844 = vpop.permute.xlu0 %843
    %v846 = vmul.f32 %v840, %v844
    %848 = vrot.lane.b32.xlu0 %v846, 32
    %v849 = vpop.permute.xlu0 %848
    %v851 = vadd.f32 %v841, %v849
    %v852 = vtanh.pop %v851
    %854 = vrot.lane.b32.xlu0 %v852, 64
    %v855 = vpop.permute.xlu0 %854
    %v857 = vmul.f32 %v840, %v855
    %859 = vrot.lane.b32.xlu0 %v857, 32
    %v860 = vpop.permute.xlu0 %859
    %s862 = scalar_lea.vmem [#allocation3], 12
    %863 = vst.msk [vmem:[%s862] sm:$0x3] %vm364, %v860
    %v864 = vld [vmem:[%s272] sm:$0x3]
    %v865 = vpack.c.bf16 %v857, %v857
    %867 = vrot.lane.b32.xlu0 %v865, 32
    %v868 = vpop.permute.xlu0 %867
    %v870 = vsel %vm188, %v868, 0
    %872 = vmatprep.subr.bf16.mxu0 0
    %873 = vmatpush1.bf16.msra.mxu0 %v284
    %874 = vmatprep.subr.bf16.mxu0 0
    %875 = vmatpush1.bf16.msra.mxu0 %v285
    %876 = vmatprep.subr.bf16.mxu0 0
    %877 = vmatpush1.bf16.msra.mxu0 0
    %878 = vmatprep.subr.bf16.mxu0 0
    %879 = vmatpush1.bf16.msra.mxu0 0
    %880 = vmatprep.subr.bf16.mxu0 0
    %881 = vmatpush1.bf16.msra.mxu0 0
    %882 = vmatprep.subr.bf16.mxu0 0
    %883 = vmatpush1.bf16.msra.mxu0 0
    %884 = vmatprep.subr.bf16.mxu0 0
    %885 = vmatpush1.bf16.msra.mxu0 0
    %886 = vmatprep.subr.bf16.mxu0 0
    %887 = vmatpush1.bf16.msra.mxu0 0
    %888 = vmatprep.subr.bf16.mxu0 0
    %889 = vmatpush1.bf16.msra.mxu0 0
    %890 = vmatprep.subr.bf16.mxu0 0
    %891 = vmatpush1.bf16.msra.mxu0 0
    %892 = vmatprep.subr.bf16.mxu0 0
    %893 = vmatpush1.bf16.msra.mxu0 0
    %894 = vmatprep.subr.bf16.mxu0 0
    %895 = vmatpush1.bf16.msra.mxu0 0
    %896 = vmatprep.subr.bf16.mxu0 0
    %897 = vmatpush1.bf16.msra.mxu0 0
    %898 = vmatprep.subr.bf16.mxu0 0
    %899 = vmatpush1.bf16.msra.mxu0 0
    %900 = vmatprep.subr.bf16.mxu0 0
    %901 = vmatpush1.bf16.msra.mxu0 0
    %902 = vmatprep.subr.bf16.mxu0 0
    %903 = vmatpush1.bf16.msra.mxu0 0
    %904 = vmatprep.mubr.bf16.mxu0 0
    %905 = vmatmul.mubr.bf16.gmra.mrb[0].mxu0 %v870
    %v906 = vpop.f32.mrb[0].mxu0
    %v907 = vadd.f32 0.0, %v906
    %v908 = vpop.f32.mrb[0].mxu0
    %v909 = vpop.f32.mrb[0].mxu0
    %v910 = vpop.f32.mrb[0].mxu0
    %911 = vdwg.mxu0
    %v912 = vadd.f32 %v864, %v907
    %v913 = vadd.f32 %v912, %v912
    %v914 = vsel %vm157, %v913, %v912
    %v915 = vxor.u32 %v914, 2147483648
    %v916 = vmul.f32 %v915, 1.442695
    %v917 = vpow.pop %v916
    %v918 = vadd.f32 %v917, 1.0
    %v919 = vrcp.pop %v918
    %v920 = vmul.f32 1.0, %v919
    %v921 = vadd.f32 %v920, %v920
    %v922 = vsub.f32 %v921, 1.0
    %v923 = vsel %vm157, %v922, %v920
    %v924 = vmul.f32 %v923, %v851
    %926 = vrot.lane.b32.xlu0 %v923, 64
    %v927 = vpop.permute.xlu0 %926
    %v929 = vmul.f32 %v923, %v927
    %931 = vrot.lane.b32.xlu0 %v929, 32
    %v932 = vpop.permute.xlu0 %931
    %v934 = vadd.f32 %v924, %v932
    %v935 = vtanh.pop %v934
    %937 = vrot.lane.b32.xlu0 %v935, 64
    %v938 = vpop.permute.xlu0 %937
    %v940 = vmul.f32 %v923, %v938
    %942 = vrot.lane.b32.xlu0 %v940, 32
    %v943 = vpop.permute.xlu0 %942
    %s945 = scalar_lea.vmem [#allocation3], 14
    %946 = vst.msk [vmem:[%s945] sm:$0x3] %vm364, %v943
    %v947 = vld [vmem:[#allocation10] sm:$0xf]
    %v948 = vld [vmem:[#allocation10 + $0x4] sm:$0xf]
    %v949 = vld [vmem:[#allocation10 + $0x8] sm:$0xf]
    %v950 = vld [vmem:[#allocation10 + $0xc] sm:$0xf]
    %v951 = vld [vmem:[%s5] sm:$0xf]
    %v952 = vld [vmem:[%s5 + $0x4] sm:$0xf]
    %v953 = vld [vmem:[%s5 + $0x8] sm:$0xf]
    %v954 = vld [vmem:[%s5 + $0xc] sm:$0xf]
    %v955 = vld [vmem:[%s6] sm:$0x1]
    %v956 = vld [vmem:[#allocation3] sm:$0x3]
    %v957 = vld [vmem:[#allocation3 + $0x2] sm:$0x3]
    %v958 = vld [vmem:[#allocation3 + $0x4] sm:$0x3]
    %v959 = vld [vmem:[#allocation3 + $0x6] sm:$0x3]
    %v960 = vld [vmem:[#allocation3 + $0x8] sm:$0x3]
    %v961 = vld [vmem:[#allocation3 + $0xa] sm:$0x3]
    %v962 = vld [vmem:[#allocation3 + $0xc] sm:$0x3]
    %v963 = vld [vmem:[#allocation3 + $0xe] sm:$0x3]
    %v972 = vcombine.low %v956, %v957
    %v973 = vcombine.low %v958, %v959
    %v975 = vunpack.c.l.s4 1983009808
    %v976 = vunpack.c.0.s8 %v975
    %v977 = vlaneseq
    %v978 = vshrl.u32 %v977, 7
    %v979 = vsub.s32 %v976, %v978
    %v980 = vrot.slane %v972, %v979
    %v982 = vunpack.c.l.s4 1983009808
    %v983 = vunpack.c.0.s8 %v982
    %v984 = vlaneseq
    %v985 = vshrl.u32 %v984, 7
    %v986 = vsub.s32 %v983, %v985
    %v987 = vrot.slane %v973, %v986
    %v988 = vcombine.low %v980, %v987
    %v989 = vcombine.low %v960, %v961
    %v990 = vcombine.low %v962, %v963
    %v992 = vunpack.c.l.s4 1983009808
    %v993 = vunpack.c.0.s8 %v992
    %v994 = vlaneseq
    %v995 = vshrl.u32 %v994, 7
    %v996 = vsub.s32 %v993, %v995
    %v997 = vrot.slane %v989, %v996
    %v999 = vunpack.c.l.s4 1983009808
    %v1000 = vunpack.c.0.s8 %v999
    %v1001 = vlaneseq
    %v1002 = vshrl.u32 %v1001, 7
    %v1003 = vsub.s32 %v1000, %v1002
    %v1004 = vrot.slane %v990, %v1003
    %v1005 = vcombine.low %v997, %v1004
    %v1008 = vpack.c.bf16 %v1005, %v988
    %v1010 = vlaneseq
    %v1011 = vshrl.u32 %v1010, 7
    %v1012 = vsub.s32 0, %v1011
    %v1013 = vrot.slane %v955, %v1012
    %v1019 = vunpack.c.l.b16 %v947
    %v1020 = vunpack.c.l.b16 %v948
    %v1021 = vunpack.c.l.b16 %v949
    %v1022 = vunpack.c.l.b16 %v950
    %v1023 = vpack.c.b16 %v1020, %v1019
    %v1024 = vpack.c.b16 %v1022, %v1021
    %v1028 = vsel %vm188, %v1008, 0
    %1030 = vmatprep.subr.bf16.mxu0 0
    %1031 = vmatpush1.bf16.msra.mxu0 %v1023
    %1032 = vmatprep.subr.bf16.mxu0 0
    %1033 = vmatpush1.bf16.msra.mxu0 %v1024
    %1034 = vmatprep.subr.bf16.mxu0 0
    %1035 = vmatpush1.bf16.msra.mxu0 0
    %1036 = vmatprep.subr.bf16.mxu0 0
    %1037 = vmatpush1.bf16.msra.mxu0 0
    %1038 = vmatprep.subr.bf16.mxu0 0
    %1039 = vmatpush1.bf16.msra.mxu0 0
    %1040 = vmatprep.subr.bf16.mxu0 0
    %1041 = vmatpush1.bf16.msra.mxu0 0
    %1042 = vmatprep.subr.bf16.mxu0 0
    %1043 = vmatpush1.bf16.msra.mxu0 0
    %1044 = vmatprep.subr.bf16.mxu0 0
    %1045 = vmatpush1.bf16.msra.mxu0 0
    %1046 = vmatprep.subr.bf16.mxu0 0
    %1047 = vmatpush1.bf16.msra.mxu0 0
    %1048 = vmatprep.subr.bf16.mxu0 0
    %1049 = vmatpush1.bf16.msra.mxu0 0
    %1050 = vmatprep.subr.bf16.mxu0 0
    %1051 = vmatpush1.bf16.msra.mxu0 0
    %1052 = vmatprep.subr.bf16.mxu0 0
    %1053 = vmatpush1.bf16.msra.mxu0 0
    %1054 = vmatprep.subr.bf16.mxu0 0
    %1055 = vmatpush1.bf16.msra.mxu0 0
    %1056 = vmatprep.subr.bf16.mxu0 0
    %1057 = vmatpush1.bf16.msra.mxu0 0
    %1058 = vmatprep.subr.bf16.mxu0 0
    %1059 = vmatpush1.bf16.msra.mxu0 0
    %1060 = vmatprep.subr.bf16.mxu0 0
    %1061 = vmatpush1.bf16.msra.mxu0 0
    %1062 = vmatprep.mubr.bf16.mxu0 0
    %1063 = vmatmul.mubr.bf16.gmra.mrb[0].mxu0 %v1028
    %v1064 = vpop.f32.mrb[0].mxu0
    %v1065 = vadd.f32 %v1013, %v1064
    %v1066 = vpop.f32.mrb[0].mxu0
    %v1067 = vpop.f32.mrb[0].mxu0
    %v1068 = vadd.f32 %v1013, %v1067
    %v1069 = vpop.f32.mrb[0].mxu0
    %1070 = vdwg.mxu0
    %v1073 = vcombine.high %v1065, %v1065
    %v1075 = vunpack.c.l.s4 1983009808
    %v1076 = vunpack.c.0.s8 %v1075
    %v1077 = vlaneseq
    %v1078 = vshrl.u32 %v1077, 7
    %v1079 = vsub.s32 %v1076, %v1078
    %v1080 = vrot.slane %v1065, %v1079
    %v1082 = vunpack.c.l.s4 1983009808
    %v1083 = vunpack.c.0.s8 %v1082
    %v1084 = vlaneseq
    %v1085 = vshrl.u32 %v1084, 7
    %v1086 = vsub.s32 %v1083, %v1085
    %v1087 = vrot.slane %v1073, %v1086
    %v1088 = vcombine.high %v1080, %v1080
    %v1089 = vcombine.high %v1087, %v1087
    %v1090 = vcombine.high %v1068, %v1068
    %v1092 = vunpack.c.l.s4 1983009808
    %v1093 = vunpack.c.0.s8 %v1092
    %v1094 = vlaneseq
    %v1095 = vshrl.u32 %v1094, 7
    %v1096 = vsub.s32 %v1093, %v1095
    %v1097 = vrot.slane %v1068, %v1096
    %v1099 = vunpack.c.l.s4 1983009808
    %v1100 = vunpack.c.0.s8 %v1099
    %v1101 = vlaneseq
    %v1102 = vshrl.u32 %v1101, 7
    %v1103 = vsub.s32 %v1100, %v1102
    %v1104 = vrot.slane %v1090, %v1103
    %v1105 = vcombine.high %v1097, %v1097
    %v1106 = vcombine.high %v1104, %v1104
    %1115 = vst [vmem:[#allocation2] sm:$0x3] %v1080
    %1116 = vst [vmem:[#allocation2 + $0x2] sm:$0x3] %v1088
    %1117 = vst [vmem:[#allocation2 + $0x4] sm:$0x3] %v1087
    %1118 = vst [vmem:[#allocation2 + $0x6] sm:$0x3] %v1089
    %1119 = vst [vmem:[#allocation2 + $0x8] sm:$0x3] %v1097
    %1120 = vst [vmem:[#allocation2 + $0xa] sm:$0x3] %v1105
    %1121 = vst [vmem:[#allocation2 + $0xc] sm:$0x3] %v1104
    %1122 = vst [vmem:[#allocation2 + $0xe] sm:$0x3] %v1106
    %v1123 = vld [vmem:[#allocation2] sm:$0x3]
    %v1128 = vunpack.c.l.b16 %v951
    %v1129 = vunpack.c.l.b16 %v952
    %v1130 = vunpack.c.l.b16 %v953
    %v1131 = vunpack.c.l.b16 %v954
    %v1132 = vpack.c.b16 %v1129, %v1128
    %v1133 = vpack.c.b16 %v1131, %v1130
    %1136 = vmatprep.subr.bf16.mxu0 0
    %1137 = vmatpush1.bf16.msra.mxu0 %v1132
    %1138 = vmatprep.subr.bf16.mxu0 0
    %1139 = vmatpush1.bf16.msra.mxu0 %v1133
    %1140 = vmatprep.subr.bf16.mxu0 0
    %1141 = vmatpush1.bf16.msra.mxu0 0
    %1142 = vmatprep.subr.bf16.mxu0 0
    %1143 = vmatpush1.bf16.msra.mxu0 0
    %1144 = vmatprep.subr.bf16.mxu0 0
    %1145 = vmatpush1.bf16.msra.mxu0 0
    %1146 = vmatprep.subr.bf16.mxu0 0
    %1147 = vmatpush1.bf16.msra.mxu0 0
    %1148 = vmatprep.subr.bf16.mxu0 0
    %1149 = vmatpush1.bf16.msra.mxu0 0
    %1150 = vmatprep.subr.bf16.mxu0 0
    %1151 = vmatpush1.bf16.msra.mxu0 0
    %1152 = vmatprep.subr.bf16.mxu0 0
    %1153 = vmatpush1.bf16.msra.mxu0 0
    %1154 = vmatprep.subr.bf16.mxu0 0
    %1155 = vmatpush1.bf16.msra.mxu0 0
    %1156 = vmatprep.subr.bf16.mxu0 0
    %1157 = vmatpush1.bf16.msra.mxu0 0
    %1158 = vmatprep.subr.bf16.mxu0 0
    %1159 = vmatpush1.bf16.msra.mxu0 0
    %1160 = vmatprep.subr.bf16.mxu0 0
    %1161 = vmatpush1.bf16.msra.mxu0 0
    %1162 = vmatprep.subr.bf16.mxu0 0
    %1163 = vmatpush1.bf16.msra.mxu0 0
    %1164 = vmatprep.subr.bf16.mxu0 0
    %1165 = vmatpush1.bf16.msra.mxu0 0
    %1166 = vmatprep.subr.bf16.mxu0 0
    %1167 = vmatpush1.bf16.msra.mxu0 0
    %1168 = vmatprep.mubr.bf16.mxu0 0
    %1169 = vmatmul.mubr.bf16.gmra.mrb[0].mxu0 %v289
    %v1170 = vpop.f32.mrb[0].mxu0
    %v1171 = vadd.f32 0.0, %v1170
    %v1172 = vpop.f32.mrb[0].mxu0
    %v1173 = vpop.f32.mrb[0].mxu0
    %v1174 = vpop.f32.mrb[0].mxu0
    %1175 = vdwg.mxu0
    %v1176 = vadd.f32 %v1123, %v1171
    %v1177 = vadd.f32 %v1176, %v1176
    %v1178 = vsel %vm157, %v1177, %v1176
    %v1179 = vxor.u32 %v1178, 2147483648
    %v1180 = vmul.f32 %v1179, 1.442695
    %v1181 = vpow.pop %v1180
    %v1182 = vadd.f32 %v1181, 1.0
    %v1183 = vrcp.pop %v1182
    %v1184 = vmul.f32 1.0, %v1183
    %v1185 = vadd.f32 %v1184, %v1184
    %v1186 = vsub.f32 %v1185, 1.0
    %v1187 = vsel %vm157, %v1186, %v1184
    %v1188 = vmul.f32 %v1187, 0.0
    %1190 = vrot.lane.b32.xlu0 %v1187, 64
    %v1191 = vpop.permute.xlu0 %1190
    %v1193 = vmul.f32 %v1187, %v1191
    %1195 = vrot.lane.b32.xlu0 %v1193, 32
    %v1196 = vpop.permute.xlu0 %1195
    %v1198 = vadd.f32 %v1188, %v1196
    %v1199 = vtanh.pop %v1198
    %1201 = vrot.lane.b32.xlu0 %v1199, 64
    %v1202 = vpop.permute.xlu0 %1201
    %v1204 = vmul.f32 %v1187, %v1202
    %1206 = vrot.lane.b32.xlu0 %v1204, 32
    %v1207 = vpop.permute.xlu0 %1206
    %1209 = vst.msk [vmem:[#allocation3] sm:$0x3] %vm364, %v1207
    %v1210 = vld [vmem:[%s243] sm:$0x3]
    %v1211 = vpack.c.bf16 %v1204, %v1204
    %1213 = vrot.lane.b32.xlu0 %v1211, 32
    %v1214 = vpop.permute.xlu0 %1213
    %v1216 = vsel %vm188, %v1214, 0
    %1218 = vmatprep.subr.bf16.mxu0 0
    %1219 = vmatpush1.bf16.msra.mxu0 %v1132
    %1220 = vmatprep.subr.bf16.mxu0 0
    %1221 = vmatpush1.bf16.msra.mxu0 %v1133
    %1222 = vmatprep.subr.bf16.mxu0 0
    %1223 = vmatpush1.bf16.msra.mxu0 0
    %1224 = vmatprep.subr.bf16.mxu0 0
    %1225 = vmatpush1.bf16.msra.mxu0 0
    %1226 = vmatprep.subr.bf16.mxu0 0
    %1227 = vmatpush1.bf16.msra.mxu0 0
    %1228 = vmatprep.subr.bf16.mxu0 0
    %1229 = vmatpush1.bf16.msra.mxu0 0
    %1230 = vmatprep.subr.bf16.mxu0 0
    %1231 = vmatpush1.bf16.msra.mxu0 0
    %1232 = vmatprep.subr.bf16.mxu0 0
    %1233 = vmatpush1.bf16.msra.mxu0 0
    %1234 = vmatprep.subr.bf16.mxu0 0
    %1235 = vmatpush1.bf16.msra.mxu0 0
    %1236 = vmatprep.subr.bf16.mxu0 0
    %1237 = vmatpush1.bf16.msra.mxu0 0
    %1238 = vmatprep.subr.bf16.mxu0 0
    %1239 = vmatpush1.bf16.msra.mxu0 0
    %1240 = vmatprep.subr.bf16.mxu0 0
    %1241 = vmatpush1.bf16.msra.mxu0 0
    %1242 = vmatprep.subr.bf16.mxu0 0
    %1243 = vmatpush1.bf16.msra.mxu0 0
    %1244 = vmatprep.subr.bf16.mxu0 0
    %1245 = vmatpush1.bf16.msra.mxu0 0
    %1246 = vmatprep.subr.bf16.mxu0 0
    %1247 = vmatpush1.bf16.msra.mxu0 0
    %1248 = vmatprep.subr.bf16.mxu0 0
    %1249 = vmatpush1.bf16.msra.mxu0 0
    %1250 = vmatprep.mubr.bf16.mxu0 0
    %1251 = vmatmul.mubr.bf16.gmra.mrb[0].mxu0 %v1216
    %v1252 = vpop.f32.mrb[0].mxu0
    %v1253 = vadd.f32 0.0, %v1252
    %v1254 = vpop.f32.mrb[0].mxu0
    %v1255 = vpop.f32.mrb[0].mxu0
    %v1256 = vpop.f32.mrb[0].mxu0
    %1257 = vdwg.mxu0
    %v1258 = vadd.f32 %v1210, %v1253
    %v1259 = vadd.f32 %v1258, %v1258
    %v1260 = vsel %vm157, %v1259, %v1258
    %v1261 = vxor.u32 %v1260, 2147483648
    %v1262 = vmul.f32 %v1261, 1.442695
    %v1263 = vpow.pop %v1262
    %v1264 = vadd.f32 %v1263, 1.0
    %v1265 = vrcp.pop %v1264
    %v1266 = vmul.f32 1.0, %v1265
    %v1267 = vadd.f32 %v1266, %v1266
    %v1268 = vsub.f32 %v1267, 1.0
    %v1269 = vsel %vm157, %v1268, %v1266
    %v1270 = vmul.f32 %v1269, %v1198
    %1272 = vrot.lane.b32.xlu0 %v1269, 64
    %v1273 = vpop.permute.xlu0 %1272
    %v1275 = vmul.f32 %v1269, %v1273
    %1277 = vrot.lane.b32.xlu0 %v1275, 32
    %v1278 = vpop.permute.xlu0 %1277
    %v1280 = vadd.f32 %v1270, %v1278
    %v1281 = vtanh.pop %v1280
    %1283 = vrot.lane.b32.xlu0 %v1281, 64
    %v1284 = vpop.permute.xlu0 %1283
    %v1286 = vmul.f32 %v1269, %v1284
    %1288 = vrot.lane.b32.xlu0 %v1286, 32
    %v1289 = vpop.permute.xlu0 %1288
    %1291 = vst.msk [vmem:[%s447] sm:$0x3] %vm364, %v1289
    %v1292 = vld [vmem:[%s248] sm:$0x3]
    %v1293 = vpack.c.bf16 %v1286, %v1286
    %1295 = vrot.lane.b32.xlu0 %v1293, 32
    %v1296 = vpop.permute.xlu0 %1295
    %v1298 = vsel %vm188, %v1296, 0
    %1300 = vmatprep.subr.bf16.mxu0 0
    %1301 = vmatpush1.bf16.msra.mxu0 %v1132
    %1302 = vmatprep.subr.bf16.mxu0 0
    %1303 = vmatpush1.bf16.msra.mxu0 %v1133
    %1304 = vmatprep.subr.bf16.mxu0 0
    %1305 = vmatpush1.bf16.msra.mxu0 0
    %1306 = vmatprep.subr.bf16.mxu0 0
    %1307 = vmatpush1.bf16.msra.mxu0 0
    %1308 = vmatprep.subr.bf16.mxu0 0
    %1309 = vmatpush1.bf16.msra.mxu0 0
    %1310 = vmatprep.subr.bf16.mxu0 0
    %1311 = vmatpush1.bf16.msra.mxu0 0
    %1312 = vmatprep.subr.bf16.mxu0 0
    %1313 = vmatpush1.bf16.msra.mxu0 0
    %1314 = vmatprep.subr.bf16.mxu0 0
    %1315 = vmatpush1.bf16.msra.mxu0 0
    %1316 = vmatprep.subr.bf16.mxu0 0
    %1317 = vmatpush1.bf16.msra.mxu0 0
    %1318 = vmatprep.subr.bf16.mxu0 0
    %1319 = vmatpush1.bf16.msra.mxu0 0
    %1320 = vmatprep.subr.bf16.mxu0 0
    %1321 = vmatpush1.bf16.msra.mxu0 0
    %1322 = vmatprep.subr.bf16.mxu0 0
    %1323 = vmatpush1.bf16.msra.mxu0 0
    %1324 = vmatprep.subr.bf16.mxu0 0
    %1325 = vmatpush1.bf16.msra.mxu0 0
    %1326 = vmatprep.subr.bf16.mxu0 0
    %1327 = vmatpush1.bf16.msra.mxu0 0
    %1328 = vmatprep.subr.bf16.mxu0 0
    %1329 = vmatpush1.bf16.msra.mxu0 0
    %1330 = vmatprep.subr.bf16.mxu0 0
    %1331 = vmatpush1.bf16.msra.mxu0 0
    %1332 = vmatprep.mubr.bf16.mxu0 0
    %1333 = vmatmul.mubr.bf16.gmra.mrb[0].mxu0 %v1298
    %v1334 = vpop.f32.mrb[0].mxu0
    %v1335 = vadd.f32 0.0, %v1334
    %v1336 = vpop.f32.mrb[0].mxu0
    %v1337 = vpop.f32.mrb[0].mxu0
    %v1338 = vpop.f32.mrb[0].mxu0
    %1339 = vdwg.mxu0
    %v1340 = vadd.f32 %v1292, %v1335
    %v1341 = vadd.f32 %v1340, %v1340
    %v1342 = vsel %vm157, %v1341, %v1340
    %v1343 = vxor.u32 %v1342, 2147483648
    %v1344 = vmul.f32 %v1343, 1.442695
    %v1345 = vpow.pop %v1344
    %v1346 = vadd.f32 %v1345, 1.0
    %v1347 = vrcp.pop %v1346
    %v1348 = vmul.f32 1.0, %v1347
    %v1349 = vadd.f32 %v1348, %v1348
    %v1350 = vsub.f32 %v1349, 1.0
    %v1351 = vsel %vm157, %v1350, %v1348
    %v1352 = vmul.f32 %v1351, %v1280
    %1354 = vrot.lane.b32.xlu0 %v1351, 64
    %v1355 = vpop.permute.xlu0 %1354
    %v1357 = vmul.f32 %v1351, %v1355
    %1359 = vrot.lane.b32.xlu0 %v1357, 32
    %v1360 = vpop.permute.xlu0 %1359
    %v1362 = vadd.f32 %v1352, %v1360
    %v1363 = vtanh.pop %v1362
    %1365 = vrot.lane.b32.xlu0 %v1363, 64
    %v1366 = vpop.permute.xlu0 %1365
    %v1368 = vmul.f32 %v1351, %v1366
    %1370 = vrot.lane.b32.xlu0 %v1368, 32
    %v1371 = vpop.permute.xlu0 %1370
    %1373 = vst.msk [vmem:[%s530] sm:$0x3] %vm364, %v1371
    %v1374 = vld [vmem:[%s253] sm:$0x3]
    %v1375 = vpack.c.bf16 %v1368, %v1368
    %1377 = vrot.lane.b32.xlu0 %v1375, 32
    %v1378 = vpop.permute.xlu0 %1377
    %v1380 = vsel %vm188, %v1378, 0
    %1382 = vmatprep.subr.bf16.mxu0 0
    %1383 = vmatpush1.bf16.msra.mxu0 %v1132
    %1384 = vmatprep.subr.bf16.mxu0 0
    %1385 = vmatpush1.bf16.msra.mxu0 %v1133
    %1386 = vmatprep.subr.bf16.mxu0 0
    %1387 = vmatpush1.bf16.msra.mxu0 0
    %1388 = vmatprep.subr.bf16.mxu0 0
    %1389 = vmatpush1.bf16.msra.mxu0 0
    %1390 = vmatprep.subr.bf16.mxu0 0
    %1391 = vmatpush1.bf16.msra.mxu0 0
    %1392 = vmatprep.subr.bf16.mxu0 0
    %1393 = vmatpush1.bf16.msra.mxu0 0
    %1394 = vmatprep.subr.bf16.mxu0 0
    %1395 = vmatpush1.bf16.msra.mxu0 0
    %1396 = vmatprep.subr.bf16.mxu0 0
    %1397 = vmatpush1.bf16.msra.mxu0 0
    %1398 = vmatprep.subr.bf16.mxu0 0
    %1399 = vmatpush1.bf16.msra.mxu0 0
    %1400 = vmatprep.subr.bf16.mxu0 0
    %1401 = vmatpush1.bf16.msra.mxu0 0
    %1402 = vmatprep.subr.bf16.mxu0 0
    %1403 = vmatpush1.bf16.msra.mxu0 0
    %1404 = vmatprep.subr.bf16.mxu0 0
    %1405 = vmatpush1.bf16.msra.mxu0 0
    %1406 = vmatprep.subr.bf16.mxu0 0
    %1407 = vmatpush1.bf16.msra.mxu0 0
    %1408 = vmatprep.subr.bf16.mxu0 0
    %1409 = vmatpush1.bf16.msra.mxu0 0
    %1410 = vmatprep.subr.bf16.mxu0 0
    %1411 = vmatpush1.bf16.msra.mxu0 0
    %1412 = vmatprep.subr.bf16.mxu0 0
    %1413 = vmatpush1.bf16.msra.mxu0 0
    %1414 = vmatprep.mubr.bf16.mxu0 0
    %1415 = vmatmul.mubr.bf16.gmra.mrb[0].mxu0 %v1380
    %v1416 = vpop.f32.mrb[0].mxu0
    %v1417 = vadd.f32 0.0, %v1416
    %v1418 = vpop.f32.mrb[0].mxu0
    %v1419 = vpop.f32.mrb[0].mxu0
    %v1420 = vpop.f32.mrb[0].mxu0
    %1421 = vdwg.mxu0
    %v1422 = vadd.f32 %v1374, %v1417
    %v1423 = vadd.f32 %v1422, %v1422
    %v1424 = vsel %vm157, %v1423, %v1422
    %v1425 = vxor.u32 %v1424, 2147483648
    %v1426 = vmul.f32 %v1425, 1.442695
    %v1427 = vpow.pop %v1426
    %v1428 = vadd.f32 %v1427, 1.0
    %v1429 = vrcp.pop %v1428
    %v1430 = vmul.f32 1.0, %v1429
    %v1431 = vadd.f32 %v1430, %v1430
    %v1432 = vsub.f32 %v1431, 1.0
    %v1433 = vsel %vm157, %v1432, %v1430
    %v1434 = vmul.f32 %v1433, %v1362
    %1436 = vrot.lane.b32.xlu0 %v1433, 64
    %v1437 = vpop.permute.xlu0 %1436
    %v1439 = vmul.f32 %v1433, %v1437
    %1441 = vrot.lane.b32.xlu0 %v1439, 32
    %v1442 = vpop.permute.xlu0 %1441
    %v1444 = vadd.f32 %v1434, %v1442
    %v1445 = vtanh.pop %v1444
    %1447 = vrot.lane.b32.xlu0 %v1445, 64
    %v1448 = vpop.permute.xlu0 %1447
    %v1450 = vmul.f32 %v1433, %v1448
    %1452 = vrot.lane.b32.xlu0 %v1450, 32
    %v1453 = vpop.permute.xlu0 %1452
    %1455 = vst.msk [vmem:[%s613] sm:$0x3] %vm364, %v1453
    %v1456 = vld [vmem:[%s258] sm:$0x3]
    %v1457 = vpack.c.bf16 %v1450, %v1450
    %1459 = vrot.lane.b32.xlu0 %v1457, 32
    %v1460 = vpop.permute.xlu0 %1459
    %v1462 = vsel %vm188, %v1460, 0
    %1464 = vmatprep.subr.bf16.mxu0 0
    %1465 = vmatpush1.bf16.msra.mxu0 %v1132
    %1466 = vmatprep.subr.bf16.mxu0 0
    %1467 = vmatpush1.bf16.msra.mxu0 %v1133
    %1468 = vmatprep.subr.bf16.mxu0 0
    %1469 = vmatpush1.bf16.msra.mxu0 0
    %1470 = vmatprep.subr.bf16.mxu0 0
    %1471 = vmatpush1.bf16.msra.mxu0 0
    %1472 = vmatprep.subr.bf16.mxu0 0
    %1473 = vmatpush1.bf16.msra.mxu0 0
    %1474 = vmatprep.subr.bf16.mxu0 0
    %1475 = vmatpush1.bf16.msra.mxu0 0
    %1476 = vmatprep.subr.bf16.mxu0 0
    %1477 = vmatpush1.bf16.msra.mxu0 0
    %1478 = vmatprep.subr.bf16.mxu0 0
    %1479 = vmatpush1.bf16.msra.mxu0 0
    %1480 = vmatprep.subr.bf16.mxu0 0
    %1481 = vmatpush1.bf16.msra.mxu0 0
    %1482 = vmatprep.subr.bf16.mxu0 0
    %1483 = vmatpush1.bf16.msra.mxu0 0
    %1484 = vmatprep.subr.bf16.mxu0 0
    %1485 = vmatpush1.bf16.msra.mxu0 0
    %1486 = vmatprep.subr.bf16.mxu0 0
    %1487 = vmatpush1.bf16.msra.mxu0 0
    %1488 = vmatprep.subr.bf16.mxu0 0
    %1489 = vmatpush1.bf16.msra.mxu0 0
    %1490 = vmatprep.subr.bf16.mxu0 0
    %1491 = vmatpush1.bf16.msra.mxu0 0
    %1492 = vmatprep.subr.bf16.mxu0 0
    %1493 = vmatpush1.bf16.msra.mxu0 0
    %1494 = vmatprep.subr.bf16.mxu0 0
    %1495 = vmatpush1.bf16.msra.mxu0 0
    %1496 = vmatprep.mubr.bf16.mxu0 0
    %1497 = vmatmul.mubr.bf16.gmra.mrb[0].mxu0 %v1462
    %v1498 = vpop.f32.mrb[0].mxu0
    %v1499 = vadd.f32 0.0, %v1498
    %v1500 = vpop.f32.mrb[0].mxu0
    %v1501 = vpop.f32.mrb[0].mxu0
    %v1502 = vpop.f32.mrb[0].mxu0
    %1503 = vdwg.mxu0
    %v1504 = vadd.f32 %v1456, %v1499
    %v1505 = vadd.f32 %v1504, %v1504
    %v1506 = vsel %vm157, %v1505, %v1504
    %v1507 = vxor.u32 %v1506, 2147483648
    %v1508 = vmul.f32 %v1507, 1.442695
    %v1509 = vpow.pop %v1508
    %v1510 = vadd.f32 %v1509, 1.0
    %v1511 = vrcp.pop %v1510
    %v1512 = vmul.f32 1.0, %v1511
    %v1513 = vadd.f32 %v1512, %v1512
    %v1514 = vsub.f32 %v1513, 1.0
    %v1515 = vsel %vm157, %v1514, %v1512
    %v1516 = vmul.f32 %v1515, %v1444
    %1518 = vrot.lane.b32.xlu0 %v1515, 64
    %v1519 = vpop.permute.xlu0 %1518
    %v1521 = vmul.f32 %v1515, %v1519
    %1523 = vrot.lane.b32.xlu0 %v1521, 32
    %v1524 = vpop.permute.xlu0 %1523
    %v1526 = vadd.f32 %v1516, %v1524
    %v1527 = vtanh.pop %v1526
    %1529 = vrot.lane.b32.xlu0 %v1527, 64
    %v1530 = vpop.permute.xlu0 %1529
    %v1532 = vmul.f32 %v1515, %v1530
    %1534 = vrot.lane.b32.xlu0 %v1532, 32
    %v1535 = vpop.permute.xlu0 %1534
    %1537 = vst.msk [vmem:[%s696] sm:$0x3] %vm364, %v1535
    %v1538 = vld [vmem:[%s263] sm:$0x3]
    %v1539 = vpack.c.bf16 %v1532, %v1532
    %1541 = vrot.lane.b32.xlu0 %v1539, 32
    %v1542 = vpop.permute.xlu0 %1541
    %v1544 = vsel %vm188, %v1542, 0
    %1546 = vmatprep.subr.bf16.mxu0 0
    %1547 = vmatpush1.bf16.msra.mxu0 %v1132
    %1548 = vmatprep.subr.bf16.mxu0 0
    %1549 = vmatpush1.bf16.msra.mxu0 %v1133
    %1550 = vmatprep.subr.bf16.mxu0 0
    %1551 = vmatpush1.bf16.msra.mxu0 0
    %1552 = vmatprep.subr.bf16.mxu0 0
    %1553 = vmatpush1.bf16.msra.mxu0 0
    %1554 = vmatprep.subr.bf16.mxu0 0
    %1555 = vmatpush1.bf16.msra.mxu0 0
    %1556 = vmatprep.subr.bf16.mxu0 0
    %1557 = vmatpush1.bf16.msra.mxu0 0
    %1558 = vmatprep.subr.bf16.mxu0 0
    %1559 = vmatpush1.bf16.msra.mxu0 0
    %1560 = vmatprep.subr.bf16.mxu0 0
    %1561 = vmatpush1.bf16.msra.mxu0 0
    %1562 = vmatprep.subr.bf16.mxu0 0
    %1563 = vmatpush1.bf16.msra.mxu0 0
    %1564 = vmatprep.subr.bf16.mxu0 0
    %1565 = vmatpush1.bf16.msra.mxu0 0
    %1566 = vmatprep.subr.bf16.mxu0 0
    %1567 = vmatpush1.bf16.msra.mxu0 0
    %1568 = vmatprep.subr.bf16.mxu0 0
    %1569 = vmatpush1.bf16.msra.mxu0 0
    %1570 = vmatprep.subr.bf16.mxu0 0
    %1571 = vmatpush1.bf16.msra.mxu0 0
    %1572 = vmatprep.subr.bf16.mxu0 0
    %1573 = vmatpush1.bf16.msra.mxu0 0
    %1574 = vmatprep.subr.bf16.mxu0 0
    %1575 = vmatpush1.bf16.msra.mxu0 0
    %1576 = vmatprep.subr.bf16.mxu0 0
    %1577 = vmatpush1.bf16.msra.mxu0 0
    %1578 = vmatprep.mubr.bf16.mxu0 0
    %1579 = vmatmul.mubr.bf16.gmra.mrb[0].mxu0 %v1544
    %v1580 = vpop.f32.mrb[0].mxu0
    %v1581 = vadd.f32 0.0, %v1580
    %v1582 = vpop.f32.mrb[0].mxu0
    %v1583 = vpop.f32.mrb[0].mxu0
    %v1584 = vpop.f32.mrb[0].mxu0
    %1585 = vdwg.mxu0
    %v1586 = vadd.f32 %v1538, %v1581
    %v1587 = vadd.f32 %v1586, %v1586
    %v1588 = vsel %vm157, %v1587, %v1586
    %v1589 = vxor.u32 %v1588, 2147483648
    %v1590 = vmul.f32 %v1589, 1.442695
    %v1591 = vpow.pop %v1590
    %v1592 = vadd.f32 %v1591, 1.0
    %v1593 = vrcp.pop %v1592
    %v1594 = vmul.f32 1.0, %v1593
    %v1595 = vadd.f32 %v1594, %v1594
    %v1596 = vsub.f32 %v1595, 1.0
    %v1597 = vsel %vm157, %v1596, %v1594
    %v1598 = vmul.f32 %v1597, %v1526
    %1600 = vrot.lane.b32.xlu0 %v1597, 64
    %v1601 = vpop.permute.xlu0 %1600
    %v1603 = vmul.f32 %v1597, %v1601
    %1605 = vrot.lane.b32.xlu0 %v1603, 32
    %v1606 = vpop.permute.xlu0 %1605
    %v1608 = vadd.f32 %v1598, %v1606
    %v1609 = vtanh.pop %v1608
    %1611 = vrot.lane.b32.xlu0 %v1609, 64
    %v1612 = vpop.permute.xlu0 %1611
    %v1614 = vmul.f32 %v1597, %v1612
    %1616 = vrot.lane.b32.xlu0 %v1614, 32
    %v1617 = vpop.permute.xlu0 %1616
    %1619 = vst.msk [vmem:[%s779] sm:$0x3] %vm364, %v1617
    %v1620 = vld [vmem:[%s268] sm:$0x3]
    %v1621 = vpack.c.bf16 %v1614, %v1614
    %1623 = vrot.lane.b32.xlu0 %v1621, 32
    %v1624 = vpop.permute.xlu0 %1623
    %v1626 = vsel %vm188, %v1624, 0
    %1628 = vmatprep.subr.bf16.mxu0 0
    %1629 = vmatpush1.bf16.msra.mxu0 %v1132
    %1630 = vmatprep.subr.bf16.mxu0 0
    %1631 = vmatpush1.bf16.msra.mxu0 %v1133
    %1632 = vmatprep.subr.bf16.mxu0 0
    %1633 = vmatpush1.bf16.msra.mxu0 0
    %1634 = vmatprep.subr.bf16.mxu0 0
    %1635 = vmatpush1.bf16.msra.mxu0 0
    %1636 = vmatprep.subr.bf16.mxu0 0
    %1637 = vmatpush1.bf16.msra.mxu0 0
    %1638 = vmatprep.subr.bf16.mxu0 0
    %1639 = vmatpush1.bf16.msra.mxu0 0
    %1640 = vmatprep.subr.bf16.mxu0 0
    %1641 = vmatpush1.bf16.msra.mxu0 0
    %1642 = vmatprep.subr.bf16.mxu0 0
    %1643 = vmatpush1.bf16.msra.mxu0 0
    %1644 = vmatprep.subr.bf16.mxu0 0
    %1645 = vmatpush1.bf16.msra.mxu0 0
    %1646 = vmatprep.subr.bf16.mxu0 0
    %1647 = vmatpush1.bf16.msra.mxu0 0
    %1648 = vmatprep.subr.bf16.mxu0 0
    %1649 = vmatpush1.bf16.msra.mxu0 0
    %1650 = vmatprep.subr.bf16.mxu0 0
    %1651 = vmatpush1.bf16.msra.mxu0 0
    %1652 = vmatprep.subr.bf16.mxu0 0
    %1653 = vmatpush1.bf16.msra.mxu0 0
    %1654 = vmatprep.subr.bf16.mxu0 0
    %1655 = vmatpush1.bf16.msra.mxu0 0
    %1656 = vmatprep.subr.bf16.mxu0 0
    %1657 = vmatpush1.bf16.msra.mxu0 0
    %1658 = vmatprep.subr.bf16.mxu0 0
    %1659 = vmatpush1.bf16.msra.mxu0 0
    %1660 = vmatprep.mubr.bf16.mxu0 0
    %1661 = vmatmul.mubr.bf16.gmra.mrb[0].mxu0 %v1626
    %v1662 = vpop.f32.mrb[0].mxu0
    %v1663 = vadd.f32 0.0, %v1662
    %v1664 = vpop.f32.mrb[0].mxu0
    %v1665 = vpop.f32.mrb[0].mxu0
    %v1666 = vpop.f32.mrb[0].mxu0
    %1667 = vdwg.mxu0
    %v1668 = vadd.f32 %v1620, %v1663
    %v1669 = vadd.f32 %v1668, %v1668
    %v1670 = vsel %vm157, %v1669, %v1668
    %v1671 = vxor.u32 %v1670, 2147483648
    %v1672 = vmul.f32 %v1671, 1.442695
    %v1673 = vpow.pop %v1672
    %v1674 = vadd.f32 %v1673, 1.0
    %v1675 = vrcp.pop %v1674
    %v1676 = vmul.f32 1.0, %v1675
    %v1677 = vadd.f32 %v1676, %v1676
    %v1678 = vsub.f32 %v1677, 1.0
    %v1679 = vsel %vm157, %v1678, %v1676
    %v1680 = vmul.f32 %v1679, %v1608
    %1682 = vrot.lane.b32.xlu0 %v1679, 64
    %v1683 = vpop.permute.xlu0 %1682
    %v1685 = vmul.f32 %v1679, %v1683
    %1687 = vrot.lane.b32.xlu0 %v1685, 32
    %v1688 = vpop.permute.xlu0 %1687
    %v1690 = vadd.f32 %v1680, %v1688
    %v1691 = vtanh.pop %v1690
    %1693 = vrot.lane.b32.xlu0 %v1691, 64
    %v1694 = vpop.permute.xlu0 %1693
    %v1696 = vmul.f32 %v1679, %v1694
    %1698 = vrot.lane.b32.xlu0 %v1696, 32
    %v1699 = vpop.permute.xlu0 %1698
    %1701 = vst.msk [vmem:[%s862] sm:$0x3] %vm364, %v1699
    %v1702 = vld [vmem:[%s272] sm:$0x3]
    %v1703 = vpack.c.bf16 %v1696, %v1696
    %1705 = vrot.lane.b32.xlu0 %v1703, 32
    %v1706 = vpop.permute.xlu0 %1705
    %v1708 = vsel %vm188, %v1706, 0
    %1710 = vmatprep.subr.bf16.mxu0 0
    %1711 = vmatpush1.bf16.msra.mxu0 %v1132
    %1712 = vmatprep.subr.bf16.mxu0 0
    %1713 = vmatpush1.bf16.msra.mxu0 %v1133
    %1714 = vmatprep.subr.bf16.mxu0 0
    %1715 = vmatpush1.bf16.msra.mxu0 0
    %1716 = vmatprep.subr.bf16.mxu0 0
    %1717 = vmatpush1.bf16.msra.mxu0 0
    %1718 = vmatprep.subr.bf16.mxu0 0
    %1719 = vmatpush1.bf16.msra.mxu0 0
    %1720 = vmatprep.subr.bf16.mxu0 0
    %1721 = vmatpush1.bf16.msra.mxu0 0
    %1722 = vmatprep.subr.bf16.mxu0 0
    %1723 = vmatpush1.bf16.msra.mxu0 0
    %1724 = vmatprep.subr.bf16.mxu0 0
    %1725 = vmatpush1.bf16.msra.mxu0 0
    %1726 = vmatprep.subr.bf16.mxu0 0
    %1727 = vmatpush1.bf16.msra.mxu0 0
    %1728 = vmatprep.subr.bf16.mxu0 0
    %1729 = vmatpush1.bf16.msra.mxu0 0
    %1730 = vmatprep.subr.bf16.mxu0 0
    %1731 = vmatpush1.bf16.msra.mxu0 0
    %1732 = vmatprep.subr.bf16.mxu0 0
    %1733 = vmatpush1.bf16.msra.mxu0 0
    %1734 = vmatprep.subr.bf16.mxu0 0
    %1735 = vmatpush1.bf16.msra.mxu0 0
    %1736 = vmatprep.subr.bf16.mxu0 0
    %1737 = vmatpush1.bf16.msra.mxu0 0
    %1738 = vmatprep.subr.bf16.mxu0 0
    %1739 = vmatpush1.bf16.msra.mxu0 0
    %1740 = vmatprep.subr.bf16.mxu0 0
    %1741 = vmatpush1.bf16.msra.mxu0 0
    %1742 = vmatprep.mubr.bf16.mxu0 0
    %1743 = vmatmul.mubr.bf16.gmra.mrb[0].mxu0 %v1708
    %v1744 = vpop.f32.mrb[0].mxu0
    %v1745 = vadd.f32 0.0, %v1744
    %v1746 = vpop.f32.mrb[0].mxu0
    %v1747 = vpop.f32.mrb[0].mxu0
    %v1748 = vpop.f32.mrb[0].mxu0
    %1749 = vdwg.mxu0
    %v1750 = vadd.f32 %v1702, %v1745
    %v1751 = vadd.f32 %v1750, %v1750
    %v1752 = vsel %vm157, %v1751, %v1750
    %v1753 = vxor.u32 %v1752, 2147483648
    %v1754 = vmul.f32 %v1753, 1.442695
    %v1755 = vpow.pop %v1754
    %v1756 = vadd.f32 %v1755, 1.0
    %v1757 = vrcp.pop %v1756
    %v1758 = vmul.f32 1.0, %v1757
    %v1759 = vadd.f32 %v1758, %v1758
    %v1760 = vsub.f32 %v1759, 1.0
    %v1761 = vsel %vm157, %v1760, %v1758
    %v1762 = vmul.f32 %v1761, %v1690
    %1764 = vrot.lane.b32.xlu0 %v1761, 64
    %v1765 = vpop.permute.xlu0 %1764
    %v1767 = vmul.f32 %v1761, %v1765
    %1769 = vrot.lane.b32.xlu0 %v1767, 32
    %v1770 = vpop.permute.xlu0 %1769
    %v1772 = vadd.f32 %v1762, %v1770
    %v1773 = vtanh.pop %v1772
    %1775 = vrot.lane.b32.xlu0 %v1773, 64
    %v1776 = vpop.permute.xlu0 %1775
    %v1778 = vmul.f32 %v1761, %v1776
    %1780 = vrot.lane.b32.xlu0 %v1778, 32
    %v1781 = vpop.permute.xlu0 %1780
    %1783 = vst.msk [vmem:[%s945] sm:$0x3] %vm364, %v1781
    %v1784 = vld [vmem:[#allocation3] sm:$0x3]
    %v1785 = vld [vmem:[#allocation3 + $0x2] sm:$0x3]
    %v1786 = vld [vmem:[#allocation3 + $0x4] sm:$0x3]
    %v1787 = vld [vmem:[#allocation3 + $0x6] sm:$0x3]
    %v1788 = vld [vmem:[#allocation3 + $0x8] sm:$0x3]
    %v1789 = vld [vmem:[#allocation3 + $0xa] sm:$0x3]
    %v1790 = vld [vmem:[#allocation3 + $0xc] sm:$0x3]
    %v1791 = vld [vmem:[#allocation3 + $0xe] sm:$0x3]
    %v1800 = vcombine.low %v1784, %v1785
    %v1801 = vcombine.low %v1786, %v1787
    %v1803 = vunpack.c.l.s4 1983009808
    %v1804 = vunpack.c.0.s8 %v1803
    %v1805 = vlaneseq
    %v1806 = vshrl.u32 %v1805, 7
    %v1807 = vsub.s32 %v1804, %v1806
    %v1808 = vrot.slane %v1800, %v1807
    %v1810 = vunpack.c.l.s4 1983009808
    %v1811 = vunpack.c.0.s8 %v1810
    %v1812 = vlaneseq
    %v1813 = vshrl.u32 %v1812, 7
    %v1814 = vsub.s32 %v1811, %v1813
    %v1815 = vrot.slane %v1801, %v1814
    %v1816 = vcombine.low %v1808, %v1815
    %v1817 = vcombine.low %v1788, %v1789
    %v1818 = vcombine.low %v1790, %v1791
    %v1820 = vunpack.c.l.s4 1983009808
    %v1821 = vunpack.c.0.s8 %v1820
    %v1822 = vlaneseq
    %v1823 = vshrl.u32 %v1822, 7
    %v1824 = vsub.s32 %v1821, %v1823
    %v1825 = vrot.slane %v1817, %v1824
    %v1827 = vunpack.c.l.s4 1983009808
    %v1828 = vunpack.c.0.s8 %v1827
    %v1829 = vlaneseq
    %v1830 = vshrl.u32 %v1829, 7
    %v1831 = vsub.s32 %v1828, %v1830
    %v1832 = vrot.slane %v1818, %v1831
    %v1833 = vcombine.low %v1825, %v1832
    %v1836 = vpack.c.bf16 %v1833, %v1816
    %v1837 = vld [vmem:[#allocation12] sm:$0xf]
    %v1838 = vld [vmem:[#allocation12 + $0x4] sm:$0xf]
    %v1839 = vld [vmem:[#allocation12 + $0x8] sm:$0xf]
    %v1840 = vld [vmem:[#allocation12 + $0xc] sm:$0xf]
    %v1841 = vld [vmem:[%s8] sm:$0x1]
    %v1843 = vlaneseq
    %v1844 = vshrl.u32 %v1843, 7
    %v1845 = vsub.s32 0, %v1844
    %v1846 = vrot.slane %v1841, %v1845
    %v1852 = vunpack.c.l.b16 %v1837
    %v1853 = vunpack.c.l.b16 %v1838
    %v1854 = vunpack.c.l.b16 %v1839
    %v1855 = vunpack.c.l.b16 %v1840
    %v1856 = vpack.c.b16 %v1853, %v1852
    %v1857 = vpack.c.b16 %v1855, %v1854
    %v1861 = vsel %vm188, %v1836, 0
    %1863 = vmatprep.subr.bf16.mxu0 0
    %1864 = vmatpush1.bf16.msra.mxu0 %v1856
    %1865 = vmatprep.subr.bf16.mxu0 0
    %1866 = vmatpush1.bf16.msra.mxu0 %v1857
    %1867 = vmatprep.subr.bf16.mxu0 0
    %1868 = vmatpush1.bf16.msra.mxu0 0
    %1869 = vmatprep.subr.bf16.mxu0 0
    %1870 = vmatpush1.bf16.msra.mxu0 0
    %1871 = vmatprep.subr.bf16.mxu0 0
    %1872 = vmatpush1.bf16.msra.mxu0 0
    %1873 = vmatprep.subr.bf16.mxu0 0
    %1874 = vmatpush1.bf16.msra.mxu0 0
    %1875 = vmatprep.subr.bf16.mxu0 0
    %1876 = vmatpush1.bf16.msra.mxu0 0
    %1877 = vmatprep.subr.bf16.mxu0 0
    %1878 = vmatpush1.bf16.msra.mxu0 0
    %1879 = vmatprep.subr.bf16.mxu0 0
    %1880 = vmatpush1.bf16.msra.mxu0 0
    %1881 = vmatprep.subr.bf16.mxu0 0
    %1882 = vmatpush1.bf16.msra.mxu0 0
    %1883 = vmatprep.subr.bf16.mxu0 0
    %1884 = vmatpush1.bf16.msra.mxu0 0
    %1885 = vmatprep.subr.bf16.mxu0 0
    %1886 = vmatpush1.bf16.msra.mxu0 0
    %1887 = vmatprep.subr.bf16.mxu0 0
    %1888 = vmatpush1.bf16.msra.mxu0 0
    %1889 = vmatprep.subr.bf16.mxu0 0
    %1890 = vmatpush1.bf16.msra.mxu0 0
    %1891 = vmatprep.subr.bf16.mxu0 0
    %1892 = vmatpush1.bf16.msra.mxu0 0
    %1893 = vmatprep.subr.bf16.mxu0 0
    %1894 = vmatpush1.bf16.msra.mxu0 0
    %1895 = vmatprep.mubr.bf16.mxu0 0
    %1896 = vmatmul.mubr.bf16.gmra.mrb[0].mxu0 %v1861
    %v1897 = vpop.f32.mrb[0].mxu0
    %v1898 = vadd.f32 %v1846, %v1897
    %v1899 = vpop.f32.mrb[0].mxu0
    %v1900 = vpop.f32.mrb[0].mxu0
    %v1901 = vadd.f32 %v1846, %v1900
    %v1902 = vpop.f32.mrb[0].mxu0
    %1903 = vdwg.mxu0
    %v1904 = vmax.f32 %v1898, 0.0
    %v1905 = vmax.f32 %v1901, 0.0
    %1906 = vadd.xlane.f32.xlu0 %v1904
    %v1907 = vpop.xlane.xlu0 %1906
    %1908 = vadd.xlane.f32.xlu0 %v1905
    %v1909 = vpop.xlane.xlu0 %1908
    %v1910 = vmul.f32 %v1907, 0.015625
    %v1911 = vmul.f32 %v1909, 0.015625
    %v1912 = vmul.f32 %v1904, %v1904
    %v1913 = vmul.f32 %v1905, %v1905
    %1914 = vadd.xlane.f32.xlu0 %v1912
    %v1915 = vpop.xlane.xlu0 %1914
    %1916 = vadd.xlane.f32.xlu0 %v1913
    %v1917 = vpop.xlane.xlu0 %1916
    %v1918 = vmul.f32 %v1915, 0.015625
    %v1919 = vmul.f32 %v1917, 0.015625
    %v1920 = vmul.f32 %v1910, %v1910
    %v1921 = vmul.f32 %v1911, %v1911
    %v1922 = vsub.f32 %v1918, %v1920
    %v1923 = vsub.f32 %v1919, %v1921
    %v1924 = vmax.f32 %v1922, 0.0
    %v1925 = vmax.f32 %v1923, 0.0
    %v1926 = vsub.f32 %v1904, %v1910
    %v1927 = vsub.f32 %v1905, %v1911
    %v1928 = vadd.f32 %v1924, 1e-05
    %v1929 = vadd.f32 %v1925, 1e-05
    %v1930 = vrsqrt.pop %v1928
    %v1931 = vrsqrt.pop %v1929
    %v1932 = vmul.f32 %v1926, %v1930
    %v1933 = vmul.f32 %v1927, %v1931
    %v1934 = vld [vmem:[%s9] sm:$0x1]
    %v1936 = vlaneseq
    %v1937 = vshrl.u32 %v1936, 7
    %v1938 = vsub.s32 0, %v1937
    %v1939 = vrot.slane %v1934, %v1938
    %v1941 = vmul.f32 %v1932, %v1939
    %v1942 = vmul.f32 %v1933, %v1939
    %v1943 = vld [vmem:[%s10] sm:$0x1]
    %v1945 = vlaneseq
    %v1946 = vshrl.u32 %v1945, 7
    %v1947 = vsub.s32 0, %v1946
    %v1948 = vrot.slane %v1943, %v1947
    %v1950 = vadd.f32 %v1941, %v1948
    %v1951 = vadd.f32 %v1942, %v1948
    %v1952 = vmax.f32 %v1950, 0.0
    %v1953 = vmax.f32 %v1951, 0.0
    %v1954 = vpack.c.bf16 %v1953, %v1952
    %v1955 = vld [vmem:[#allocation13] sm:$0xf]
    %v1956 = vld [vmem:[#allocation13 + $0x4] sm:$0xf]
    %v1957 = vld [vmem:[#allocation13 + $0x8] sm:$0xf]
    %v1958 = vld [vmem:[#allocation13 + $0xc] sm:$0xf]
    %v1959 = vld [vmem:[#allocation13 + $0x10] sm:$0xf]
    %v1960 = vld [vmem:[#allocation13 + $0x14] sm:$0xf]
    %v1961 = vld [vmem:[#allocation13 + $0x18] sm:$0xf]
    %v1962 = vld [vmem:[#allocation13 + $0x1c] sm:$0xf]
    %v1963 = vld [vmem:[#allocation13 + $0x20] sm:$0xf]
    %v1964 = vld [vmem:[#allocation13 + $0x24] sm:$0xf]
    %v1965 = vld [vmem:[#allocation13 + $0x28] sm:$0xf]
    %v1966 = vld [vmem:[#allocation13 + $0x2c] sm:$0xf]
    %v1967 = vld [vmem:[#allocation13 + $0x30] sm:$0xf]
    %v1968 = vld [vmem:[#allocation13 + $0x34] sm:$0xf]
    %v1969 = vld [vmem:[#allocation13 + $0x38] sm:$0xf]
    %v1970 = vld [vmem:[#allocation13 + $0x3c] sm:$0xf]
    %v1971 = vld [vmem:[%s12] sm:$0x1]
    %v1973 = vlaneseq
    %v1974 = vshrl.u32 %v1973, 7
    %v1975 = vsub.s32 0, %v1974
    %v1976 = vrot.slane %v1971, %v1975
    %v1994 = vunpack.c.l.b16 %v1955
    %v1995 = vunpack.c.l.b16 %v1956
    %v1996 = vunpack.c.l.b16 %v1957
    %v1997 = vunpack.c.l.b16 %v1958
    %v1998 = vunpack.c.l.b16 %v1959
    %v1999 = vunpack.c.l.b16 %v1960
    %v2000 = vunpack.c.l.b16 %v1961
    %v2001 = vunpack.c.l.b16 %v1962
    %v2002 = vunpack.c.l.b16 %v1963
    %v2003 = vunpack.c.l.b16 %v1964
    %v2004 = vunpack.c.l.b16 %v1965
    %v2005 = vunpack.c.l.b16 %v1966
    %v2006 = vunpack.c.l.b16 %v1967
    %v2007 = vunpack.c.l.b16 %v1968
    %v2008 = vunpack.c.l.b16 %v1969
    %v2009 = vunpack.c.l.b16 %v1970
    %v2010 = vpack.c.b16 %v1995, %v1994
    %v2011 = vpack.c.b16 %v1997, %v1996
    %v2012 = vpack.c.b16 %v1999, %v1998
    %v2013 = vpack.c.b16 %v2001, %v2000
    %v2014 = vpack.c.b16 %v2003, %v2002
    %v2015 = vpack.c.b16 %v2005, %v2004
    %v2016 = vpack.c.b16 %v2007, %v2006
    %v2017 = vpack.c.b16 %v2009, %v2008
    %2026 = vmatprep.subr.bf16.mxu0 0
    %2027 = vmatpush1.bf16.msra.mxu0 %v2010
    %2028 = vmatprep.subr.bf16.mxu0 0
    %2029 = vmatpush1.bf16.msra.mxu0 %v2011
    %2030 = vmatprep.subr.bf16.mxu0 0
    %2031 = vmatpush1.bf16.msra.mxu0 %v2012
    %2032 = vmatprep.subr.bf16.mxu0 0
    %2033 = vmatpush1.bf16.msra.mxu0 %v2013
    %2034 = vmatprep.subr.bf16.mxu0 0
    %2035 = vmatpush1.bf16.msra.mxu0 %v2014
    %2036 = vmatprep.subr.bf16.mxu0 0
    %2037 = vmatpush1.bf16.msra.mxu0 %v2015
    %2038 = vmatprep.subr.bf16.mxu0 0
    %2039 = vmatpush1.bf16.msra.mxu0 %v2016
    %2040 = vmatprep.subr.bf16.mxu0 0
    %2041 = vmatpush1.bf16.msra.mxu0 %v2017
    %2042 = vmatprep.subr.bf16.mxu0 0
    %2043 = vmatpush1.bf16.msra.mxu0 0
    %2044 = vmatprep.subr.bf16.mxu0 0
    %2045 = vmatpush1.bf16.msra.mxu0 0
    %2046 = vmatprep.subr.bf16.mxu0 0
    %2047 = vmatpush1.bf16.msra.mxu0 0
    %2048 = vmatprep.subr.bf16.mxu0 0
    %2049 = vmatpush1.bf16.msra.mxu0 0
    %2050 = vmatprep.subr.bf16.mxu0 0
    %2051 = vmatpush1.bf16.msra.mxu0 0
    %2052 = vmatprep.subr.bf16.mxu0 0
    %2053 = vmatpush1.bf16.msra.mxu0 0
    %2054 = vmatprep.subr.bf16.mxu0 0
    %2055 = vmatpush1.bf16.msra.mxu0 0
    %2056 = vmatprep.subr.bf16.mxu0 0
    %2057 = vmatpush1.bf16.msra.mxu0 0
    %2058 = vmatprep.mubr.bf16.mxu0 0
    %2059 = vmatmul.mubr.bf16.gmra.mrb[0].mxu0 %v1954
    %v2060 = vpop.f32.mrb[0].mxu0
    %v2061 = vadd.f32 %v1976, %v2060
    %v2062 = vpop.f32.mrb[0].mxu0
    %v2063 = vpop.f32.mrb[0].mxu0
    %v2064 = vadd.f32 %v1976, %v2063
    %v2065 = vpop.f32.mrb[0].mxu0
    %2066 = vdwg.mxu0
    %v2067 = vmax.f32 %v2061, 0.0
    %v2068 = vmax.f32 %v2064, 0.0
    %2069 = vadd.xlane.f32.xlu0 %v2067
    %v2070 = vpop.xlane.xlu0 %2069
    %2071 = vadd.xlane.f32.xlu0 %v2068
    %v2072 = vpop.xlane.xlu0 %2071
    %v2073 = vmul.f32 %v2070, 0.015625
    %v2074 = vmul.f32 %v2072, 0.015625
    %v2075 = vmul.f32 %v2067, %v2067
    %v2076 = vmul.f32 %v2068, %v2068
    %2077 = vadd.xlane.f32.xlu0 %v2075
    %v2078 = vpop.xlane.xlu0 %2077
    %2079 = vadd.xlane.f32.xlu0 %v2076
    %v2080 = vpop.xlane.xlu0 %2079
    %v2081 = vmul.f32 %v2078, 0.015625
    %v2082 = vmul.f32 %v2080, 0.015625
    %v2083 = vmul.f32 %v2073, %v2073
    %v2084 = vmul.f32 %v2074, %v2074
    %v2085 = vsub.f32 %v2081, %v2083
    %v2086 = vsub.f32 %v2082, %v2084
    %v2087 = vmax.f32 %v2085, 0.0
    %v2088 = vmax.f32 %v2086, 0.0
    %v2089 = vsub.f32 %v2067, %v2073
    %v2090 = vsub.f32 %v2068, %v2074
    %v2091 = vadd.f32 %v2087, 1e-05
    %v2092 = vadd.f32 %v2088, 1e-05
    %v2093 = vrsqrt.pop %v2091
    %v2094 = vrsqrt.pop %v2092
    %v2095 = vmul.f32 %v2089, %v2093
    %v2096 = vmul.f32 %v2090, %v2094
    %v2097 = vld [vmem:[%s13] sm:$0x1]
    %v2099 = vlaneseq
    %v2100 = vshrl.u32 %v2099, 7
    %v2101 = vsub.s32 0, %v2100
    %v2102 = vrot.slane %v2097, %v2101
    %v2104 = vmul.f32 %v2095, %v2102
    %v2105 = vmul.f32 %v2096, %v2102
    %v2106 = vld [vmem:[%s14] sm:$0x1]
    %v2108 = vlaneseq
    %v2109 = vshrl.u32 %v2108, 7
    %v2110 = vsub.s32 0, %v2109
    %v2111 = vrot.slane %v2106, %v2110
    %v2113 = vadd.f32 %v2104, %v2111
    %v2114 = vadd.f32 %v2105, %v2111
    %v2115 = vmax.f32 %v2113, 0.0
    %v2116 = vmax.f32 %v2114, 0.0
    %v2117 = vpack.c.bf16 %v2116, %v2115
    %v2118 = vld [vmem:[#allocation15] sm:$0xf]
    %v2119 = vld [vmem:[#allocation15 + $0x4] sm:$0xf]
    %v2120 = vld [vmem:[#allocation15 + $0x8] sm:$0xf]
    %v2121 = vld [vmem:[#allocation15 + $0xc] sm:$0xf]
    %v2122 = vld [vmem:[#allocation15 + $0x10] sm:$0xf]
    %v2123 = vld [vmem:[#allocation15 + $0x14] sm:$0xf]
    %v2124 = vld [vmem:[#allocation15 + $0x18] sm:$0xf]
    %v2125 = vld [vmem:[#allocation15 + $0x1c] sm:$0xf]
    %v2126 = vld [vmem:[#allocation15 + $0x20] sm:$0xf]
    %v2127 = vld [vmem:[#allocation15 + $0x24] sm:$0xf]
    %v2128 = vld [vmem:[#allocation15 + $0x28] sm:$0xf]
    %v2129 = vld [vmem:[#allocation15 + $0x2c] sm:$0xf]
    %v2130 = vld [vmem:[#allocation15 + $0x30] sm:$0xf]
    %v2131 = vld [vmem:[#allocation15 + $0x34] sm:$0xf]
    %v2132 = vld [vmem:[#allocation15 + $0x38] sm:$0xf]
    %v2133 = vld [vmem:[#allocation15 + $0x3c] sm:$0xf]
    %v2134 = vld [vmem:[%s16] sm:$0x1]
    %v2136 = vlaneseq
    %v2137 = vshrl.u32 %v2136, 7
    %v2138 = vsub.s32 0, %v2137
    %v2139 = vrot.slane %v2134, %v2138
    %v2157 = vunpack.c.l.b16 %v2118
    %v2158 = vunpack.c.l.b16 %v2119
    %v2159 = vunpack.c.l.b16 %v2120
    %v2160 = vunpack.c.l.b16 %v2121
    %v2161 = vunpack.c.l.b16 %v2122
    %v2162 = vunpack.c.l.b16 %v2123
    %v2163 = vunpack.c.l.b16 %v2124
    %v2164 = vunpack.c.l.b16 %v2125
    %v2165 = vunpack.c.l.b16 %v2126
    %v2166 = vunpack.c.l.b16 %v2127
    %v2167 = vunpack.c.l.b16 %v2128
    %v2168 = vunpack.c.l.b16 %v2129
    %v2169 = vunpack.c.l.b16 %v2130
    %v2170 = vunpack.c.l.b16 %v2131
    %v2171 = vunpack.c.l.b16 %v2132
    %v2172 = vunpack.c.l.b16 %v2133
    %v2173 = vpack.c.b16 %v2158, %v2157
    %v2174 = vpack.c.b16 %v2160, %v2159
    %v2175 = vpack.c.b16 %v2162, %v2161
    %v2176 = vpack.c.b16 %v2164, %v2163
    %v2177 = vpack.c.b16 %v2166, %v2165
    %v2178 = vpack.c.b16 %v2168, %v2167
    %v2179 = vpack.c.b16 %v2170, %v2169
    %v2180 = vpack.c.b16 %v2172, %v2171
    %2189 = vmatprep.subr.bf16.mxu0 0
    %2190 = vmatpush1.bf16.msra.mxu0 %v2173
    %2191 = vmatprep.subr.bf16.mxu0 0
    %2192 = vmatpush1.bf16.msra.mxu0 %v2174
    %2193 = vmatprep.subr.bf16.mxu0 0
    %2194 = vmatpush1.bf16.msra.mxu0 %v2175
    %2195 = vmatprep.subr.bf16.mxu0 0
    %2196 = vmatpush1.bf16.msra.mxu0 %v2176
    %2197 = vmatprep.subr.bf16.mxu0 0
    %2198 = vmatpush1.bf16.msra.mxu0 %v2177
    %2199 = vmatprep.subr.bf16.mxu0 0
    %2200 = vmatpush1.bf16.msra.mxu0 %v2178
    %2201 = vmatprep.subr.bf16.mxu0 0
    %2202 = vmatpush1.bf16.msra.mxu0 %v2179
    %2203 = vmatprep.subr.bf16.mxu0 0
    %2204 = vmatpush1.bf16.msra.mxu0 %v2180
    %2205 = vmatprep.subr.bf16.mxu0 0
    %2206 = vmatpush1.bf16.msra.mxu0 0
    %2207 = vmatprep.subr.bf16.mxu0 0
    %2208 = vmatpush1.bf16.msra.mxu0 0
    %2209 = vmatprep.subr.bf16.mxu0 0
    %2210 = vmatpush1.bf16.msra.mxu0 0
    %2211 = vmatprep.subr.bf16.mxu0 0
    %2212 = vmatpush1.bf16.msra.mxu0 0
    %2213 = vmatprep.subr.bf16.mxu0 0
    %2214 = vmatpush1.bf16.msra.mxu0 0
    %2215 = vmatprep.subr.bf16.mxu0 0
    %2216 = vmatpush1.bf16.msra.mxu0 0
    %2217 = vmatprep.subr.bf16.mxu0 0
    %2218 = vmatpush1.bf16.msra.mxu0 0
    %2219 = vmatprep.subr.bf16.mxu0 0
    %2220 = vmatpush1.bf16.msra.mxu0 0
    %2221 = vmatprep.mubr.bf16.mxu0 0
    %2222 = vmatmul.mubr.bf16.gmra.mrb[0].mxu0 %v2117
    %v2223 = vpop.f32.mrb[0].mxu0
    %v2224 = vadd.f32 %v2139, %v2223
    %v2225 = vpop.f32.mrb[0].mxu0
    %v2226 = vpop.f32.mrb[0].mxu0
    %v2227 = vadd.f32 %v2139, %v2226
    %v2228 = vpop.f32.mrb[0].mxu0
    %2229 = vdwg.mxu0
    %v2230 = vmax.f32 %v2224, 0.0
    %v2231 = vmax.f32 %v2227, 0.0
    %2232 = vst [vmem:[#allocation16] sm:$0xff] %v2230
    %2233 = vst [vmem:[#allocation16 + $0x8] sm:$0xff] %v2231
    // Predicated region
    $region98: #{tpu_custom_call.1} parent=1 // pred_check
      _
    $region99: #{tpu_custom_call.1} parent=1 // pred_check_branch
      %2235 = sbr.rel (0) target = $region101
    $region100: #{tpu_custom_call.1} parent=1 // pred_region
      %s2237 = ssub.s32 256, 256
      %2238 = vsyncadd [#allocation6], %s2237
      %s2239 = sshll.u32 [#allocation16], 4
      %s2240 = int_to_ptr.vmem [resolvable:$true] %s2239
      %2245 = dma.vmem_to_hbm [thread:$0]  %s2240, 256, %s17, [#allocation6], 128, 128, 8
    $region101: #{tpu_custom_call.1} parent=1 // pred_fallthru
      _
    // Predicated region
    $region102: #{tpu_custom_call.1} parent=1 // pred_check
      _
    $region103: #{tpu_custom_call.1} parent=1 // pred_check_branch
      %2247 = sbr.rel (0) target = $region105
    $region104: #{tpu_custom_call.1} parent=1 // pred_region
      %2248 = dma.done [#allocation6], 256
    $region105: #{tpu_custom_call.1} parent=1 // pred_fallthru
      _
    %2249 = vsyncpa [#allocation5], 1
    %2250 = vsyncpa [#allocation8], 1
    %2251 = vsyncpa [#allocation11], 1
    %2252 = vsyncpa [#allocation14], 1
    %2253 = vsyncpa [#allocation6], 1

</llo_original>
